<compile_context>
chip_gen: v5e
topology: v5e:2x2
jax: 0.10.0
libtpu: 0.0.40
codegen_flags: <defaults>
</compile_context>

<pallas_src>
import functools

import jax
import jax.numpy as jnp
import numpy as np
from jax.experimental import pallas as pl
from jax.experimental.pallas import tpu as pltpu

IN_DIM = 32 * 32      # 1024
HID_DIM = 18 * 18     # 324
LAT_DIM = 30

# Lane-dense padded sizes (multiples of 128).
HID_PAD = 384         # 3 * 128
LAT_PAD = 128


def _round_up(n, m):
    return ((n + m - 1) // m) * m


def autoencoder_kernel(x_ref,
                       w1_ref, b1_ref, w2_ref, b2_ref,
                       w3_ref, b3_ref, w4_ref, b4_ref,
                       enc_ref, dec_ref):
    """One (TM, IN_DIM) batch tile: encoder + decoder, bf16 matmuls, f32 accumulation."""
    # In-kernel f32 -> bf16 cast (cheap VPU op, hidden under DMA/MXU); avoids a
    # separate HBM-materialized bf16 copy of x in the wrapper.
    x = x_ref[...].astype(w1_ref.dtype)                                 # (TM, 1024) bf16

    # Encoder: Linear(1024 -> 384pad) -> Tanh -> Linear(384pad -> 128pad)
    h1 = jnp.tanh(
        jnp.dot(x, w1_ref[...], preferred_element_type=jnp.float32) + b1_ref[...])
    enc = jnp.dot(h1.astype(w2_ref.dtype), w2_ref[...],
                  preferred_element_type=jnp.float32) + b2_ref[...]
    enc_ref[...] = enc.astype(enc_ref.dtype)                            # f32 latent

    # Decoder: Linear(128pad -> 384pad) -> Tanh -> Linear(384pad -> 1024) -> Sigmoid
    h2 = jnp.tanh(
        jnp.dot(enc.astype(w3_ref.dtype), w3_ref[...],
                preferred_element_type=jnp.float32) + b3_ref[...])
    logits = jnp.dot(h2.astype(w4_ref.dtype), w4_ref[...],
                     preferred_element_type=jnp.float32) + b4_ref[...]
    dec_ref[...] = jax.nn.sigmoid(logits).astype(dec_ref.dtype)         # bf16 store


def prepare_params(params, compute_dtype=jnp.bfloat16):
    """Pad weights/biases to lane-dense shapes ONCE (hoisted out of the forward jit).

    Weights in compute dtype (bf16), biases in f32.  Zero padding keeps the
    padded lanes exactly inert (see correctness note in module docstring).
    """
    def padw(w, rows, cols):
        r, c = w.shape
        return jnp.pad(w, ((0, rows - r), (0, cols - c))).astype(compute_dtype)

    def padb(b, cols):
        return jnp.pad(b, ((0, 0), (0, cols - b.shape[1]))).astype(jnp.float32)

    return (
        padw(params["w1"], IN_DIM, HID_PAD),  padb(params["b1"], HID_PAD),
        padw(params["w2"], HID_PAD, LAT_PAD), padb(params["b2"], LAT_PAD),
        padw(params["w3"], LAT_PAD, HID_PAD), padb(params["b3"], HID_PAD),
        padw(params["w4"], HID_PAD, IN_DIM),  padb(params["b4"], IN_DIM),
    )


@functools.partial(jax.jit, static_argnames=("block_rows", "dec_dtype"))
def autoencoder_forward(x, prepared_params, *, block_rows=512, dec_dtype=jnp.bfloat16):
    """x: (B, 1024) float32.  prepared_params: output of prepare_params().

    Returns padded outputs (consumer slices on the host):
      enc: (Bp, 128) float32   -- logical latent is enc[:B, :30]
      dec: (Bp, 1024) dec_dtype -- logical reconstruction is dec[:B]
    """
    B = x.shape[0]
    # Batch tile: multiple of 16 (bf16 sublane packing); cap at block_rows.
    TM = min(block_rows, _round_up(max(B, 1), 16))
    if B >= 32:
        # Guarantee >= 2 grid steps so ("parallel",) actually splits the batch
        # across v7x's 2 TensorCores.
        TM = min(TM, _round_up((B + 1) // 2, 16))
    Bp = _round_up(B, TM)

    xp = x if Bp == B else jnp.pad(x, ((0, Bp - B), (0, 0)))

    w1, b1, w2, b2, w3, b3, w4, b4 = prepared_params

    def resident(shape):
        # Constant index_map -> fetched once, stays resident in VMEM across grid steps.
        return pl.BlockSpec(shape, lambda i: (0, 0))

    enc_p, dec_p = pl.pallas_call(
        autoencoder_kernel,
        grid=(Bp // TM,),
        in_specs=[
            pl.BlockSpec((TM, IN_DIM), lambda i: (i, 0)),        # x tile (pipelined, f32)
            resident((IN_DIM, HID_PAD)),  resident((1, HID_PAD)),
            resident((HID_PAD, LAT_PAD)), resident((1, LAT_PAD)),
            resident((LAT_PAD, HID_PAD)), resident((1, HID_PAD)),
            resident((HID_PAD, IN_DIM)),  resident((1, IN_DIM)),
        ],
        out_specs=(
            pl.BlockSpec((TM, LAT_PAD), lambda i: (i, 0)),       # enc tile (lane-dense)
            pl.BlockSpec((TM, IN_DIM), lambda i: (i, 0)),        # dec tile (bf16)
        ),
        out_shape=(
            jax.ShapeDtypeStruct((Bp, LAT_PAD), jnp.float32),
            jax.ShapeDtypeStruct((Bp, IN_DIM), dec_dtype),
        ),
        compiler_params=pltpu.CompilerParams(
            dimension_semantics=("parallel",),     # shard batch axis across v7x's 2 TCs
            vmem_limit_bytes=32 * 1024 * 1024,     # TM=512 footprint ~15 MiB; safe everywhere
        ),
    )(xp, w1, b1, w2, b2, w3, b3, w4, b4)

    return enc_p, dec_p


def init_params(key):
    """PyTorch-style uniform(-1/sqrt(fan_in), 1/sqrt(fan_in)) init, deterministic."""
    def linear(key, fan_in, fan_out):
        kw, kb = jax.random.split(key)
        bound = 1.0 / np.sqrt(fan_in)
        # stored as (in, out) so kernel computes x @ W (== x @ W_torch.T)
        w = jax.random.uniform(kw, (fan_in, fan_out), jnp.float32, -bound, bound)
        b = jax.random.uniform(kb, (1, fan_out), jnp.float32, -bound, bound)
        return w, b

    k1, k2, k3, k4 = jax.random.split(key, 4)
    w1, b1 = linear(k1, IN_DIM, HID_DIM)
    w2, b2 = linear(k2, HID_DIM, LAT_DIM)
    w3, b3 = linear(k3, LAT_DIM, HID_DIM)
    w4, b4 = linear(k4, HID_DIM, IN_DIM)
    return dict(w1=w1, b1=b1, w2=w2, b2=b2, w3=w3, b3=b3, w4=w4, b4=b4)


def reference_forward_f32(x, p):
    h1 = jnp.tanh(x @ p["w1"] + p["b1"])
    enc = h1 @ p["w2"] + p["b2"]
    h2 = jnp.tanh(enc @ p["w3"] + p["b3"])
    dec = jax.nn.sigmoid(h2 @ p["w4"] + p["b4"])
    return enc, dec


def reference_forward_bf16(x, p, compute_dtype=jnp.bfloat16):
    """Reference with the same bf16-input / f32-accumulation recipe as the kernel."""
    cd = compute_dtype
    h1 = jnp.tanh(jnp.dot(x.astype(cd), p["w1"].astype(cd),
                          preferred_element_type=jnp.float32) + p["b1"])
    enc = jnp.dot(h1.astype(cd), p["w2"].astype(cd),
                  preferred_element_type=jnp.float32) + p["b2"]
    h2 = jnp.tanh(jnp.dot(enc.astype(cd), p["w3"].astype(cd),
                          preferred_element_type=jnp.float32) + p["b3"])
    dec = jax.nn.sigmoid(jnp.dot(h2.astype(cd), p["w4"].astype(cd),
                                 preferred_element_type=jnp.float32) + p["b4"])
    return enc, dec


if __name__ == "__main__":
    key = jax.random.PRNGKey(0)
    k_x, k_p = jax.random.split(key)
    B = 8
    x = jax.random.uniform(k_x, (B, IN_DIM), jnp.float32)   # image-like in [0, 1)
    params = init_params(k_p)
    prepared = jax.block_until_ready(prepare_params(params))  # pad/cast ONCE, outside forward

    enc_p, dec_p = jax.block_until_ready(autoencoder_forward(x, prepared))

    assert enc_p.shape[1] == LAT_PAD and dec_p.shape[1] == IN_DIM

    # Host-side slice to logical shapes (no extra device HBM pass).
    enc = np.asarray(enc_p)[:B, :LAT_DIM]
    dec = np.asarray(dec_p)[:B].astype(np.float32)
    assert enc.shape == (B, LAT_DIM) and dec.shape == (B, IN_DIM)

    # Check against a reference using the same bf16/f32-accum arithmetic (tight;
    # dec tolerance widened slightly for the bf16 output store), and against the
    # pure-f32 reference (loose, bf16 rounding noise).
    enc_bf, dec_bf = reference_forward_bf16(x, params)
    np.testing.assert_allclose(enc, np.asarray(enc_bf), rtol=3e-3, atol=3e-3)
    np.testing.assert_allclose(dec, np.asarray(dec_bf), rtol=1e-2, atol=1e-2)

    enc_f32, dec_f32 = reference_forward_f32(x, params)
    np.testing.assert_allclose(enc, np.asarray(enc_f32), rtol=5e-2, atol=5e-2)
    np.testing.assert_allclose(dec, np.asarray(dec_f32), rtol=5e-2, atol=5e-2)

    print("KERNEL_OK")
</pallas_src>

<mosaic_0001>
module attributes {stable_mosaic.version = 11 : i64} {
  func.func @autoencoder_kernel(%arg0: i32, %arg1: memref<16x1024xf32, #tpu.memory_space<vmem>>, %arg2: memref<1024x384xbf16, #tpu.memory_space<vmem>>, %arg3: memref<1x384xf32, #tpu.memory_space<vmem>>, %arg4: memref<384x128xbf16, #tpu.memory_space<vmem>>, %arg5: memref<1x128xf32, #tpu.memory_space<vmem>>, %arg6: memref<128x384xbf16, #tpu.memory_space<vmem>>, %arg7: memref<1x384xf32, #tpu.memory_space<vmem>>, %arg8: memref<384x1024xbf16, #tpu.memory_space<vmem>>, %arg9: memref<1x1024xf32, #tpu.memory_space<vmem>>, %arg10: memref<16x128xf32, #tpu.memory_space<vmem>>, %arg11: memref<16x1024xbf16, #tpu.memory_space<vmem>>) attributes {dimension_semantics = [#tpu.dimension_semantics<parallel>], iteration_bounds = array<i64: 1>, scalar_prefetch = 0 : i64, scratch_operands = 0 : i64, tpu.core_type = #tpu.core_type<tc>, window_params = [{transform_indices = @transform_0, window_bounds = array<i64: 16, 1024>}, {pipeline_mode = #tpu.pipeline_mode<synchronous>, transform_indices = @transform_1, window_bounds = array<i64: 1024, 384>}, {pipeline_mode = #tpu.pipeline_mode<synchronous>, transform_indices = @transform_2, window_bounds = array<i64: 1, 384>}, {pipeline_mode = #tpu.pipeline_mode<synchronous>, transform_indices = @transform_3, window_bounds = array<i64: 384, 128>}, {pipeline_mode = #tpu.pipeline_mode<synchronous>, transform_indices = @transform_4, window_bounds = array<i64: 1, 128>}, {pipeline_mode = #tpu.pipeline_mode<synchronous>, transform_indices = @transform_5, window_bounds = array<i64: 128, 384>}, {pipeline_mode = #tpu.pipeline_mode<synchronous>, transform_indices = @transform_6, window_bounds = array<i64: 1, 384>}, {pipeline_mode = #tpu.pipeline_mode<synchronous>, transform_indices = @transform_7, window_bounds = array<i64: 384, 1024>}, {pipeline_mode = #tpu.pipeline_mode<synchronous>, transform_indices = @transform_8, window_bounds = array<i64: 1, 1024>}, {transform_indices = @transform_9, window_bounds = array<i64: 16, 128>}, {transform_indices = @transform_10, window_bounds = array<i64: 16, 1024>}]} {
    %c0 = arith.constant 0 : index
    %c0_0 = arith.constant 0 : index
    %0 = vector.load %arg1[%c0, %c0_0] : memref<16x1024xf32, #tpu.memory_space<vmem>>, vector<16x1024xf32>
    %1 = arith.truncf %0 : vector<16x1024xf32> to vector<16x1024xbf16>
    %c0_1 = arith.constant 0 : index
    %c0_2 = arith.constant 0 : index
    %2 = vector.load %arg2[%c0_1, %c0_2] : memref<1024x384xbf16, #tpu.memory_space<vmem>>, vector<1024x384xbf16>
    %cst = arith.constant dense<0.000000e+00> : vector<16x384xf32>
    %3 = tpu.matmul %1, %2, %cst {dimension_numbers = #tpu.dot_dimension_numbers<[1], [0], [0], [1], [0, 0, 1, 1], [], []>} : vector<16x1024xbf16>, vector<1024x384xbf16>, vector<16x384xf32> -> vector<16x384xf32>
    %c0_3 = arith.constant 0 : index
    %c0_4 = arith.constant 0 : index
    %4 = vector.load %arg3[%c0_3, %c0_4] : memref<1x384xf32, #tpu.memory_space<vmem>>, vector<1x384xf32>
    %5 = vector.broadcast %4 : vector<1x384xf32> to vector<16x384xf32>
    %6 = arith.addf %3, %5 : vector<16x384xf32>
    %7 = math.tanh %6 : vector<16x384xf32>
    %8 = arith.truncf %7 : vector<16x384xf32> to vector<16x384xbf16>
    %c0_5 = arith.constant 0 : index
    %c0_6 = arith.constant 0 : index
    %9 = vector.load %arg4[%c0_5, %c0_6] : memref<384x128xbf16, #tpu.memory_space<vmem>>, vector<384x128xbf16>
    %cst_7 = arith.constant dense<0.000000e+00> : vector<16x128xf32>
    %10 = tpu.matmul %8, %9, %cst_7 {dimension_numbers = #tpu.dot_dimension_numbers<[1], [0], [0], [1], [0, 0, 1, 1], [], []>} : vector<16x384xbf16>, vector<384x128xbf16>, vector<16x128xf32> -> vector<16x128xf32>
    %c0_8 = arith.constant 0 : index
    %c0_9 = arith.constant 0 : index
    %11 = vector.load %arg5[%c0_8, %c0_9] : memref<1x128xf32, #tpu.memory_space<vmem>>, vector<1x128xf32>
    %12 = vector.broadcast %11 : vector<1x128xf32> to vector<16x128xf32>
    %13 = arith.addf %10, %12 : vector<16x128xf32>
    %c0_10 = arith.constant 0 : index
    %c0_11 = arith.constant 0 : index
    %14 = vector.load %arg10[%c0_10, %c0_11] : memref<16x128xf32, #tpu.memory_space<vmem>>, vector<16x128xf32>
    tpu.vector_store %arg10[%c0_10, %c0_11], %13 {strides = array<i32>} : memref<16x128xf32, #tpu.memory_space<vmem>>, vector<16x128xf32>,
    %15 = arith.truncf %13 : vector<16x128xf32> to vector<16x128xbf16>
    %c0_12 = arith.constant 0 : index
    %c0_13 = arith.constant 0 : index
    %16 = vector.load %arg6[%c0_12, %c0_13] : memref<128x384xbf16, #tpu.memory_space<vmem>>, vector<128x384xbf16>
    %cst_14 = arith.constant dense<0.000000e+00> : vector<16x384xf32>
    %17 = tpu.matmul %15, %16, %cst_14 {dimension_numbers = #tpu.dot_dimension_numbers<[1], [0], [0], [1], [0, 0, 1, 1], [], []>} : vector<16x128xbf16>, vector<128x384xbf16>, vector<16x384xf32> -> vector<16x384xf32>
    %c0_15 = arith.constant 0 : index
    %c0_16 = arith.constant 0 : index
    %18 = vector.load %arg7[%c0_15, %c0_16] : memref<1x384xf32, #tpu.memory_space<vmem>>, vector<1x384xf32>
    %19 = vector.broadcast %18 : vector<1x384xf32> to vector<16x384xf32>
    %20 = arith.addf %17, %19 : vector<16x384xf32>
    %21 = math.tanh %20 : vector<16x384xf32>
    %22 = arith.truncf %21 : vector<16x384xf32> to vector<16x384xbf16>
    %c0_17 = arith.constant 0 : index
    %c0_18 = arith.constant 0 : index
    %23 = vector.load %arg8[%c0_17, %c0_18] : memref<384x1024xbf16, #tpu.memory_space<vmem>>, vector<384x1024xbf16>
    %cst_19 = arith.constant dense<0.000000e+00> : vector<16x1024xf32>
    %24 = tpu.matmul %22, %23, %cst_19 {dimension_numbers = #tpu.dot_dimension_numbers<[1], [0], [0], [1], [0, 0, 1, 1], [], []>} : vector<16x384xbf16>, vector<384x1024xbf16>, vector<16x1024xf32> -> vector<16x1024xf32>
    %c0_20 = arith.constant 0 : index
    %c0_21 = arith.constant 0 : index
    %25 = vector.load %arg9[%c0_20, %c0_21] : memref<1x1024xf32, #tpu.memory_space<vmem>>, vector<1x1024xf32>
    %26 = vector.broadcast %25 : vector<1x1024xf32> to vector<16x1024xf32>
    %27 = arith.addf %24, %26 : vector<16x1024xf32>
    %28 = arith.negf %27 : vector<16x1024xf32>
    %29 = math.exp %28 : vector<16x1024xf32>
    %cst_22 = arith.constant 1.000000e+00 : f32
    %30 = vector.broadcast %cst_22 : f32 to vector<16x1024xf32>
    %31 = arith.addf %30, %29 : vector<16x1024xf32>
    %32 = arith.divf %30, %31 : vector<16x1024xf32>
    %33 = arith.truncf %32 : vector<16x1024xf32> to vector<16x1024xbf16>
    %c0_23 = arith.constant 0 : index
    %c0_24 = arith.constant 0 : index
    %34 = vector.load %arg11[%c0_23, %c0_24] : memref<16x1024xbf16, #tpu.memory_space<vmem>>, vector<16x1024xbf16>
    tpu.vector_store %arg11[%c0_23, %c0_24], %33 {strides = array<i32>} : memref<16x1024xbf16, #tpu.memory_space<vmem>>, vector<16x1024xbf16>,
    return
  }
  func.func @transform_0(%arg0: i32) -> (i32, i32) {
    %c0_i32 = arith.constant 0 : i32
    %c0_i32_0 = arith.constant 0 : i32
    return %arg0, %c0_i32 : i32, i32
  }
  func.func @transform_1(%arg0: i32) -> (i32, i32) {
    %c0_i32 = arith.constant 0 : i32
    %c0_i32_0 = arith.constant 0 : i32
    %c0_i32_1 = arith.constant 0 : i32
    return %c0_i32, %c0_i32_0 : i32, i32
  }
  func.func @transform_2(%arg0: i32) -> (i32, i32) {
    %c0_i32 = arith.constant 0 : i32
    %c0_i32_0 = arith.constant 0 : i32
    %c0_i32_1 = arith.constant 0 : i32
    return %c0_i32, %c0_i32_0 : i32, i32
  }
  func.func @transform_3(%arg0: i32) -> (i32, i32) {
    %c0_i32 = arith.constant 0 : i32
    %c0_i32_0 = arith.constant 0 : i32
    %c0_i32_1 = arith.constant 0 : i32
    return %c0_i32, %c0_i32_0 : i32, i32
  }
  func.func @transform_4(%arg0: i32) -> (i32, i32) {
    %c0_i32 = arith.constant 0 : i32
    %c0_i32_0 = arith.constant 0 : i32
    %c0_i32_1 = arith.constant 0 : i32
    return %c0_i32, %c0_i32_0 : i32, i32
  }
  func.func @transform_5(%arg0: i32) -> (i32, i32) {
    %c0_i32 = arith.constant 0 : i32
    %c0_i32_0 = arith.constant 0 : i32
    %c0_i32_1 = arith.constant 0 : i32
    return %c0_i32, %c0_i32_0 : i32, i32
  }
  func.func @transform_6(%arg0: i32) -> (i32, i32) {
    %c0_i32 = arith.constant 0 : i32
    %c0_i32_0 = arith.constant 0 : i32
    %c0_i32_1 = arith.constant 0 : i32
    return %c0_i32, %c0_i32_0 : i32, i32
  }
  func.func @transform_7(%arg0: i32) -> (i32, i32) {
    %c0_i32 = arith.constant 0 : i32
    %c0_i32_0 = arith.constant 0 : i32
    %c0_i32_1 = arith.constant 0 : i32
    return %c0_i32, %c0_i32_0 : i32, i32
  }
  func.func @transform_8(%arg0: i32) -> (i32, i32) {
    %c0_i32 = arith.constant 0 : i32
    %c0_i32_0 = arith.constant 0 : i32
    %c0_i32_1 = arith.constant 0 : i32
    return %c0_i32, %c0_i32_0 : i32, i32
  }
  func.func @transform_9(%arg0: i32) -> (i32, i32) {
    %c0_i32 = arith.constant 0 : i32
    %c0_i32_0 = arith.constant 0 : i32
    return %arg0, %c0_i32 : i32, i32
  }
  func.func @transform_10(%arg0: i32) -> (i32, i32) {
    %c0_i32 = arith.constant 0 : i32
    %c0_i32_0 = arith.constant 0 : i32
    return %arg0, %c0_i32 : i32, i32
  }
}

</mosaic_0001>

<llo_original>
// kernel: autoencoder_forward.1
$region0: #{autoencoder_forward.1}
  #allocation0 [shape = 'u32[]', space=smem, size = 0x4, offset = 0x4, fixed_abs, tag = 'smem constant byte address 0x4 - core index']
  #allocation1 [shape = 'u32[72,128]{1,0:T(1,128)}', space=vmem, size = 0x9000, scoped, tag = 'internal scratch']
  %s0 = inlined_call_operand.vmem [shape: f32[16,1024], index: 0, kind: input, shape index: {}]
  %s1 = inlined_call_operand.hbm [shape: bf16[1024,384], index: 1, kind: input, shape index: {}]
  %s2 = inlined_call_operand.vmem [shape: f32[1,384], index: 2, kind: input, shape index: {}]
  %s3 = inlined_call_operand.vmem [shape: bf16[384,128], index: 3, kind: input, shape index: {}]
  %s4 = inlined_call_operand.hbm [shape: f32[1,128], index: 4, kind: input, shape index: {}]
  %s5 = inlined_call_operand.hbm [shape: bf16[128,384], index: 5, kind: input, shape index: {}]
  %s6 = inlined_call_operand.vmem [shape: f32[1,384], index: 6, kind: input, shape index: {}]
  %s7 = inlined_call_operand.hbm [shape: bf16[384,1024], index: 7, kind: input, shape index: {}]
  %s8 = inlined_call_operand.hbm [shape: f32[1,1024], index: 8, kind: input, shape index: {}]
  %s9 = inlined_call_operand.hbm [shape: f32[16,128], index: 9, kind: output, shape index: {0}]
  %s10 = inlined_call_operand.hbm [shape: bf16[16,1024], index: 10, kind: output, shape index: {1}]
  %11 = xla_tuple %s9, %s10
  %s12 = sld [smem:[#allocation0]]
  $region74: #{autoencoder_forward.1} parent=0
    _
  %s14 = ssub.s32 1, %s12
  %s15 = scalar_select 0, %s14, %s12
  $region1: #{autoencoder_forward.1} parent=0
    #allocation2 [shape = 'u8[786432]{0}', space=vmem, size = 0xc0000, scoped, tag = 'input window, operand 1, single buffered']
    #allocation3 [shape = 's32[1]{0}', space=sflag, size = 0x4, scoped, tag = 'scoped memory for autoencoder_forward.1']
    #allocation4 [shape = 's32[1]{0}', space=sflag, size = 0x4, scoped, tag = 'scoped memory for autoencoder_forward.1']
    #allocation5 [shape = 'u8[512]{0}', space=vmem, size = 0x400, scoped, tag = 'input window, operand 4, single buffered']
    #allocation6 [shape = 's32[1]{0}', space=sflag, size = 0x4, scoped, tag = 'scoped memory for autoencoder_forward.1']
    #allocation7 [shape = 'u8[98304]{0}', space=vmem, size = 0x18000, scoped, tag = 'input window, operand 5, single buffered']
    #allocation8 [shape = 'u8[786432]{0}', space=vmem, size = 0xc0000, scoped, tag = 'input window, operand 7, single buffered']
    #allocation9 [shape = 's32[1]{0}', space=sflag, size = 0x4, scoped, tag = 'scoped memory for autoencoder_forward.1']
    #allocation10 [shape = 'u8[4096]{0}', space=vmem, size = 0x1000, scoped, tag = 'input window, operand 8, single buffered']
    #allocation11 [shape = 'u8[8192]{0}', space=vmem, size = 0x2000, scoped, tag = 'output window, operand 0, single buffered']
    #allocation12 [shape = 'u8[32768]{0}', space=vmem, size = 0x8000, scoped, tag = 'output window, operand 1, single buffered']
    #allocation13 [shape = 's32[1]{0}', space=sflag, size = 0x4, scoped, tag = 'scoped memory for autoencoder_forward.1']
    %16 = vsyncpa [#allocation3], 0
    %17 = vsyncpa [#allocation6], 0
    %18 = vsyncpa [#allocation9], 0
    %19 = vsyncpa [#allocation4], 0
    %20 = vsyncpa [#allocation13], 0
    // Predicated region
    $region2: #{autoencoder_forward.1} parent=1 // pred_check
      _
    $region3: #{autoencoder_forward.1} parent=1 // pred_check_branch
      %22 = sbr.rel (0) target = $region5
    $region4: #{autoencoder_forward.1} parent=1 // pred_region
      _
    $region5: #{autoencoder_forward.1} parent=1 // pred_fallthru
      _
    // Predicated region
    $region6: #{autoencoder_forward.1} parent=1 // pred_check
      _
    $region7: #{autoencoder_forward.1} parent=1 // pred_check_branch
      %24 = sbr.rel (0) target = $region9
    $region8: #{autoencoder_forward.1} parent=1 // pred_region
      %26 = vsyncadd [#allocation3], 0
      %s27 = sshll.u32 %s1, 4
      %s28 = int_to_ptr.hbm [resolvable:$true] %s27
      %s29 = sshll.u32 [#allocation2], 4
      %s30 = int_to_ptr.vmem [resolvable:$true] %s29
      %35 = dma.hbm_to_vmem [thread:$0]  %s28, 24576, %s30, [#allocation3], 192, 192, 12
    $region9: #{autoencoder_forward.1} parent=1 // pred_fallthru
      _
    // Predicated region
    $region10: #{autoencoder_forward.1} parent=1 // pred_check
      _
    $region11: #{autoencoder_forward.1} parent=1 // pred_check_branch
      %37 = sbr.rel (0) target = $region13
    $region12: #{autoencoder_forward.1} parent=1 // pred_region
      _
    $region13: #{autoencoder_forward.1} parent=1 // pred_fallthru
      _
    // Predicated region
    $region14: #{autoencoder_forward.1} parent=1 // pred_check
      _
    $region15: #{autoencoder_forward.1} parent=1 // pred_check_branch
      %39 = sbr.rel (0) target = $region17
    $region16: #{autoencoder_forward.1} parent=1 // pred_region
      _
    $region17: #{autoencoder_forward.1} parent=1 // pred_fallthru
      _
    // Predicated region
    $region18: #{autoencoder_forward.1} parent=1 // pred_check
      _
    $region19: #{autoencoder_forward.1} parent=1 // pred_check_branch
      %41 = sbr.rel (0) target = $region21
    $region20: #{autoencoder_forward.1} parent=1 // pred_region
      %43 = vsyncadd [#allocation6], 0
      %s45 = sshll.u32 %s4, 4
      %s46 = int_to_ptr.hbm [resolvable:$true] %s45
      %s47 = sshll.u32 [#allocation5], 4
      %s48 = int_to_ptr.vmem [resolvable:$true] %s47
      %50 = dma.hbm_to_vmem [thread:$0]  %s46, 16, %s48, [#allocation6]
    $region21: #{autoencoder_forward.1} parent=1 // pred_fallthru
      _
    // Predicated region
    $region22: #{autoencoder_forward.1} parent=1 // pred_check
      _
    $region23: #{autoencoder_forward.1} parent=1 // pred_check_branch
      %52 = sbr.rel (0) target = $region25
    $region24: #{autoencoder_forward.1} parent=1 // pred_region
      %54 = vsyncadd [#allocation6], 0
      %s55 = sshll.u32 %s5, 4
      %s56 = int_to_ptr.hbm [resolvable:$true] %s55
      %s57 = sshll.u32 [#allocation7], 4
      %s58 = int_to_ptr.vmem [resolvable:$true] %s57
      %63 = dma.hbm_to_vmem [thread:$0]  %s56, 3072, %s58, [#allocation6], 192, 192, 12
    $region25: #{autoencoder_forward.1} parent=1 // pred_fallthru
      _
    // Predicated region
    $region26: #{autoencoder_forward.1} parent=1 // pred_check
      _
    $region27: #{autoencoder_forward.1} parent=1 // pred_check_branch
      %65 = sbr.rel (0) target = $region29
    $region28: #{autoencoder_forward.1} parent=1 // pred_region
      _
    $region29: #{autoencoder_forward.1} parent=1 // pred_fallthru
      _
    // Predicated region
    $region30: #{autoencoder_forward.1} parent=1 // pred_check
      _
    $region31: #{autoencoder_forward.1} parent=1 // pred_check_branch
      %67 = sbr.rel (0) target = $region33
    $region32: #{autoencoder_forward.1} parent=1 // pred_region
      %69 = vsyncadd [#allocation9], 0
      %s70 = sshll.u32 %s7, 4
      %s71 = int_to_ptr.hbm [resolvable:$true] %s70
      %s72 = sshll.u32 [#allocation8], 4
      %s73 = int_to_ptr.vmem [resolvable:$true] %s72
      %78 = dma.hbm_to_vmem [thread:$0]  %s71, 24576, %s73, [#allocation9], 512, 512, 32
    $region33: #{autoencoder_forward.1} parent=1 // pred_fallthru
      _
    // Predicated region
    $region34: #{autoencoder_forward.1} parent=1 // pred_check
      _
    $region35: #{autoencoder_forward.1} parent=1 // pred_check_branch
      %80 = sbr.rel (0) target = $region37
    $region36: #{autoencoder_forward.1} parent=1 // pred_region
      %82 = vsyncadd [#allocation9], 0
      %s84 = sshll.u32 %s8, 4
      %s85 = int_to_ptr.hbm [resolvable:$true] %s84
      %s86 = sshll.u32 [#allocation10], 4
      %s87 = int_to_ptr.vmem [resolvable:$true] %s86
      %89 = dma.hbm_to_vmem [thread:$0]  %s85, 128, %s87, [#allocation9]
    $region37: #{autoencoder_forward.1} parent=1 // pred_fallthru
      _
    // Predicated region
    $region38: #{autoencoder_forward.1} parent=1 // pred_check
      _
    $region39: #{autoencoder_forward.1} parent=1 // pred_check_branch
      %91 = sbr.rel (0) target = $region41
    $region40: #{autoencoder_forward.1} parent=1 // pred_region
      %93 = dma.done [#allocation3], 24576
    $region41: #{autoencoder_forward.1} parent=1 // pred_fallthru
      _
    // Predicated region
    $region42: #{autoencoder_forward.1} parent=1 // pred_check
      _
    $region43: #{autoencoder_forward.1} parent=1 // pred_check_branch
      %95 = sbr.rel (0) target = $region45
    $region44: #{autoencoder_forward.1} parent=1 // pred_region
      %97 = dma.done [#allocation6], 16
    $region45: #{autoencoder_forward.1} parent=1 // pred_fallthru
      _
    // Predicated region
    $region46: #{autoencoder_forward.1} parent=1 // pred_check
      _
    $region47: #{autoencoder_forward.1} parent=1 // pred_check_branch
      %99 = sbr.rel (0) target = $region49
    $region48: #{autoencoder_forward.1} parent=1 // pred_region
      %101 = dma.done [#allocation6], 3072
    $region49: #{autoencoder_forward.1} parent=1 // pred_fallthru
      _
    // Predicated region
    $region50: #{autoencoder_forward.1} parent=1 // pred_check
      _
    $region51: #{autoencoder_forward.1} parent=1 // pred_check_branch
      %103 = sbr.rel (0) target = $region53
    $region52: #{autoencoder_forward.1} parent=1 // pred_region
      %105 = dma.done [#allocation9], 24576
    $region53: #{autoencoder_forward.1} parent=1 // pred_fallthru
      _
    // Predicated region
    $region54: #{autoencoder_forward.1} parent=1 // pred_check
      _
    $region55: #{autoencoder_forward.1} parent=1 // pred_check_branch
      %107 = sbr.rel (0) target = $region57
    $region56: #{autoencoder_forward.1} parent=1 // pred_region
      %109 = dma.done [#allocation9], 128
    $region57: #{autoencoder_forward.1} parent=1 // pred_fallthru
      _
    %v110 = vld [vmem:[%s0] sm:$0xff]
    %v111 = vld [vmem:[%s0 + $0x8] sm:$0xff]
    %v112 = vld [vmem:[%s0 + $0x10] sm:$0xff]
    %v113 = vld [vmem:[%s0 + $0x18] sm:$0xff]
    %v114 = vld [vmem:[%s0 + $0x20] sm:$0xff]
    %v115 = vld [vmem:[%s0 + $0x28] sm:$0xff]
    %v116 = vld [vmem:[%s0 + $0x30] sm:$0xff]
    %v117 = vld [vmem:[%s0 + $0x38] sm:$0xff]
    %v118 = vld [vmem:[%s0 + $0x40] sm:$0xff]
    %v119 = vld [vmem:[%s0 + $0x48] sm:$0xff]
    %v120 = vld [vmem:[%s0 + $0x50] sm:$0xff]
    %v121 = vld [vmem:[%s0 + $0x58] sm:$0xff]
    %v122 = vld [vmem:[%s0 + $0x60] sm:$0xff]
    %v123 = vld [vmem:[%s0 + $0x68] sm:$0xff]
    %v124 = vld [vmem:[%s0 + $0x70] sm:$0xff]
    %v125 = vld [vmem:[%s0 + $0x78] sm:$0xff]
    %v126 = vpack.c.bf16 %v118, %v110
    %v127 = vpack.c.bf16 %v119, %v111
    %v128 = vpack.c.bf16 %v120, %v112
    %v129 = vpack.c.bf16 %v121, %v113
    %v130 = vpack.c.bf16 %v122, %v114
    %v131 = vpack.c.bf16 %v123, %v115
    %v132 = vpack.c.bf16 %v124, %v116
    %v133 = vpack.c.bf16 %v125, %v117
    %v134 = vld [vmem:[#allocation2] sm:$0xff]
    %v135 = vld [vmem:[#allocation2 + $0x8] sm:$0xf]
    %v136 = vld [vmem:[#allocation2 + $0xc] sm:$0xff]
    %v137 = vld [vmem:[#allocation2 + $0x14] sm:$0xf]
    %v138 = vld [vmem:[#allocation2 + $0x18] sm:$0xff]
    %v139 = vld [vmem:[#allocation2 + $0x20] sm:$0xf]
    %v140 = vld [vmem:[#allocation2 + $0x24] sm:$0xff]
    %v141 = vld [vmem:[#allocation2 + $0x2c] sm:$0xf]
    %v142 = vld [vmem:[#allocation2 + $0x30] sm:$0xff]
    %v143 = vld [vmem:[#allocation2 + $0x38] sm:$0xf]
    %v144 = vld [vmem:[#allocation2 + $0x3c] sm:$0xff]
    %v145 = vld [vmem:[#allocation2 + $0x44] sm:$0xf]
    %v146 = vld [vmem:[#allocation2 + $0x48] sm:$0xff]
    %v147 = vld [vmem:[#allocation2 + $0x50] sm:$0xf]
    %v148 = vld [vmem:[#allocation2 + $0x54] sm:$0xff]
    %v149 = vld [vmem:[#allocation2 + $0x5c] sm:$0xf]
    %v150 = vld [vmem:[#allocation2 + $0x60] sm:$0xff]
    %v151 = vld [vmem:[#allocation2 + $0x68] sm:$0xf]
    %v152 = vld [vmem:[#allocation2 + $0x6c] sm:$0xff]
    %v153 = vld [vmem:[#allocation2 + $0x74] sm:$0xf]
    %v154 = vld [vmem:[#allocation2 + $0x78] sm:$0xff]
    %v155 = vld [vmem:[#allocation2 + $0x80] sm:$0xf]
    %v156 = vld [vmem:[#allocation2 + $0x84] sm:$0xff]
    %v157 = vld [vmem:[#allocation2 + $0x8c] sm:$0xf]
    %v158 = vld [vmem:[#allocation2 + $0x90] sm:$0xff]
    %v159 = vld [vmem:[#allocation2 + $0x98] sm:$0xf]
    %v160 = vld [vmem:[#allocation2 + $0x9c] sm:$0xff]
    %v161 = vld [vmem:[#allocation2 + $0xa4] sm:$0xf]
    %v162 = vld [vmem:[#allocation2 + $0xa8] sm:$0xff]
    %v163 = vld [vmem:[#allocation2 + $0xb0] sm:$0xf]
    %v164 = vld [vmem:[#allocation2 + $0xb4] sm:$0xff]
    %v165 = vld [vmem:[#allocation2 + $0xbc] sm:$0xf]
    %v166 = vld [vmem:[#allocation2 + $0xc0] sm:$0xff]
    %v167 = vld [vmem:[#allocation2 + $0xc8] sm:$0xf]
    %v168 = vld [vmem:[#allocation2 + $0xcc] sm:$0xff]
    %v169 = vld [vmem:[#allocation2 + $0xd4] sm:$0xf]
    %v170 = vld [vmem:[#allocation2 + $0xd8] sm:$0xff]
    %v171 = vld [vmem:[#allocation2 + $0xe0] sm:$0xf]
    %v172 = vld [vmem:[#allocation2 + $0xe4] sm:$0xff]
    %v173 = vld [vmem:[#allocation2 + $0xec] sm:$0xf]
    %v174 = vld [vmem:[#allocation2 + $0xf0] sm:$0xff]
    %v175 = vld [vmem:[#allocation2 + $0xf8] sm:$0xf]
    %v176 = vld [vmem:[#allocation2 + $0xfc] sm:$0xff]
    %v177 = vld [vmem:[#allocation2 + $0x104] sm:$0xf]
    %v178 = vld [vmem:[#allocation2 + $0x108] sm:$0xff]
    %v179 = vld [vmem:[#allocation2 + $0x110] sm:$0xf]
    %v180 = vld [vmem:[#allocation2 + $0x114] sm:$0xff]
    %v181 = vld [vmem:[#allocation2 + $0x11c] sm:$0xf]
    %v182 = vld [vmem:[#allocation2 + $0x120] sm:$0xff]
    %v183 = vld [vmem:[#allocation2 + $0x128] sm:$0xf]
    %v184 = vld [vmem:[#allocation2 + $0x12c] sm:$0xff]
    %v185 = vld [vmem:[#allocation2 + $0x134] sm:$0xf]
    %v186 = vld [vmem:[#allocation2 + $0x138] sm:$0xff]
    %v187 = vld [vmem:[#allocation2 + $0x140] sm:$0xf]
    %v188 = vld [vmem:[#allocation2 + $0x144] sm:$0xff]
    %v189 = vld [vmem:[#allocation2 + $0x14c] sm:$0xf]
    %v190 = vld [vmem:[#allocation2 + $0x150] sm:$0xff]
    %v191 = vld [vmem:[#allocation2 + $0x158] sm:$0xf]
    %v192 = vld [vmem:[#allocation2 + $0x15c] sm:$0xff]
    %v193 = vld [vmem:[#allocation2 + $0x164] sm:$0xf]
    %v194 = vld [vmem:[#allocation2 + $0x168] sm:$0xff]
    %v195 = vld [vmem:[#allocation2 + $0x170] sm:$0xf]
    %v196 = vld [vmem:[#allocation2 + $0x174] sm:$0xff]
    %v197 = vld [vmem:[#allocation2 + $0x17c] sm:$0xf]
    %v198 = vld [vmem:[#allocation2 + $0x180] sm:$0xff]
    %v199 = vld [vmem:[#allocation2 + $0x188] sm:$0xf]
    %v200 = vld [vmem:[#allocation2 + $0x18c] sm:$0xff]
    %v201 = vld [vmem:[#allocation2 + $0x194] sm:$0xf]
    %v202 = vld [vmem:[#allocation2 + $0x198] sm:$0xff]
    %v203 = vld [vmem:[#allocation2 + $0x1a0] sm:$0xf]
    %v204 = vld [vmem:[#allocation2 + $0x1a4] sm:$0xff]
    %v205 = vld [vmem:[#allocation2 + $0x1ac] sm:$0xf]
    %v206 = vld [vmem:[#allocation2 + $0x1b0] sm:$0xff]
    %v207 = vld [vmem:[#allocation2 + $0x1b8] sm:$0xf]
    %v208 = vld [vmem:[#allocation2 + $0x1bc] sm:$0xff]
    %v209 = vld [vmem:[#allocation2 + $0x1c4] sm:$0xf]
    %v210 = vld [vmem:[#allocation2 + $0x1c8] sm:$0xff]
    %v211 = vld [vmem:[#allocation2 + $0x1d0] sm:$0xf]
    %v212 = vld [vmem:[#allocation2 + $0x1d4] sm:$0xff]
    %v213 = vld [vmem:[#allocation2 + $0x1dc] sm:$0xf]
    %v214 = vld [vmem:[#allocation2 + $0x1e0] sm:$0xff]
    %v215 = vld [vmem:[#allocation2 + $0x1e8] sm:$0xf]
    %v216 = vld [vmem:[#allocation2 + $0x1ec] sm:$0xff]
    %v217 = vld [vmem:[#allocation2 + $0x1f4] sm:$0xf]
    %v218 = vld [vmem:[#allocation2 + $0x1f8] sm:$0xff]
    %v219 = vld [vmem:[#allocation2 + $0x200] sm:$0xf]
    %v220 = vld [vmem:[#allocation2 + $0x204] sm:$0xff]
    %v221 = vld [vmem:[#allocation2 + $0x20c] sm:$0xf]
    %v222 = vld [vmem:[#allocation2 + $0x210] sm:$0xff]
    %v223 = vld [vmem:[#allocation2 + $0x218] sm:$0xf]
    %v224 = vld [vmem:[#allocation2 + $0x21c] sm:$0xff]
    %v225 = vld [vmem:[#allocation2 + $0x224] sm:$0xf]
    %v226 = vld [vmem:[#allocation2 + $0x228] sm:$0xff]
    %v227 = vld [vmem:[#allocation2 + $0x230] sm:$0xf]
    %v228 = vld [vmem:[#allocation2 + $0x234] sm:$0xff]
    %v229 = vld [vmem:[#allocation2 + $0x23c] sm:$0xf]
    %v230 = vld [vmem:[#allocation2 + $0x240] sm:$0xff]
    %v231 = vld [vmem:[#allocation2 + $0x248] sm:$0xf]
    %v232 = vld [vmem:[#allocation2 + $0x24c] sm:$0xff]
    %v233 = vld [vmem:[#allocation2 + $0x254] sm:$0xf]
    %v234 = vld [vmem:[#allocation2 + $0x258] sm:$0xff]
    %v235 = vld [vmem:[#allocation2 + $0x260] sm:$0xf]
    %v236 = vld [vmem:[#allocation2 + $0x264] sm:$0xff]
    %v237 = vld [vmem:[#allocation2 + $0x26c] sm:$0xf]
    %v238 = vld [vmem:[#allocation2 + $0x270] sm:$0xff]
    %v239 = vld [vmem:[#allocation2 + $0x278] sm:$0xf]
    %v240 = vld [vmem:[#allocation2 + $0x27c] sm:$0xff]
    %v241 = vld [vmem:[#allocation2 + $0x284] sm:$0xf]
    %v242 = vld [vmem:[#allocation2 + $0x288] sm:$0xff]
    %v243 = vld [vmem:[#allocation2 + $0x290] sm:$0xf]
    %v244 = vld [vmem:[#allocation2 + $0x294] sm:$0xff]
    %v245 = vld [vmem:[#allocation2 + $0x29c] sm:$0xf]
    %v246 = vld [vmem:[#allocation2 + $0x2a0] sm:$0xff]
    %v247 = vld [vmem:[#allocation2 + $0x2a8] sm:$0xf]
    %v248 = vld [vmem:[#allocation2 + $0x2ac] sm:$0xff]
    %v249 = vld [vmem:[#allocation2 + $0x2b4] sm:$0xf]
    %v250 = vld [vmem:[#allocation2 + $0x2b8] sm:$0xff]
    %v251 = vld [vmem:[#allocation2 + $0x2c0] sm:$0xf]
    %v252 = vld [vmem:[#allocation2 + $0x2c4] sm:$0xff]
    %v253 = vld [vmem:[#allocation2 + $0x2cc] sm:$0xf]
    %v254 = vld [vmem:[#allocation2 + $0x2d0] sm:$0xff]
    %v255 = vld [vmem:[#allocation2 + $0x2d8] sm:$0xf]
    %v256 = vld [vmem:[#allocation2 + $0x2dc] sm:$0xff]
    %v257 = vld [vmem:[#allocation2 + $0x2e4] sm:$0xf]
    %v258 = vld [vmem:[#allocation2 + $0x2e8] sm:$0xff]
    %v259 = vld [vmem:[#allocation2 + $0x2f0] sm:$0xf]
    %v260 = vld [vmem:[#allocation2 + $0x2f4] sm:$0xff]
    %v261 = vld [vmem:[#allocation2 + $0x2fc] sm:$0xf]
    %v262 = vld [vmem:[#allocation2 + $0x300] sm:$0xff]
    %v263 = vld [vmem:[#allocation2 + $0x308] sm:$0xf]
    %v264 = vld [vmem:[#allocation2 + $0x30c] sm:$0xff]
    %v265 = vld [vmem:[#allocation2 + $0x314] sm:$0xf]
    %v266 = vld [vmem:[#allocation2 + $0x318] sm:$0xff]
    %v267 = vld [vmem:[#allocation2 + $0x320] sm:$0xf]
    %v268 = vld [vmem:[#allocation2 + $0x324] sm:$0xff]
    %v269 = vld [vmem:[#allocation2 + $0x32c] sm:$0xf]
    %v270 = vld [vmem:[#allocation2 + $0x330] sm:$0xff]
    %v271 = vld [vmem:[#allocation2 + $0x338] sm:$0xf]
    %v272 = vld [vmem:[#allocation2 + $0x33c] sm:$0xff]
    %v273 = vld [vmem:[#allocation2 + $0x344] sm:$0xf]
    %v274 = vld [vmem:[#allocation2 + $0x348] sm:$0xff]
    %v275 = vld [vmem:[#allocation2 + $0x350] sm:$0xf]
    %v276 = vld [vmem:[#allocation2 + $0x354] sm:$0xff]
    %v277 = vld [vmem:[#allocation2 + $0x35c] sm:$0xf]
    %v278 = vld [vmem:[#allocation2 + $0x360] sm:$0xff]
    %v279 = vld [vmem:[#allocation2 + $0x368] sm:$0xf]
    %v280 = vld [vmem:[#allocation2 + $0x36c] sm:$0xff]
    %v281 = vld [vmem:[#allocation2 + $0x374] sm:$0xf]
    %v282 = vld [vmem:[#allocation2 + $0x378] sm:$0xff]
    %v283 = vld [vmem:[#allocation2 + $0x380] sm:$0xf]
    %v284 = vld [vmem:[#allocation2 + $0x384] sm:$0xff]
    %v285 = vld [vmem:[#allocation2 + $0x38c] sm:$0xf]
    %v286 = vld [vmem:[#allocation2 + $0x390] sm:$0xff]
    %v287 = vld [vmem:[#allocation2 + $0x398] sm:$0xf]
    %v288 = vld [vmem:[#allocation2 + $0x39c] sm:$0xff]
    %v289 = vld [vmem:[#allocation2 + $0x3a4] sm:$0xf]
    %v290 = vld [vmem:[#allocation2 + $0x3a8] sm:$0xff]
    %v291 = vld [vmem:[#allocation2 + $0x3b0] sm:$0xf]
    %v292 = vld [vmem:[#allocation2 + $0x3b4] sm:$0xff]
    %v293 = vld [vmem:[#allocation2 + $0x3bc] sm:$0xf]
    %v294 = vld [vmem:[#allocation2 + $0x3c0] sm:$0xff]
    %v295 = vld [vmem:[#allocation2 + $0x3c8] sm:$0xf]
    %v296 = vld [vmem:[#allocation2 + $0x3cc] sm:$0xff]
    %v297 = vld [vmem:[#allocation2 + $0x3d4] sm:$0xf]
    %v298 = vld [vmem:[#allocation2 + $0x3d8] sm:$0xff]
    %v299 = vld [vmem:[#allocation2 + $0x3e0] sm:$0xf]
    %v300 = vld [vmem:[#allocation2 + $0x3e4] sm:$0xff]
    %v301 = vld [vmem:[#allocation2 + $0x3ec] sm:$0xf]
    %v302 = vld [vmem:[#allocation2 + $0x3f0] sm:$0xff]
    %v303 = vld [vmem:[#allocation2 + $0x3f8] sm:$0xf]
    %v304 = vld [vmem:[#allocation2 + $0x3fc] sm:$0xff]
    %v305 = vld [vmem:[#allocation2 + $0x404] sm:$0xf]
    %v306 = vld [vmem:[#allocation2 + $0x408] sm:$0xff]
    %v307 = vld [vmem:[#allocation2 + $0x410] sm:$0xf]
    %v308 = vld [vmem:[#allocation2 + $0x414] sm:$0xff]
    %v309 = vld [vmem:[#allocation2 + $0x41c] sm:$0xf]
    %v310 = vld [vmem:[#allocation2 + $0x420] sm:$0xff]
    %v311 = vld [vmem:[#allocation2 + $0x428] sm:$0xf]
    %v312 = vld [vmem:[#allocation2 + $0x42c] sm:$0xff]
    %v313 = vld [vmem:[#allocation2 + $0x434] sm:$0xf]
    %v314 = vld [vmem:[#allocation2 + $0x438] sm:$0xff]
    %v315 = vld [vmem:[#allocation2 + $0x440] sm:$0xf]
    %v316 = vld [vmem:[#allocation2 + $0x444] sm:$0xff]
    %v317 = vld [vmem:[#allocation2 + $0x44c] sm:$0xf]
    %v318 = vld [vmem:[#allocation2 + $0x450] sm:$0xff]
    %v319 = vld [vmem:[#allocation2 + $0x458] sm:$0xf]
    %v320 = vld [vmem:[#allocation2 + $0x45c] sm:$0xff]
    %v321 = vld [vmem:[#allocation2 + $0x464] sm:$0xf]
    %v322 = vld [vmem:[#allocation2 + $0x468] sm:$0xff]
    %v323 = vld [vmem:[#allocation2 + $0x470] sm:$0xf]
    %v324 = vld [vmem:[#allocation2 + $0x474] sm:$0xff]
    %v325 = vld [vmem:[#allocation2 + $0x47c] sm:$0xf]
    %v326 = vld [vmem:[#allocation2 + $0x480] sm:$0xff]
    %v327 = vld [vmem:[#allocation2 + $0x488] sm:$0xf]
    %v328 = vld [vmem:[#allocation2 + $0x48c] sm:$0xff]
    %v329 = vld [vmem:[#allocation2 + $0x494] sm:$0xf]
    %v330 = vld [vmem:[#allocation2 + $0x498] sm:$0xff]
    %v331 = vld [vmem:[#allocation2 + $0x4a0] sm:$0xf]
    %v332 = vld [vmem:[#allocation2 + $0x4a4] sm:$0xff]
    %v333 = vld [vmem:[#allocation2 + $0x4ac] sm:$0xf]
    %v334 = vld [vmem:[#allocation2 + $0x4b0] sm:$0xff]
    %v335 = vld [vmem:[#allocation2 + $0x4b8] sm:$0xf]
    %v336 = vld [vmem:[#allocation2 + $0x4bc] sm:$0xff]
    %v337 = vld [vmem:[#allocation2 + $0x4c4] sm:$0xf]
    %v338 = vld [vmem:[#allocation2 + $0x4c8] sm:$0xff]
    %v339 = vld [vmem:[#allocation2 + $0x4d0] sm:$0xf]
    %v340 = vld [vmem:[#allocation2 + $0x4d4] sm:$0xff]
    %v341 = vld [vmem:[#allocation2 + $0x4dc] sm:$0xf]
    %v342 = vld [vmem:[#allocation2 + $0x4e0] sm:$0xff]
    %v343 = vld [vmem:[#allocation2 + $0x4e8] sm:$0xf]
    %v344 = vld [vmem:[#allocation2 + $0x4ec] sm:$0xff]
    %v345 = vld [vmem:[#allocation2 + $0x4f4] sm:$0xf]
    %v346 = vld [vmem:[#allocation2 + $0x4f8] sm:$0xff]
    %v347 = vld [vmem:[#allocation2 + $0x500] sm:$0xf]
    %v348 = vld [vmem:[#allocation2 + $0x504] sm:$0xff]
    %v349 = vld [vmem:[#allocation2 + $0x50c] sm:$0xf]
    %v350 = vld [vmem:[#allocation2 + $0x510] sm:$0xff]
    %v351 = vld [vmem:[#allocation2 + $0x518] sm:$0xf]
    %v352 = vld [vmem:[#allocation2 + $0x51c] sm:$0xff]
    %v353 = vld [vmem:[#allocation2 + $0x524] sm:$0xf]
    %v354 = vld [vmem:[#allocation2 + $0x528] sm:$0xff]
    %v355 = vld [vmem:[#allocation2 + $0x530] sm:$0xf]
    %v356 = vld [vmem:[#allocation2 + $0x534] sm:$0xff]
    %v357 = vld [vmem:[#allocation2 + $0x53c] sm:$0xf]
    %v358 = vld [vmem:[#allocation2 + $0x540] sm:$0xff]
    %v359 = vld [vmem:[#allocation2 + $0x548] sm:$0xf]
    %v360 = vld [vmem:[#allocation2 + $0x54c] sm:$0xff]
    %v361 = vld [vmem:[#allocation2 + $0x554] sm:$0xf]
    %v362 = vld [vmem:[#allocation2 + $0x558] sm:$0xff]
    %v363 = vld [vmem:[#allocation2 + $0x560] sm:$0xf]
    %v364 = vld [vmem:[#allocation2 + $0x564] sm:$0xff]
    %v365 = vld [vmem:[#allocation2 + $0x56c] sm:$0xf]
    %v366 = vld [vmem:[#allocation2 + $0x570] sm:$0xff]
    %v367 = vld [vmem:[#allocation2 + $0x578] sm:$0xf]
    %v368 = vld [vmem:[#allocation2 + $0x57c] sm:$0xff]
    %v369 = vld [vmem:[#allocation2 + $0x584] sm:$0xf]
    %v370 = vld [vmem:[#allocation2 + $0x588] sm:$0xff]
    %v371 = vld [vmem:[#allocation2 + $0x590] sm:$0xf]
    %v372 = vld [vmem:[#allocation2 + $0x594] sm:$0xff]
    %v373 = vld [vmem:[#allocation2 + $0x59c] sm:$0xf]
    %v374 = vld [vmem:[#allocation2 + $0x5a0] sm:$0xff]
    %v375 = vld [vmem:[#allocation2 + $0x5a8] sm:$0xf]
    %v376 = vld [vmem:[#allocation2 + $0x5ac] sm:$0xff]
    %v377 = vld [vmem:[#allocation2 + $0x5b4] sm:$0xf]
    %v378 = vld [vmem:[#allocation2 + $0x5b8] sm:$0xff]
    %v379 = vld [vmem:[#allocation2 + $0x5c0] sm:$0xf]
    %v380 = vld [vmem:[#allocation2 + $0x5c4] sm:$0xff]
    %v381 = vld [vmem:[#allocation2 + $0x5cc] sm:$0xf]
    %v382 = vld [vmem:[#allocation2 + $0x5d0] sm:$0xff]
    %v383 = vld [vmem:[#allocation2 + $0x5d8] sm:$0xf]
    %v384 = vld [vmem:[#allocation2 + $0x5dc] sm:$0xff]
    %v385 = vld [vmem:[#allocation2 + $0x5e4] sm:$0xf]
    %v386 = vld [vmem:[#allocation2 + $0x5e8] sm:$0xff]
    %v387 = vld [vmem:[#allocation2 + $0x5f0] sm:$0xf]
    %v388 = vld [vmem:[#allocation2 + $0x5f4] sm:$0xff]
    %v389 = vld [vmem:[#allocation2 + $0x5fc] sm:$0xf]
    %v390 = vld [vmem:[%s2] sm:$0x7]
    %v392 = vperm.slane %v390, 0
    %v393 = vperm.slane %v390, 1
    %v394 = vperm.slane %v390, 2
    %v654 = vunpack.c.l.b16 %v134
    %v655 = vunpack.c.h.b16 %v134
    %v656 = vunpack.c.l.b16 %v135
    %v657 = vunpack.c.l.b16 %v136
    %v658 = vunpack.c.h.b16 %v136
    %v659 = vunpack.c.l.b16 %v137
    %v660 = vunpack.c.l.b16 %v138
    %v661 = vunpack.c.h.b16 %v138
    %v662 = vunpack.c.l.b16 %v139
    %v663 = vunpack.c.l.b16 %v140
    %v664 = vunpack.c.h.b16 %v140
    %v665 = vunpack.c.l.b16 %v141
    %v666 = vunpack.c.l.b16 %v142
    %v667 = vunpack.c.h.b16 %v142
    %v668 = vunpack.c.l.b16 %v143
    %v669 = vunpack.c.l.b16 %v144
    %v670 = vunpack.c.h.b16 %v144
    %v671 = vunpack.c.l.b16 %v145
    %v672 = vunpack.c.l.b16 %v146
    %v673 = vunpack.c.h.b16 %v146
    %v674 = vunpack.c.l.b16 %v147
    %v675 = vunpack.c.l.b16 %v148
    %v676 = vunpack.c.h.b16 %v148
    %v677 = vunpack.c.l.b16 %v149
    %v678 = vunpack.c.l.b16 %v150
    %v679 = vunpack.c.h.b16 %v150
    %v680 = vunpack.c.l.b16 %v151
    %v681 = vunpack.c.l.b16 %v152
    %v682 = vunpack.c.h.b16 %v152
    %v683 = vunpack.c.l.b16 %v153
    %v684 = vunpack.c.l.b16 %v154
    %v685 = vunpack.c.h.b16 %v154
    %v686 = vunpack.c.l.b16 %v155
    %v687 = vunpack.c.l.b16 %v156
    %v688 = vunpack.c.h.b16 %v156
    %v689 = vunpack.c.l.b16 %v157
    %v690 = vunpack.c.l.b16 %v158
    %v691 = vunpack.c.h.b16 %v158
    %v692 = vunpack.c.l.b16 %v159
    %v693 = vunpack.c.l.b16 %v160
    %v694 = vunpack.c.h.b16 %v160
    %v695 = vunpack.c.l.b16 %v161
    %v696 = vunpack.c.l.b16 %v162
    %v697 = vunpack.c.h.b16 %v162
    %v698 = vunpack.c.l.b16 %v163
    %v699 = vunpack.c.l.b16 %v164
    %v700 = vunpack.c.h.b16 %v164
    %v701 = vunpack.c.l.b16 %v165
    %v702 = vunpack.c.l.b16 %v166
    %v703 = vunpack.c.h.b16 %v166
    %v704 = vunpack.c.l.b16 %v167
    %v705 = vunpack.c.l.b16 %v168
    %v706 = vunpack.c.h.b16 %v168
    %v707 = vunpack.c.l.b16 %v169
    %v708 = vunpack.c.l.b16 %v170
    %v709 = vunpack.c.h.b16 %v170
    %v710 = vunpack.c.l.b16 %v171
    %v711 = vunpack.c.l.b16 %v172
    %v712 = vunpack.c.h.b16 %v172
    %v713 = vunpack.c.l.b16 %v173
    %v714 = vunpack.c.l.b16 %v174
    %v715 = vunpack.c.h.b16 %v174
    %v716 = vunpack.c.l.b16 %v175
    %v717 = vunpack.c.l.b16 %v176
    %v718 = vunpack.c.h.b16 %v176
    %v719 = vunpack.c.l.b16 %v177
    %v720 = vunpack.c.l.b16 %v178
    %v721 = vunpack.c.h.b16 %v178
    %v722 = vunpack.c.l.b16 %v179
    %v723 = vunpack.c.l.b16 %v180
    %v724 = vunpack.c.h.b16 %v180
    %v725 = vunpack.c.l.b16 %v181
    %v726 = vunpack.c.l.b16 %v182
    %v727 = vunpack.c.h.b16 %v182
    %v728 = vunpack.c.l.b16 %v183
    %v729 = vunpack.c.l.b16 %v184
    %v730 = vunpack.c.h.b16 %v184
    %v731 = vunpack.c.l.b16 %v185
    %v732 = vunpack.c.l.b16 %v186
    %v733 = vunpack.c.h.b16 %v186
    %v734 = vunpack.c.l.b16 %v187
    %v735 = vunpack.c.l.b16 %v188
    %v736 = vunpack.c.h.b16 %v188
    %v737 = vunpack.c.l.b16 %v189
    %v738 = vunpack.c.l.b16 %v190
    %v739 = vunpack.c.h.b16 %v190
    %v740 = vunpack.c.l.b16 %v191
    %v741 = vunpack.c.l.b16 %v192
    %v742 = vunpack.c.h.b16 %v192
    %v743 = vunpack.c.l.b16 %v193
    %v744 = vunpack.c.l.b16 %v194
    %v745 = vunpack.c.h.b16 %v194
    %v746 = vunpack.c.l.b16 %v195
    %v747 = vunpack.c.l.b16 %v196
    %v748 = vunpack.c.h.b16 %v196
    %v749 = vunpack.c.l.b16 %v197
    %v750 = vunpack.c.l.b16 %v198
    %v751 = vunpack.c.h.b16 %v198
    %v752 = vunpack.c.l.b16 %v199
    %v753 = vunpack.c.l.b16 %v200
    %v754 = vunpack.c.h.b16 %v200
    %v755 = vunpack.c.l.b16 %v201
    %v756 = vunpack.c.l.b16 %v202
    %v757 = vunpack.c.h.b16 %v202
    %v758 = vunpack.c.l.b16 %v203
    %v759 = vunpack.c.l.b16 %v204
    %v760 = vunpack.c.h.b16 %v204
    %v761 = vunpack.c.l.b16 %v205
    %v762 = vunpack.c.l.b16 %v206
    %v763 = vunpack.c.h.b16 %v206
    %v764 = vunpack.c.l.b16 %v207
    %v765 = vunpack.c.l.b16 %v208
    %v766 = vunpack.c.h.b16 %v208
    %v767 = vunpack.c.l.b16 %v209
    %v768 = vunpack.c.l.b16 %v210
    %v769 = vunpack.c.h.b16 %v210
    %v770 = vunpack.c.l.b16 %v211
    %v771 = vunpack.c.l.b16 %v212
    %v772 = vunpack.c.h.b16 %v212
    %v773 = vunpack.c.l.b16 %v213
    %v774 = vunpack.c.l.b16 %v214
    %v775 = vunpack.c.h.b16 %v214
    %v776 = vunpack.c.l.b16 %v215
    %v777 = vunpack.c.l.b16 %v216
    %v778 = vunpack.c.h.b16 %v216
    %v779 = vunpack.c.l.b16 %v217
    %v780 = vunpack.c.l.b16 %v218
    %v781 = vunpack.c.h.b16 %v218
    %v782 = vunpack.c.l.b16 %v219
    %v783 = vunpack.c.l.b16 %v220
    %v784 = vunpack.c.h.b16 %v220
    %v785 = vunpack.c.l.b16 %v221
    %v786 = vunpack.c.l.b16 %v222
    %v787 = vunpack.c.h.b16 %v222
    %v788 = vunpack.c.l.b16 %v223
    %v789 = vunpack.c.l.b16 %v224
    %v790 = vunpack.c.h.b16 %v224
    %v791 = vunpack.c.l.b16 %v225
    %v792 = vunpack.c.l.b16 %v226
    %v793 = vunpack.c.h.b16 %v226
    %v794 = vunpack.c.l.b16 %v227
    %v795 = vunpack.c.l.b16 %v228
    %v796 = vunpack.c.h.b16 %v228
    %v797 = vunpack.c.l.b16 %v229
    %v798 = vunpack.c.l.b16 %v230
    %v799 = vunpack.c.h.b16 %v230
    %v800 = vunpack.c.l.b16 %v231
    %v801 = vunpack.c.l.b16 %v232
    %v802 = vunpack.c.h.b16 %v232
    %v803 = vunpack.c.l.b16 %v233
    %v804 = vunpack.c.l.b16 %v234
    %v805 = vunpack.c.h.b16 %v234
    %v806 = vunpack.c.l.b16 %v235
    %v807 = vunpack.c.l.b16 %v236
    %v808 = vunpack.c.h.b16 %v236
    %v809 = vunpack.c.l.b16 %v237
    %v810 = vunpack.c.l.b16 %v238
    %v811 = vunpack.c.h.b16 %v238
    %v812 = vunpack.c.l.b16 %v239
    %v813 = vunpack.c.l.b16 %v240
    %v814 = vunpack.c.h.b16 %v240
    %v815 = vunpack.c.l.b16 %v241
    %v816 = vunpack.c.l.b16 %v242
    %v817 = vunpack.c.h.b16 %v242
    %v818 = vunpack.c.l.b16 %v243
    %v819 = vunpack.c.l.b16 %v244
    %v820 = vunpack.c.h.b16 %v244
    %v821 = vunpack.c.l.b16 %v245
    %v822 = vunpack.c.l.b16 %v246
    %v823 = vunpack.c.h.b16 %v246
    %v824 = vunpack.c.l.b16 %v247
    %v825 = vunpack.c.l.b16 %v248
    %v826 = vunpack.c.h.b16 %v248
    %v827 = vunpack.c.l.b16 %v249
    %v828 = vunpack.c.l.b16 %v250
    %v829 = vunpack.c.h.b16 %v250
    %v830 = vunpack.c.l.b16 %v251
    %v831 = vunpack.c.l.b16 %v252
    %v832 = vunpack.c.h.b16 %v252
    %v833 = vunpack.c.l.b16 %v253
    %v834 = vunpack.c.l.b16 %v254
    %v835 = vunpack.c.h.b16 %v254
    %v836 = vunpack.c.l.b16 %v255
    %v837 = vunpack.c.l.b16 %v256
    %v838 = vunpack.c.h.b16 %v256
    %v839 = vunpack.c.l.b16 %v257
    %v840 = vunpack.c.l.b16 %v258
    %v841 = vunpack.c.h.b16 %v258
    %v842 = vunpack.c.l.b16 %v259
    %v843 = vunpack.c.l.b16 %v260
    %v844 = vunpack.c.h.b16 %v260
    %v845 = vunpack.c.l.b16 %v261
    %v846 = vunpack.c.l.b16 %v262
    %v847 = vunpack.c.h.b16 %v262
    %v848 = vunpack.c.l.b16 %v263
    %v849 = vunpack.c.l.b16 %v264
    %v850 = vunpack.c.h.b16 %v264
    %v851 = vunpack.c.l.b16 %v265
    %v852 = vunpack.c.l.b16 %v266
    %v853 = vunpack.c.h.b16 %v266
    %v854 = vunpack.c.l.b16 %v267
    %v855 = vunpack.c.l.b16 %v268
    %v856 = vunpack.c.h.b16 %v268
    %v857 = vunpack.c.l.b16 %v269
    %v858 = vunpack.c.l.b16 %v270
    %v859 = vunpack.c.h.b16 %v270
    %v860 = vunpack.c.l.b16 %v271
    %v861 = vunpack.c.l.b16 %v272
    %v862 = vunpack.c.h.b16 %v272
    %v863 = vunpack.c.l.b16 %v273
    %v864 = vunpack.c.l.b16 %v274
    %v865 = vunpack.c.h.b16 %v274
    %v866 = vunpack.c.l.b16 %v275
    %v867 = vunpack.c.l.b16 %v276
    %v868 = vunpack.c.h.b16 %v276
    %v869 = vunpack.c.l.b16 %v277
    %v870 = vunpack.c.l.b16 %v278
    %v871 = vunpack.c.h.b16 %v278
    %v872 = vunpack.c.l.b16 %v279
    %v873 = vunpack.c.l.b16 %v280
    %v874 = vunpack.c.h.b16 %v280
    %v875 = vunpack.c.l.b16 %v281
    %v876 = vunpack.c.l.b16 %v282
    %v877 = vunpack.c.h.b16 %v282
    %v878 = vunpack.c.l.b16 %v283
    %v879 = vunpack.c.l.b16 %v284
    %v880 = vunpack.c.h.b16 %v284
    %v881 = vunpack.c.l.b16 %v285
    %v882 = vunpack.c.l.b16 %v286
    %v883 = vunpack.c.h.b16 %v286
    %v884 = vunpack.c.l.b16 %v287
    %v885 = vunpack.c.l.b16 %v288
    %v886 = vunpack.c.h.b16 %v288
    %v887 = vunpack.c.l.b16 %v289
    %v888 = vunpack.c.l.b16 %v290
    %v889 = vunpack.c.h.b16 %v290
    %v890 = vunpack.c.l.b16 %v291
    %v891 = vunpack.c.l.b16 %v292
    %v892 = vunpack.c.h.b16 %v292
    %v893 = vunpack.c.l.b16 %v293
    %v894 = vunpack.c.l.b16 %v294
    %v895 = vunpack.c.h.b16 %v294
    %v896 = vunpack.c.l.b16 %v295
    %v897 = vunpack.c.l.b16 %v296
    %v898 = vunpack.c.h.b16 %v296
    %v899 = vunpack.c.l.b16 %v297
    %v900 = vunpack.c.l.b16 %v298
    %v901 = vunpack.c.h.b16 %v298
    %v902 = vunpack.c.l.b16 %v299
    %v903 = vunpack.c.l.b16 %v300
    %v904 = vunpack.c.h.b16 %v300
    %v905 = vunpack.c.l.b16 %v301
    %v906 = vunpack.c.l.b16 %v302
    %v907 = vunpack.c.h.b16 %v302
    %v908 = vunpack.c.l.b16 %v303
    %v909 = vunpack.c.l.b16 %v304
    %v910 = vunpack.c.h.b16 %v304
    %v911 = vunpack.c.l.b16 %v305
    %v912 = vunpack.c.l.b16 %v306
    %v913 = vunpack.c.h.b16 %v306
    %v914 = vunpack.c.l.b16 %v307
    %v915 = vunpack.c.l.b16 %v308
    %v916 = vunpack.c.h.b16 %v308
    %v917 = vunpack.c.l.b16 %v309
    %v918 = vunpack.c.l.b16 %v310
    %v919 = vunpack.c.h.b16 %v310
    %v920 = vunpack.c.l.b16 %v311
    %v921 = vunpack.c.l.b16 %v312
    %v922 = vunpack.c.h.b16 %v312
    %v923 = vunpack.c.l.b16 %v313
    %v924 = vunpack.c.l.b16 %v314
    %v925 = vunpack.c.h.b16 %v314
    %v926 = vunpack.c.l.b16 %v315
    %v927 = vunpack.c.l.b16 %v316
    %v928 = vunpack.c.h.b16 %v316
    %v929 = vunpack.c.l.b16 %v317
    %v930 = vunpack.c.l.b16 %v318
    %v931 = vunpack.c.h.b16 %v318
    %v932 = vunpack.c.l.b16 %v319
    %v933 = vunpack.c.l.b16 %v320
    %v934 = vunpack.c.h.b16 %v320
    %v935 = vunpack.c.l.b16 %v321
    %v936 = vunpack.c.l.b16 %v322
    %v937 = vunpack.c.h.b16 %v322
    %v938 = vunpack.c.l.b16 %v323
    %v939 = vunpack.c.l.b16 %v324
    %v940 = vunpack.c.h.b16 %v324
    %v941 = vunpack.c.l.b16 %v325
    %v942 = vunpack.c.l.b16 %v326
    %v943 = vunpack.c.h.b16 %v326
    %v944 = vunpack.c.l.b16 %v327
    %v945 = vunpack.c.l.b16 %v328
    %v946 = vunpack.c.h.b16 %v328
    %v947 = vunpack.c.l.b16 %v329
    %v948 = vunpack.c.l.b16 %v330
    %v949 = vunpack.c.h.b16 %v330
    %v950 = vunpack.c.l.b16 %v331
    %v951 = vunpack.c.l.b16 %v332
    %v952 = vunpack.c.h.b16 %v332
    %v953 = vunpack.c.l.b16 %v333
    %v954 = vunpack.c.l.b16 %v334
    %v955 = vunpack.c.h.b16 %v334
    %v956 = vunpack.c.l.b16 %v335
    %v957 = vunpack.c.l.b16 %v336
    %v958 = vunpack.c.h.b16 %v336
    %v959 = vunpack.c.l.b16 %v337
    %v960 = vunpack.c.l.b16 %v338
    %v961 = vunpack.c.h.b16 %v338
    %v962 = vunpack.c.l.b16 %v339
    %v963 = vunpack.c.l.b16 %v340
    %v964 = vunpack.c.h.b16 %v340
    %v965 = vunpack.c.l.b16 %v341
    %v966 = vunpack.c.l.b16 %v342
    %v967 = vunpack.c.h.b16 %v342
    %v968 = vunpack.c.l.b16 %v343
    %v969 = vunpack.c.l.b16 %v344
    %v970 = vunpack.c.h.b16 %v344
    %v971 = vunpack.c.l.b16 %v345
    %v972 = vunpack.c.l.b16 %v346
    %v973 = vunpack.c.h.b16 %v346
    %v974 = vunpack.c.l.b16 %v347
    %v975 = vunpack.c.l.b16 %v348
    %v976 = vunpack.c.h.b16 %v348
    %v977 = vunpack.c.l.b16 %v349
    %v978 = vunpack.c.l.b16 %v350
    %v979 = vunpack.c.h.b16 %v350
    %v980 = vunpack.c.l.b16 %v351
    %v981 = vunpack.c.l.b16 %v352
    %v982 = vunpack.c.h.b16 %v352
    %v983 = vunpack.c.l.b16 %v353
    %v984 = vunpack.c.l.b16 %v354
    %v985 = vunpack.c.h.b16 %v354
    %v986 = vunpack.c.l.b16 %v355
    %v987 = vunpack.c.l.b16 %v356
    %v988 = vunpack.c.h.b16 %v356
    %v989 = vunpack.c.l.b16 %v357
    %v990 = vunpack.c.l.b16 %v358
    %v991 = vunpack.c.h.b16 %v358
    %v992 = vunpack.c.l.b16 %v359
    %v993 = vunpack.c.l.b16 %v360
    %v994 = vunpack.c.h.b16 %v360
    %v995 = vunpack.c.l.b16 %v361
    %v996 = vunpack.c.l.b16 %v362
    %v997 = vunpack.c.h.b16 %v362
    %v998 = vunpack.c.l.b16 %v363
    %v999 = vunpack.c.l.b16 %v364
    %v1000 = vunpack.c.h.b16 %v364
    %v1001 = vunpack.c.l.b16 %v365
    %v1002 = vunpack.c.l.b16 %v366
    %v1003 = vunpack.c.h.b16 %v366
    %v1004 = vunpack.c.l.b16 %v367
    %v1005 = vunpack.c.l.b16 %v368
    %v1006 = vunpack.c.h.b16 %v368
    %v1007 = vunpack.c.l.b16 %v369
    %v1008 = vunpack.c.l.b16 %v370
    %v1009 = vunpack.c.h.b16 %v370
    %v1010 = vunpack.c.l.b16 %v371
    %v1011 = vunpack.c.l.b16 %v372
    %v1012 = vunpack.c.h.b16 %v372
    %v1013 = vunpack.c.l.b16 %v373
    %v1014 = vunpack.c.l.b16 %v374
    %v1015 = vunpack.c.h.b16 %v374
    %v1016 = vunpack.c.l.b16 %v375
    %v1017 = vunpack.c.l.b16 %v376
    %v1018 = vunpack.c.h.b16 %v376
    %v1019 = vunpack.c.l.b16 %v377
    %v1020 = vunpack.c.l.b16 %v378
    %v1021 = vunpack.c.h.b16 %v378
    %v1022 = vunpack.c.l.b16 %v379
    %v1023 = vunpack.c.l.b16 %v380
    %v1024 = vunpack.c.h.b16 %v380
    %v1025 = vunpack.c.l.b16 %v381
    %v1026 = vunpack.c.l.b16 %v382
    %v1027 = vunpack.c.h.b16 %v382
    %v1028 = vunpack.c.l.b16 %v383
    %v1029 = vunpack.c.l.b16 %v384
    %v1030 = vunpack.c.h.b16 %v384
    %v1031 = vunpack.c.l.b16 %v385
    %v1032 = vunpack.c.l.b16 %v386
    %v1033 = vunpack.c.h.b16 %v386
    %v1034 = vunpack.c.l.b16 %v387
    %v1035 = vunpack.c.l.b16 %v388
    %v1036 = vunpack.c.h.b16 %v388
    %v1037 = vunpack.c.l.b16 %v389
    %v1038 = vpack.c.b16 %v657, %v654
    %v1039 = vpack.c.b16 %v658, %v655
    %v1040 = vpack.c.b16 %v659, %v656
    %v1041 = vpack.c.b16 %v663, %v660
    %v1042 = vpack.c.b16 %v664, %v661
    %v1043 = vpack.c.b16 %v665, %v662
    %v1044 = vpack.c.b16 %v669, %v666
    %v1045 = vpack.c.b16 %v670, %v667
    %v1046 = vpack.c.b16 %v671, %v668
    %v1047 = vpack.c.b16 %v675, %v672
    %v1048 = vpack.c.b16 %v676, %v673
    %v1049 = vpack.c.b16 %v677, %v674
    %v1050 = vpack.c.b16 %v681, %v678
    %v1051 = vpack.c.b16 %v682, %v679
    %v1052 = vpack.c.b16 %v683, %v680
    %v1053 = vpack.c.b16 %v687, %v684
    %v1054 = vpack.c.b16 %v688, %v685
    %v1055 = vpack.c.b16 %v689, %v686
    %v1056 = vpack.c.b16 %v693, %v690
    %v1057 = vpack.c.b16 %v694, %v691
    %v1058 = vpack.c.b16 %v695, %v692
    %v1059 = vpack.c.b16 %v699, %v696
    %v1060 = vpack.c.b16 %v700, %v697
    %v1061 = vpack.c.b16 %v701, %v698
    %v1062 = vpack.c.b16 %v705, %v702
    %v1063 = vpack.c.b16 %v706, %v703
    %v1064 = vpack.c.b16 %v707, %v704
    %v1065 = vpack.c.b16 %v711, %v708
    %v1066 = vpack.c.b16 %v712, %v709
    %v1067 = vpack.c.b16 %v713, %v710
    %v1068 = vpack.c.b16 %v717, %v714
    %v1069 = vpack.c.b16 %v718, %v715
    %v1070 = vpack.c.b16 %v719, %v716
    %v1071 = vpack.c.b16 %v723, %v720
    %v1072 = vpack.c.b16 %v724, %v721
    %v1073 = vpack.c.b16 %v725, %v722
    %v1074 = vpack.c.b16 %v729, %v726
    %v1075 = vpack.c.b16 %v730, %v727
    %v1076 = vpack.c.b16 %v731, %v728
    %v1077 = vpack.c.b16 %v735, %v732
    %v1078 = vpack.c.b16 %v736, %v733
    %v1079 = vpack.c.b16 %v737, %v734
    %v1080 = vpack.c.b16 %v741, %v738
    %v1081 = vpack.c.b16 %v742, %v739
    %v1082 = vpack.c.b16 %v743, %v740
    %v1083 = vpack.c.b16 %v747, %v744
    %v1084 = vpack.c.b16 %v748, %v745
    %v1085 = vpack.c.b16 %v749, %v746
    %v1086 = vpack.c.b16 %v753, %v750
    %v1087 = vpack.c.b16 %v754, %v751
    %v1088 = vpack.c.b16 %v755, %v752
    %v1089 = vpack.c.b16 %v759, %v756
    %v1090 = vpack.c.b16 %v760, %v757
    %v1091 = vpack.c.b16 %v761, %v758
    %v1092 = vpack.c.b16 %v765, %v762
    %v1093 = vpack.c.b16 %v766, %v763
    %v1094 = vpack.c.b16 %v767, %v764
    %v1095 = vpack.c.b16 %v771, %v768
    %v1096 = vpack.c.b16 %v772, %v769
    %v1097 = vpack.c.b16 %v773, %v770
    %v1098 = vpack.c.b16 %v777, %v774
    %v1099 = vpack.c.b16 %v778, %v775
    %v1100 = vpack.c.b16 %v779, %v776
    %v1101 = vpack.c.b16 %v783, %v780
    %v1102 = vpack.c.b16 %v784, %v781
    %v1103 = vpack.c.b16 %v785, %v782
    %v1104 = vpack.c.b16 %v789, %v786
    %v1105 = vpack.c.b16 %v790, %v787
    %v1106 = vpack.c.b16 %v791, %v788
    %v1107 = vpack.c.b16 %v795, %v792
    %v1108 = vpack.c.b16 %v796, %v793
    %v1109 = vpack.c.b16 %v797, %v794
    %v1110 = vpack.c.b16 %v801, %v798
    %v1111 = vpack.c.b16 %v802, %v799
    %v1112 = vpack.c.b16 %v803, %v800
    %v1113 = vpack.c.b16 %v807, %v804
    %v1114 = vpack.c.b16 %v808, %v805
    %v1115 = vpack.c.b16 %v809, %v806
    %v1116 = vpack.c.b16 %v813, %v810
    %v1117 = vpack.c.b16 %v814, %v811
    %v1118 = vpack.c.b16 %v815, %v812
    %v1119 = vpack.c.b16 %v819, %v816
    %v1120 = vpack.c.b16 %v820, %v817
    %v1121 = vpack.c.b16 %v821, %v818
    %v1122 = vpack.c.b16 %v825, %v822
    %v1123 = vpack.c.b16 %v826, %v823
    %v1124 = vpack.c.b16 %v827, %v824
    %v1125 = vpack.c.b16 %v831, %v828
    %v1126 = vpack.c.b16 %v832, %v829
    %v1127 = vpack.c.b16 %v833, %v830
    %v1128 = vpack.c.b16 %v837, %v834
    %v1129 = vpack.c.b16 %v838, %v835
    %v1130 = vpack.c.b16 %v839, %v836
    %v1131 = vpack.c.b16 %v843, %v840
    %v1132 = vpack.c.b16 %v844, %v841
    %v1133 = vpack.c.b16 %v845, %v842
    %v1134 = vpack.c.b16 %v849, %v846
    %v1135 = vpack.c.b16 %v850, %v847
    %v1136 = vpack.c.b16 %v851, %v848
    %v1137 = vpack.c.b16 %v855, %v852
    %v1138 = vpack.c.b16 %v856, %v853
    %v1139 = vpack.c.b16 %v857, %v854
    %v1140 = vpack.c.b16 %v861, %v858
    %v1141 = vpack.c.b16 %v862, %v859
    %v1142 = vpack.c.b16 %v863, %v860
    %v1143 = vpack.c.b16 %v867, %v864
    %v1144 = vpack.c.b16 %v868, %v865
    %v1145 = vpack.c.b16 %v869, %v866
    %v1146 = vpack.c.b16 %v873, %v870
    %v1147 = vpack.c.b16 %v874, %v871
    %v1148 = vpack.c.b16 %v875, %v872
    %v1149 = vpack.c.b16 %v879, %v876
    %v1150 = vpack.c.b16 %v880, %v877
    %v1151 = vpack.c.b16 %v881, %v878
    %v1152 = vpack.c.b16 %v885, %v882
    %v1153 = vpack.c.b16 %v886, %v883
    %v1154 = vpack.c.b16 %v887, %v884
    %v1155 = vpack.c.b16 %v891, %v888
    %v1156 = vpack.c.b16 %v892, %v889
    %v1157 = vpack.c.b16 %v893, %v890
    %v1158 = vpack.c.b16 %v897, %v894
    %v1159 = vpack.c.b16 %v898, %v895
    %v1160 = vpack.c.b16 %v899, %v896
    %v1161 = vpack.c.b16 %v903, %v900
    %v1162 = vpack.c.b16 %v904, %v901
    %v1163 = vpack.c.b16 %v905, %v902
    %v1164 = vpack.c.b16 %v909, %v906
    %v1165 = vpack.c.b16 %v910, %v907
    %v1166 = vpack.c.b16 %v911, %v908
    %v1167 = vpack.c.b16 %v915, %v912
    %v1168 = vpack.c.b16 %v916, %v913
    %v1169 = vpack.c.b16 %v917, %v914
    %v1170 = vpack.c.b16 %v921, %v918
    %v1171 = vpack.c.b16 %v922, %v919
    %v1172 = vpack.c.b16 %v923, %v920
    %v1173 = vpack.c.b16 %v927, %v924
    %v1174 = vpack.c.b16 %v928, %v925
    %v1175 = vpack.c.b16 %v929, %v926
    %v1176 = vpack.c.b16 %v933, %v930
    %v1177 = vpack.c.b16 %v934, %v931
    %v1178 = vpack.c.b16 %v935, %v932
    %v1179 = vpack.c.b16 %v939, %v936
    %v1180 = vpack.c.b16 %v940, %v937
    %v1181 = vpack.c.b16 %v941, %v938
    %v1182 = vpack.c.b16 %v945, %v942
    %v1183 = vpack.c.b16 %v946, %v943
    %v1184 = vpack.c.b16 %v947, %v944
    %v1185 = vpack.c.b16 %v951, %v948
    %v1186 = vpack.c.b16 %v952, %v949
    %v1187 = vpack.c.b16 %v953, %v950
    %v1188 = vpack.c.b16 %v957, %v954
    %v1189 = vpack.c.b16 %v958, %v955
    %v1190 = vpack.c.b16 %v959, %v956
    %v1191 = vpack.c.b16 %v963, %v960
    %v1192 = vpack.c.b16 %v964, %v961
    %v1193 = vpack.c.b16 %v965, %v962
    %v1194 = vpack.c.b16 %v969, %v966
    %v1195 = vpack.c.b16 %v970, %v967
    %v1196 = vpack.c.b16 %v971, %v968
    %v1197 = vpack.c.b16 %v975, %v972
    %v1198 = vpack.c.b16 %v976, %v973
    %v1199 = vpack.c.b16 %v977, %v974
    %v1200 = vpack.c.b16 %v981, %v978
    %v1201 = vpack.c.b16 %v982, %v979
    %v1202 = vpack.c.b16 %v983, %v980
    %v1203 = vpack.c.b16 %v987, %v984
    %v1204 = vpack.c.b16 %v988, %v985
    %v1205 = vpack.c.b16 %v989, %v986
    %v1206 = vpack.c.b16 %v993, %v990
    %v1207 = vpack.c.b16 %v994, %v991
    %v1208 = vpack.c.b16 %v995, %v992
    %v1209 = vpack.c.b16 %v999, %v996
    %v1210 = vpack.c.b16 %v1000, %v997
    %v1211 = vpack.c.b16 %v1001, %v998
    %v1212 = vpack.c.b16 %v1005, %v1002
    %v1213 = vpack.c.b16 %v1006, %v1003
    %v1214 = vpack.c.b16 %v1007, %v1004
    %v1215 = vpack.c.b16 %v1011, %v1008
    %v1216 = vpack.c.b16 %v1012, %v1009
    %v1217 = vpack.c.b16 %v1013, %v1010
    %v1218 = vpack.c.b16 %v1017, %v1014
    %v1219 = vpack.c.b16 %v1018, %v1015
    %v1220 = vpack.c.b16 %v1019, %v1016
    %v1221 = vpack.c.b16 %v1023, %v1020
    %v1222 = vpack.c.b16 %v1024, %v1021
    %v1223 = vpack.c.b16 %v1025, %v1022
    %v1224 = vpack.c.b16 %v1029, %v1026
    %v1225 = vpack.c.b16 %v1030, %v1027
    %v1226 = vpack.c.b16 %v1031, %v1028
    %v1227 = vpack.c.b16 %v1035, %v1032
    %v1228 = vpack.c.b16 %v1036, %v1033
    %v1229 = vpack.c.b16 %v1037, %v1034
    %1422 = vmatpush.bf16.msra.mxu0 %v1059
    %1423 = vmatpush.bf16.msra.mxu0 %v1056
    %1424 = vmatpush.bf16.msra.mxu0 %v1053
    %1425 = vmatpush.bf16.msra.mxu0 %v1050
    %1426 = vmatpush.bf16.msra.mxu0 %v1047
    %1427 = vmatpush.bf16.msra.mxu0 %v1044
    %1428 = vmatpush.bf16.msra.mxu0 %v1041
    %1429 = vmatpush.bf16.msra.mxu0 %v1038
    %1430 = vmatmul.bf16.gmra.mxu0 %v126
    %v1431 = vpop.f32.mrf.mxu0
    %v1432 = vadd.f32 %v392, %v1431
    %v1433 = vpop.f32.mrf.mxu0
    %v1434 = vadd.f32 %v392, %v1433
    %1435 = vdwg.mxu0
    %1436 = vmatpush.bf16.msra.mxu0 %v1083
    %1437 = vmatpush.bf16.msra.mxu0 %v1080
    %1438 = vmatpush.bf16.msra.mxu0 %v1077
    %1439 = vmatpush.bf16.msra.mxu0 %v1074
    %1440 = vmatpush.bf16.msra.mxu0 %v1071
    %1441 = vmatpush.bf16.msra.mxu0 %v1068
    %1442 = vmatpush.bf16.msra.mxu0 %v1065
    %1443 = vmatpush.bf16.msra.mxu0 %v1062
    %1444 = vmatmul.bf16.gmra.mxu0 %v127
    %v1445 = vpop.f32.mrf.mxu0
    %v1446 = vadd.f32 %v1432, %v1445
    %v1447 = vpop.f32.mrf.mxu0
    %v1448 = vadd.f32 %v1434, %v1447
    %1449 = vdwg.mxu0
    %1450 = vmatpush.bf16.msra.mxu0 %v1107
    %1451 = vmatpush.bf16.msra.mxu0 %v1104
    %1452 = vmatpush.bf16.msra.mxu0 %v1101
    %1453 = vmatpush.bf16.msra.mxu0 %v1098
    %1454 = vmatpush.bf16.msra.mxu0 %v1095
    %1455 = vmatpush.bf16.msra.mxu0 %v1092
    %1456 = vmatpush.bf16.msra.mxu0 %v1089
    %1457 = vmatpush.bf16.msra.mxu0 %v1086
    %1458 = vmatmul.bf16.gmra.mxu0 %v128
    %v1459 = vpop.f32.mrf.mxu0
    %v1460 = vadd.f32 %v1446, %v1459
    %v1461 = vpop.f32.mrf.mxu0
    %v1462 = vadd.f32 %v1448, %v1461
    %1463 = vdwg.mxu0
    %1464 = vmatpush.bf16.msra.mxu0 %v1131
    %1465 = vmatpush.bf16.msra.mxu0 %v1128
    %1466 = vmatpush.bf16.msra.mxu0 %v1125
    %1467 = vmatpush.bf16.msra.mxu0 %v1122
    %1468 = vmatpush.bf16.msra.mxu0 %v1119
    %1469 = vmatpush.bf16.msra.mxu0 %v1116
    %1470 = vmatpush.bf16.msra.mxu0 %v1113
    %1471 = vmatpush.bf16.msra.mxu0 %v1110
    %1472 = vmatmul.bf16.gmra.mxu0 %v129
    %v1473 = vpop.f32.mrf.mxu0
    %v1474 = vadd.f32 %v1460, %v1473
    %v1475 = vpop.f32.mrf.mxu0
    %v1476 = vadd.f32 %v1462, %v1475
    %1477 = vdwg.mxu0
    %1478 = vmatpush.bf16.msra.mxu0 %v1155
    %1479 = vmatpush.bf16.msra.mxu0 %v1152
    %1480 = vmatpush.bf16.msra.mxu0 %v1149
    %1481 = vmatpush.bf16.msra.mxu0 %v1146
    %1482 = vmatpush.bf16.msra.mxu0 %v1143
    %1483 = vmatpush.bf16.msra.mxu0 %v1140
    %1484 = vmatpush.bf16.msra.mxu0 %v1137
    %1485 = vmatpush.bf16.msra.mxu0 %v1134
    %1486 = vmatmul.bf16.gmra.mxu0 %v130
    %v1487 = vpop.f32.mrf.mxu0
    %v1488 = vadd.f32 %v1474, %v1487
    %v1489 = vpop.f32.mrf.mxu0
    %v1490 = vadd.f32 %v1476, %v1489
    %1491 = vdwg.mxu0
    %1492 = vmatpush.bf16.msra.mxu0 %v1179
    %1493 = vmatpush.bf16.msra.mxu0 %v1176
    %1494 = vmatpush.bf16.msra.mxu0 %v1173
    %1495 = vmatpush.bf16.msra.mxu0 %v1170
    %1496 = vmatpush.bf16.msra.mxu0 %v1167
    %1497 = vmatpush.bf16.msra.mxu0 %v1164
    %1498 = vmatpush.bf16.msra.mxu0 %v1161
    %1499 = vmatpush.bf16.msra.mxu0 %v1158
    %1500 = vmatmul.bf16.gmra.mxu0 %v131
    %v1501 = vpop.f32.mrf.mxu0
    %v1502 = vadd.f32 %v1488, %v1501
    %v1503 = vpop.f32.mrf.mxu0
    %v1504 = vadd.f32 %v1490, %v1503
    %1505 = vdwg.mxu0
    %1506 = vmatpush.bf16.msra.mxu0 %v1203
    %1507 = vmatpush.bf16.msra.mxu0 %v1200
    %1508 = vmatpush.bf16.msra.mxu0 %v1197
    %1509 = vmatpush.bf16.msra.mxu0 %v1194
    %1510 = vmatpush.bf16.msra.mxu0 %v1191
    %1511 = vmatpush.bf16.msra.mxu0 %v1188
    %1512 = vmatpush.bf16.msra.mxu0 %v1185
    %1513 = vmatpush.bf16.msra.mxu0 %v1182
    %1514 = vmatmul.bf16.gmra.mxu0 %v132
    %v1515 = vpop.f32.mrf.mxu0
    %v1516 = vadd.f32 %v1502, %v1515
    %v1517 = vpop.f32.mrf.mxu0
    %v1518 = vadd.f32 %v1504, %v1517
    %1519 = vdwg.mxu0
    %1520 = vmatpush.bf16.msra.mxu0 %v1227
    %1521 = vmatpush.bf16.msra.mxu0 %v1224
    %1522 = vmatpush.bf16.msra.mxu0 %v1221
    %1523 = vmatpush.bf16.msra.mxu0 %v1218
    %1524 = vmatpush.bf16.msra.mxu0 %v1215
    %1525 = vmatpush.bf16.msra.mxu0 %v1212
    %1526 = vmatpush.bf16.msra.mxu0 %v1209
    %1527 = vmatpush.bf16.msra.mxu0 %v1206
    %1528 = vmatmul.bf16.gmra.mxu0 %v133
    %v1529 = vpop.f32.mrf.mxu0
    %v1530 = vadd.f32 %v1516, %v1529
    %v1531 = vpop.f32.mrf.mxu0
    %v1532 = vadd.f32 %v1518, %v1531
    %1533 = vdwg.mxu0
    %1534 = vmatpush.bf16.msra.mxu0 %v1060
    %1535 = vmatpush.bf16.msra.mxu0 %v1057
    %1536 = vmatpush.bf16.msra.mxu0 %v1054
    %1537 = vmatpush.bf16.msra.mxu0 %v1051
    %1538 = vmatpush.bf16.msra.mxu0 %v1048
    %1539 = vmatpush.bf16.msra.mxu0 %v1045
    %1540 = vmatpush.bf16.msra.mxu0 %v1042
    %1541 = vmatpush.bf16.msra.mxu0 %v1039
    %1542 = vmatmul.bf16.gmra.mxu0 %v126
    %v1543 = vpop.f32.mrf.mxu0
    %v1544 = vadd.f32 %v393, %v1543
    %v1545 = vpop.f32.mrf.mxu0
    %v1546 = vadd.f32 %v393, %v1545
    %1547 = vdwg.mxu0
    %1548 = vmatpush.bf16.msra.mxu0 %v1084
    %1549 = vmatpush.bf16.msra.mxu0 %v1081
    %1550 = vmatpush.bf16.msra.mxu0 %v1078
    %1551 = vmatpush.bf16.msra.mxu0 %v1075
    %1552 = vmatpush.bf16.msra.mxu0 %v1072
    %1553 = vmatpush.bf16.msra.mxu0 %v1069
    %1554 = vmatpush.bf16.msra.mxu0 %v1066
    %1555 = vmatpush.bf16.msra.mxu0 %v1063
    %1556 = vmatmul.bf16.gmra.mxu0 %v127
    %v1557 = vpop.f32.mrf.mxu0
    %v1558 = vadd.f32 %v1544, %v1557
    %v1559 = vpop.f32.mrf.mxu0
    %v1560 = vadd.f32 %v1546, %v1559
    %1561 = vdwg.mxu0
    %1562 = vmatpush.bf16.msra.mxu0 %v1108
    %1563 = vmatpush.bf16.msra.mxu0 %v1105
    %1564 = vmatpush.bf16.msra.mxu0 %v1102
    %1565 = vmatpush.bf16.msra.mxu0 %v1099
    %1566 = vmatpush.bf16.msra.mxu0 %v1096
    %1567 = vmatpush.bf16.msra.mxu0 %v1093
    %1568 = vmatpush.bf16.msra.mxu0 %v1090
    %1569 = vmatpush.bf16.msra.mxu0 %v1087
    %1570 = vmatmul.bf16.gmra.mxu0 %v128
    %v1571 = vpop.f32.mrf.mxu0
    %v1572 = vadd.f32 %v1558, %v1571
    %v1573 = vpop.f32.mrf.mxu0
    %v1574 = vadd.f32 %v1560, %v1573
    %1575 = vdwg.mxu0
    %1576 = vmatpush.bf16.msra.mxu0 %v1132
    %1577 = vmatpush.bf16.msra.mxu0 %v1129
    %1578 = vmatpush.bf16.msra.mxu0 %v1126
    %1579 = vmatpush.bf16.msra.mxu0 %v1123
    %1580 = vmatpush.bf16.msra.mxu0 %v1120
    %1581 = vmatpush.bf16.msra.mxu0 %v1117
    %1582 = vmatpush.bf16.msra.mxu0 %v1114
    %1583 = vmatpush.bf16.msra.mxu0 %v1111
    %1584 = vmatmul.bf16.gmra.mxu0 %v129
    %v1585 = vpop.f32.mrf.mxu0
    %v1586 = vadd.f32 %v1572, %v1585
    %v1587 = vpop.f32.mrf.mxu0
    %v1588 = vadd.f32 %v1574, %v1587
    %1589 = vdwg.mxu0
    %1590 = vmatpush.bf16.msra.mxu0 %v1156
    %1591 = vmatpush.bf16.msra.mxu0 %v1153
    %1592 = vmatpush.bf16.msra.mxu0 %v1150
    %1593 = vmatpush.bf16.msra.mxu0 %v1147
    %1594 = vmatpush.bf16.msra.mxu0 %v1144
    %1595 = vmatpush.bf16.msra.mxu0 %v1141
    %1596 = vmatpush.bf16.msra.mxu0 %v1138
    %1597 = vmatpush.bf16.msra.mxu0 %v1135
    %1598 = vmatmul.bf16.gmra.mxu0 %v130
    %v1599 = vpop.f32.mrf.mxu0
    %v1600 = vadd.f32 %v1586, %v1599
    %v1601 = vpop.f32.mrf.mxu0
    %v1602 = vadd.f32 %v1588, %v1601
    %1603 = vdwg.mxu0
    %1604 = vmatpush.bf16.msra.mxu0 %v1180
    %1605 = vmatpush.bf16.msra.mxu0 %v1177
    %1606 = vmatpush.bf16.msra.mxu0 %v1174
    %1607 = vmatpush.bf16.msra.mxu0 %v1171
    %1608 = vmatpush.bf16.msra.mxu0 %v1168
    %1609 = vmatpush.bf16.msra.mxu0 %v1165
    %1610 = vmatpush.bf16.msra.mxu0 %v1162
    %1611 = vmatpush.bf16.msra.mxu0 %v1159
    %1612 = vmatmul.bf16.gmra.mxu0 %v131
    %v1613 = vpop.f32.mrf.mxu0
    %v1614 = vadd.f32 %v1600, %v1613
    %v1615 = vpop.f32.mrf.mxu0
    %v1616 = vadd.f32 %v1602, %v1615
    %1617 = vdwg.mxu0
    %1618 = vmatpush.bf16.msra.mxu0 %v1204
    %1619 = vmatpush.bf16.msra.mxu0 %v1201
    %1620 = vmatpush.bf16.msra.mxu0 %v1198
    %1621 = vmatpush.bf16.msra.mxu0 %v1195
    %1622 = vmatpush.bf16.msra.mxu0 %v1192
    %1623 = vmatpush.bf16.msra.mxu0 %v1189
    %1624 = vmatpush.bf16.msra.mxu0 %v1186
    %1625 = vmatpush.bf16.msra.mxu0 %v1183
    %1626 = vmatmul.bf16.gmra.mxu0 %v132
    %v1627 = vpop.f32.mrf.mxu0
    %v1628 = vadd.f32 %v1614, %v1627
    %v1629 = vpop.f32.mrf.mxu0
    %v1630 = vadd.f32 %v1616, %v1629
    %1631 = vdwg.mxu0
    %1632 = vmatpush.bf16.msra.mxu0 %v1228
    %1633 = vmatpush.bf16.msra.mxu0 %v1225
    %1634 = vmatpush.bf16.msra.mxu0 %v1222
    %1635 = vmatpush.bf16.msra.mxu0 %v1219
    %1636 = vmatpush.bf16.msra.mxu0 %v1216
    %1637 = vmatpush.bf16.msra.mxu0 %v1213
    %1638 = vmatpush.bf16.msra.mxu0 %v1210
    %1639 = vmatpush.bf16.msra.mxu0 %v1207
    %1640 = vmatmul.bf16.gmra.mxu0 %v133
    %v1641 = vpop.f32.mrf.mxu0
    %v1642 = vadd.f32 %v1628, %v1641
    %v1643 = vpop.f32.mrf.mxu0
    %v1644 = vadd.f32 %v1630, %v1643
    %1645 = vdwg.mxu0
    %1646 = vmatpush.bf16.msra.mxu0 %v1061
    %1647 = vmatpush.bf16.msra.mxu0 %v1058
    %1648 = vmatpush.bf16.msra.mxu0 %v1055
    %1649 = vmatpush.bf16.msra.mxu0 %v1052
    %1650 = vmatpush.bf16.msra.mxu0 %v1049
    %1651 = vmatpush.bf16.msra.mxu0 %v1046
    %1652 = vmatpush.bf16.msra.mxu0 %v1043
    %1653 = vmatpush.bf16.msra.mxu0 %v1040
    %1654 = vmatmul.bf16.gmra.mxu0 %v126
    %v1655 = vpop.f32.mrf.mxu0
    %v1656 = vadd.f32 %v394, %v1655
    %v1657 = vpop.f32.mrf.mxu0
    %v1658 = vadd.f32 %v394, %v1657
    %1659 = vdwg.mxu0
    %1660 = vmatpush.bf16.msra.mxu0 %v1085
    %1661 = vmatpush.bf16.msra.mxu0 %v1082
    %1662 = vmatpush.bf16.msra.mxu0 %v1079
    %1663 = vmatpush.bf16.msra.mxu0 %v1076
    %1664 = vmatpush.bf16.msra.mxu0 %v1073
    %1665 = vmatpush.bf16.msra.mxu0 %v1070
    %1666 = vmatpush.bf16.msra.mxu0 %v1067
    %1667 = vmatpush.bf16.msra.mxu0 %v1064
    %1668 = vmatmul.bf16.gmra.mxu0 %v127
    %v1669 = vpop.f32.mrf.mxu0
    %v1670 = vadd.f32 %v1656, %v1669
    %v1671 = vpop.f32.mrf.mxu0
    %v1672 = vadd.f32 %v1658, %v1671
    %1673 = vdwg.mxu0
    %1674 = vmatpush.bf16.msra.mxu0 %v1109
    %1675 = vmatpush.bf16.msra.mxu0 %v1106
    %1676 = vmatpush.bf16.msra.mxu0 %v1103
    %1677 = vmatpush.bf16.msra.mxu0 %v1100
    %1678 = vmatpush.bf16.msra.mxu0 %v1097
    %1679 = vmatpush.bf16.msra.mxu0 %v1094
    %1680 = vmatpush.bf16.msra.mxu0 %v1091
    %1681 = vmatpush.bf16.msra.mxu0 %v1088
    %1682 = vmatmul.bf16.gmra.mxu0 %v128
    %v1683 = vpop.f32.mrf.mxu0
    %v1684 = vadd.f32 %v1670, %v1683
    %v1685 = vpop.f32.mrf.mxu0
    %v1686 = vadd.f32 %v1672, %v1685
    %1687 = vdwg.mxu0
    %1688 = vmatpush.bf16.msra.mxu0 %v1133
    %1689 = vmatpush.bf16.msra.mxu0 %v1130
    %1690 = vmatpush.bf16.msra.mxu0 %v1127
    %1691 = vmatpush.bf16.msra.mxu0 %v1124
    %1692 = vmatpush.bf16.msra.mxu0 %v1121
    %1693 = vmatpush.bf16.msra.mxu0 %v1118
    %1694 = vmatpush.bf16.msra.mxu0 %v1115
    %1695 = vmatpush.bf16.msra.mxu0 %v1112
    %1696 = vmatmul.bf16.gmra.mxu0 %v129
    %v1697 = vpop.f32.mrf.mxu0
    %v1698 = vadd.f32 %v1684, %v1697
    %v1699 = vpop.f32.mrf.mxu0
    %v1700 = vadd.f32 %v1686, %v1699
    %1701 = vdwg.mxu0
    %1702 = vmatpush.bf16.msra.mxu0 %v1157
    %1703 = vmatpush.bf16.msra.mxu0 %v1154
    %1704 = vmatpush.bf16.msra.mxu0 %v1151
    %1705 = vmatpush.bf16.msra.mxu0 %v1148
    %1706 = vmatpush.bf16.msra.mxu0 %v1145
    %1707 = vmatpush.bf16.msra.mxu0 %v1142
    %1708 = vmatpush.bf16.msra.mxu0 %v1139
    %1709 = vmatpush.bf16.msra.mxu0 %v1136
    %1710 = vmatmul.bf16.gmra.mxu0 %v130
    %v1711 = vpop.f32.mrf.mxu0
    %v1712 = vadd.f32 %v1698, %v1711
    %v1713 = vpop.f32.mrf.mxu0
    %v1714 = vadd.f32 %v1700, %v1713
    %1715 = vdwg.mxu0
    %1716 = vmatpush.bf16.msra.mxu0 %v1181
    %1717 = vmatpush.bf16.msra.mxu0 %v1178
    %1718 = vmatpush.bf16.msra.mxu0 %v1175
    %1719 = vmatpush.bf16.msra.mxu0 %v1172
    %1720 = vmatpush.bf16.msra.mxu0 %v1169
    %1721 = vmatpush.bf16.msra.mxu0 %v1166
    %1722 = vmatpush.bf16.msra.mxu0 %v1163
    %1723 = vmatpush.bf16.msra.mxu0 %v1160
    %1724 = vmatmul.bf16.gmra.mxu0 %v131
    %v1725 = vpop.f32.mrf.mxu0
    %v1726 = vadd.f32 %v1712, %v1725
    %v1727 = vpop.f32.mrf.mxu0
    %v1728 = vadd.f32 %v1714, %v1727
    %1729 = vdwg.mxu0
    %1730 = vmatpush.bf16.msra.mxu0 %v1205
    %1731 = vmatpush.bf16.msra.mxu0 %v1202
    %1732 = vmatpush.bf16.msra.mxu0 %v1199
    %1733 = vmatpush.bf16.msra.mxu0 %v1196
    %1734 = vmatpush.bf16.msra.mxu0 %v1193
    %1735 = vmatpush.bf16.msra.mxu0 %v1190
    %1736 = vmatpush.bf16.msra.mxu0 %v1187
    %1737 = vmatpush.bf16.msra.mxu0 %v1184
    %1738 = vmatmul.bf16.gmra.mxu0 %v132
    %v1739 = vpop.f32.mrf.mxu0
    %v1740 = vadd.f32 %v1726, %v1739
    %v1741 = vpop.f32.mrf.mxu0
    %v1742 = vadd.f32 %v1728, %v1741
    %1743 = vdwg.mxu0
    %1744 = vmatpush.bf16.msra.mxu0 %v1229
    %1745 = vmatpush.bf16.msra.mxu0 %v1226
    %1746 = vmatpush.bf16.msra.mxu0 %v1223
    %1747 = vmatpush.bf16.msra.mxu0 %v1220
    %1748 = vmatpush.bf16.msra.mxu0 %v1217
    %1749 = vmatpush.bf16.msra.mxu0 %v1214
    %1750 = vmatpush.bf16.msra.mxu0 %v1211
    %1751 = vmatpush.bf16.msra.mxu0 %v1208
    %1752 = vmatmul.bf16.gmra.mxu0 %v133
    %v1753 = vpop.f32.mrf.mxu0
    %v1754 = vadd.f32 %v1740, %v1753
    %v1755 = vpop.f32.mrf.mxu0
    %v1756 = vadd.f32 %v1742, %v1755
    %1757 = vdwg.mxu0
    %v1758 = vtanh.pop %v1530
    %v1759 = vtanh.pop %v1642
    %v1760 = vtanh.pop %v1754
    %v1761 = vtanh.pop %v1532
    %v1762 = vtanh.pop %v1644
    %v1763 = vtanh.pop %v1756
    %v1764 = vpack.c.bf16 %v1761, %v1758
    %v1765 = vpack.c.bf16 %v1762, %v1759
    %v1766 = vpack.c.bf16 %v1763, %v1760
    %v1767 = vld [vmem:[%s3] sm:$0xf]
    %v1768 = vld [vmem:[%s3 + $0x4] sm:$0xf]
    %v1769 = vld [vmem:[%s3 + $0x8] sm:$0xf]
    %v1770 = vld [vmem:[%s3 + $0xc] sm:$0xf]
    %v1771 = vld [vmem:[%s3 + $0x10] sm:$0xf]
    %v1772 = vld [vmem:[%s3 + $0x14] sm:$0xf]
    %v1773 = vld [vmem:[%s3 + $0x18] sm:$0xf]
    %v1774 = vld [vmem:[%s3 + $0x1c] sm:$0xf]
    %v1775 = vld [vmem:[%s3 + $0x20] sm:$0xf]
    %v1776 = vld [vmem:[%s3 + $0x24] sm:$0xf]
    %v1777 = vld [vmem:[%s3 + $0x28] sm:$0xf]
    %v1778 = vld [vmem:[%s3 + $0x2c] sm:$0xf]
    %v1779 = vld [vmem:[%s3 + $0x30] sm:$0xf]
    %v1780 = vld [vmem:[%s3 + $0x34] sm:$0xf]
    %v1781 = vld [vmem:[%s3 + $0x38] sm:$0xf]
    %v1782 = vld [vmem:[%s3 + $0x3c] sm:$0xf]
    %v1783 = vld [vmem:[%s3 + $0x40] sm:$0xf]
    %v1784 = vld [vmem:[%s3 + $0x44] sm:$0xf]
    %v1785 = vld [vmem:[%s3 + $0x48] sm:$0xf]
    %v1786 = vld [vmem:[%s3 + $0x4c] sm:$0xf]
    %v1787 = vld [vmem:[%s3 + $0x50] sm:$0xf]
    %v1788 = vld [vmem:[%s3 + $0x54] sm:$0xf]
    %v1789 = vld [vmem:[%s3 + $0x58] sm:$0xf]
    %v1790 = vld [vmem:[%s3 + $0x5c] sm:$0xf]
    %v1791 = vld [vmem:[%s3 + $0x60] sm:$0xf]
    %v1792 = vld [vmem:[%s3 + $0x64] sm:$0xf]
    %v1793 = vld [vmem:[%s3 + $0x68] sm:$0xf]
    %v1794 = vld [vmem:[%s3 + $0x6c] sm:$0xf]
    %v1795 = vld [vmem:[%s3 + $0x70] sm:$0xf]
    %v1796 = vld [vmem:[%s3 + $0x74] sm:$0xf]
    %v1797 = vld [vmem:[%s3 + $0x78] sm:$0xf]
    %v1798 = vld [vmem:[%s3 + $0x7c] sm:$0xf]
    %v1799 = vld [vmem:[%s3 + $0x80] sm:$0xf]
    %v1800 = vld [vmem:[%s3 + $0x84] sm:$0xf]
    %v1801 = vld [vmem:[%s3 + $0x88] sm:$0xf]
    %v1802 = vld [vmem:[%s3 + $0x8c] sm:$0xf]
    %v1803 = vld [vmem:[%s3 + $0x90] sm:$0xf]
    %v1804 = vld [vmem:[%s3 + $0x94] sm:$0xf]
    %v1805 = vld [vmem:[%s3 + $0x98] sm:$0xf]
    %v1806 = vld [vmem:[%s3 + $0x9c] sm:$0xf]
    %v1807 = vld [vmem:[%s3 + $0xa0] sm:$0xf]
    %v1808 = vld [vmem:[%s3 + $0xa4] sm:$0xf]
    %v1809 = vld [vmem:[%s3 + $0xa8] sm:$0xf]
    %v1810 = vld [vmem:[%s3 + $0xac] sm:$0xf]
    %v1811 = vld [vmem:[%s3 + $0xb0] sm:$0xf]
    %v1812 = vld [vmem:[%s3 + $0xb4] sm:$0xf]
    %v1813 = vld [vmem:[%s3 + $0xb8] sm:$0xf]
    %v1814 = vld [vmem:[%s3 + $0xbc] sm:$0xf]
    %v1815 = vld [vmem:[#allocation5] sm:$0x1]
    %v1817 = vperm.slane %v1815, 0
    %v1867 = vunpack.c.l.b16 %v1767
    %v1868 = vunpack.c.l.b16 %v1768
    %v1869 = vunpack.c.l.b16 %v1769
    %v1870 = vunpack.c.l.b16 %v1770
    %v1871 = vunpack.c.l.b16 %v1771
    %v1872 = vunpack.c.l.b16 %v1772
    %v1873 = vunpack.c.l.b16 %v1773
    %v1874 = vunpack.c.l.b16 %v1774
    %v1875 = vunpack.c.l.b16 %v1775
    %v1876 = vunpack.c.l.b16 %v1776
    %v1877 = vunpack.c.l.b16 %v1777
    %v1878 = vunpack.c.l.b16 %v1778
    %v1879 = vunpack.c.l.b16 %v1779
    %v1880 = vunpack.c.l.b16 %v1780
    %v1881 = vunpack.c.l.b16 %v1781
    %v1882 = vunpack.c.l.b16 %v1782
    %v1883 = vunpack.c.l.b16 %v1783
    %v1884 = vunpack.c.l.b16 %v1784
    %v1885 = vunpack.c.l.b16 %v1785
    %v1886 = vunpack.c.l.b16 %v1786
    %v1887 = vunpack.c.l.b16 %v1787
    %v1888 = vunpack.c.l.b16 %v1788
    %v1889 = vunpack.c.l.b16 %v1789
    %v1890 = vunpack.c.l.b16 %v1790
    %v1891 = vunpack.c.l.b16 %v1791
    %v1892 = vunpack.c.l.b16 %v1792
    %v1893 = vunpack.c.l.b16 %v1793
    %v1894 = vunpack.c.l.b16 %v1794
    %v1895 = vunpack.c.l.b16 %v1795
    %v1896 = vunpack.c.l.b16 %v1796
    %v1897 = vunpack.c.l.b16 %v1797
    %v1898 = vunpack.c.l.b16 %v1798
    %v1899 = vunpack.c.l.b16 %v1799
    %v1900 = vunpack.c.l.b16 %v1800
    %v1901 = vunpack.c.l.b16 %v1801
    %v1902 = vunpack.c.l.b16 %v1802
    %v1903 = vunpack.c.l.b16 %v1803
    %v1904 = vunpack.c.l.b16 %v1804
    %v1905 = vunpack.c.l.b16 %v1805
    %v1906 = vunpack.c.l.b16 %v1806
    %v1907 = vunpack.c.l.b16 %v1807
    %v1908 = vunpack.c.l.b16 %v1808
    %v1909 = vunpack.c.l.b16 %v1809
    %v1910 = vunpack.c.l.b16 %v1810
    %v1911 = vunpack.c.l.b16 %v1811
    %v1912 = vunpack.c.l.b16 %v1812
    %v1913 = vunpack.c.l.b16 %v1813
    %v1914 = vunpack.c.l.b16 %v1814
    %v1915 = vpack.c.b16 %v1868, %v1867
    %v1916 = vpack.c.b16 %v1870, %v1869
    %v1917 = vpack.c.b16 %v1872, %v1871
    %v1918 = vpack.c.b16 %v1874, %v1873
    %v1919 = vpack.c.b16 %v1876, %v1875
    %v1920 = vpack.c.b16 %v1878, %v1877
    %v1921 = vpack.c.b16 %v1880, %v1879
    %v1922 = vpack.c.b16 %v1882, %v1881
    %v1923 = vpack.c.b16 %v1884, %v1883
    %v1924 = vpack.c.b16 %v1886, %v1885
    %v1925 = vpack.c.b16 %v1888, %v1887
    %v1926 = vpack.c.b16 %v1890, %v1889
    %v1927 = vpack.c.b16 %v1892, %v1891
    %v1928 = vpack.c.b16 %v1894, %v1893
    %v1929 = vpack.c.b16 %v1896, %v1895
    %v1930 = vpack.c.b16 %v1898, %v1897
    %v1931 = vpack.c.b16 %v1900, %v1899
    %v1932 = vpack.c.b16 %v1902, %v1901
    %v1933 = vpack.c.b16 %v1904, %v1903
    %v1934 = vpack.c.b16 %v1906, %v1905
    %v1935 = vpack.c.b16 %v1908, %v1907
    %v1936 = vpack.c.b16 %v1910, %v1909
    %v1937 = vpack.c.b16 %v1912, %v1911
    %v1938 = vpack.c.b16 %v1914, %v1913
    %1963 = vmatpush.bf16.msra.mxu0 %v1922
    %1964 = vmatpush.bf16.msra.mxu0 %v1921
    %1965 = vmatpush.bf16.msra.mxu0 %v1920
    %1966 = vmatpush.bf16.msra.mxu0 %v1919
    %1967 = vmatpush.bf16.msra.mxu0 %v1918
    %1968 = vmatpush.bf16.msra.mxu0 %v1917
    %1969 = vmatpush.bf16.msra.mxu0 %v1916
    %1970 = vmatpush.bf16.msra.mxu0 %v1915
    %1971 = vmatmul.bf16.gmra.mxu0 %v1764
    %v1972 = vpop.f32.mrf.mxu0
    %v1973 = vadd.f32 %v1817, %v1972
    %v1974 = vpop.f32.mrf.mxu0
    %v1975 = vadd.f32 %v1817, %v1974
    %1976 = vdwg.mxu0
    %1977 = vmatpush.bf16.msra.mxu0 %v1930
    %1978 = vmatpush.bf16.msra.mxu0 %v1929
    %1979 = vmatpush.bf16.msra.mxu0 %v1928
    %1980 = vmatpush.bf16.msra.mxu0 %v1927
    %1981 = vmatpush.bf16.msra.mxu0 %v1926
    %1982 = vmatpush.bf16.msra.mxu0 %v1925
    %1983 = vmatpush.bf16.msra.mxu0 %v1924
    %1984 = vmatpush.bf16.msra.mxu0 %v1923
    %1985 = vmatmul.bf16.gmra.mxu0 %v1765
    %v1986 = vpop.f32.mrf.mxu0
    %v1987 = vadd.f32 %v1973, %v1986
    %v1988 = vpop.f32.mrf.mxu0
    %v1989 = vadd.f32 %v1975, %v1988
    %1990 = vdwg.mxu0
    %1991 = vmatpush.bf16.msra.mxu0 %v1938
    %1992 = vmatpush.bf16.msra.mxu0 %v1937
    %1993 = vmatpush.bf16.msra.mxu0 %v1936
    %1994 = vmatpush.bf16.msra.mxu0 %v1935
    %1995 = vmatpush.bf16.msra.mxu0 %v1934
    %1996 = vmatpush.bf16.msra.mxu0 %v1933
    %1997 = vmatpush.bf16.msra.mxu0 %v1932
    %1998 = vmatpush.bf16.msra.mxu0 %v1931
    %1999 = vmatmul.bf16.gmra.mxu0 %v1766
    %v2000 = vpop.f32.mrf.mxu0
    %v2001 = vadd.f32 %v1987, %v2000
    %v2002 = vpop.f32.mrf.mxu0
    %v2003 = vadd.f32 %v1989, %v2002
    %2004 = vdwg.mxu0
    %2005 = vst [vmem:[#allocation11] sm:$0xff] %v2001
    %2006 = vst [vmem:[#allocation11 + $0x8] sm:$0xff] %v2003
    %v2007 = vpack.c.bf16 %v2003, %v2001
    %v2008 = vld [vmem:[#allocation7] sm:$0xff]
    %v2009 = vld [vmem:[#allocation7 + $0x8] sm:$0xf]
    %v2010 = vld [vmem:[#allocation7 + $0xc] sm:$0xff]
    %v2011 = vld [vmem:[#allocation7 + $0x14] sm:$0xf]
    %v2012 = vld [vmem:[#allocation7 + $0x18] sm:$0xff]
    %v2013 = vld [vmem:[#allocation7 + $0x20] sm:$0xf]
    %v2014 = vld [vmem:[#allocation7 + $0x24] sm:$0xff]
    %v2015 = vld [vmem:[#allocation7 + $0x2c] sm:$0xf]
    %v2016 = vld [vmem:[#allocation7 + $0x30] sm:$0xff]
    %v2017 = vld [vmem:[#allocation7 + $0x38] sm:$0xf]
    %v2018 = vld [vmem:[#allocation7 + $0x3c] sm:$0xff]
    %v2019 = vld [vmem:[#allocation7 + $0x44] sm:$0xf]
    %v2020 = vld [vmem:[#allocation7 + $0x48] sm:$0xff]
    %v2021 = vld [vmem:[#allocation7 + $0x50] sm:$0xf]
    %v2022 = vld [vmem:[#allocation7 + $0x54] sm:$0xff]
    %v2023 = vld [vmem:[#allocation7 + $0x5c] sm:$0xf]
    %v2024 = vld [vmem:[#allocation7 + $0x60] sm:$0xff]
    %v2025 = vld [vmem:[#allocation7 + $0x68] sm:$0xf]
    %v2026 = vld [vmem:[#allocation7 + $0x6c] sm:$0xff]
    %v2027 = vld [vmem:[#allocation7 + $0x74] sm:$0xf]
    %v2028 = vld [vmem:[#allocation7 + $0x78] sm:$0xff]
    %v2029 = vld [vmem:[#allocation7 + $0x80] sm:$0xf]
    %v2030 = vld [vmem:[#allocation7 + $0x84] sm:$0xff]
    %v2031 = vld [vmem:[#allocation7 + $0x8c] sm:$0xf]
    %v2032 = vld [vmem:[#allocation7 + $0x90] sm:$0xff]
    %v2033 = vld [vmem:[#allocation7 + $0x98] sm:$0xf]
    %v2034 = vld [vmem:[#allocation7 + $0x9c] sm:$0xff]
    %v2035 = vld [vmem:[#allocation7 + $0xa4] sm:$0xf]
    %v2036 = vld [vmem:[#allocation7 + $0xa8] sm:$0xff]
    %v2037 = vld [vmem:[#allocation7 + $0xb0] sm:$0xf]
    %v2038 = vld [vmem:[#allocation7 + $0xb4] sm:$0xff]
    %v2039 = vld [vmem:[#allocation7 + $0xbc] sm:$0xf]
    %v2040 = vld [vmem:[%s6] sm:$0x7]
    %v2042 = vperm.slane %v2040, 0
    %v2043 = vperm.slane %v2040, 1
    %v2044 = vperm.slane %v2040, 2
    %v2080 = vunpack.c.l.b16 %v2008
    %v2081 = vunpack.c.h.b16 %v2008
    %v2082 = vunpack.c.l.b16 %v2009
    %v2083 = vunpack.c.l.b16 %v2010
    %v2084 = vunpack.c.h.b16 %v2010
    %v2085 = vunpack.c.l.b16 %v2011
    %v2086 = vunpack.c.l.b16 %v2012
    %v2087 = vunpack.c.h.b16 %v2012
    %v2088 = vunpack.c.l.b16 %v2013
    %v2089 = vunpack.c.l.b16 %v2014
    %v2090 = vunpack.c.h.b16 %v2014
    %v2091 = vunpack.c.l.b16 %v2015
    %v2092 = vunpack.c.l.b16 %v2016
    %v2093 = vunpack.c.h.b16 %v2016
    %v2094 = vunpack.c.l.b16 %v2017
    %v2095 = vunpack.c.l.b16 %v2018
    %v2096 = vunpack.c.h.b16 %v2018
    %v2097 = vunpack.c.l.b16 %v2019
    %v2098 = vunpack.c.l.b16 %v2020
    %v2099 = vunpack.c.h.b16 %v2020
    %v2100 = vunpack.c.l.b16 %v2021
    %v2101 = vunpack.c.l.b16 %v2022
    %v2102 = vunpack.c.h.b16 %v2022
    %v2103 = vunpack.c.l.b16 %v2023
    %v2104 = vunpack.c.l.b16 %v2024
    %v2105 = vunpack.c.h.b16 %v2024
    %v2106 = vunpack.c.l.b16 %v2025
    %v2107 = vunpack.c.l.b16 %v2026
    %v2108 = vunpack.c.h.b16 %v2026
    %v2109 = vunpack.c.l.b16 %v2027
    %v2110 = vunpack.c.l.b16 %v2028
    %v2111 = vunpack.c.h.b16 %v2028
    %v2112 = vunpack.c.l.b16 %v2029
    %v2113 = vunpack.c.l.b16 %v2030
    %v2114 = vunpack.c.h.b16 %v2030
    %v2115 = vunpack.c.l.b16 %v2031
    %v2116 = vunpack.c.l.b16 %v2032
    %v2117 = vunpack.c.h.b16 %v2032
    %v2118 = vunpack.c.l.b16 %v2033
    %v2119 = vunpack.c.l.b16 %v2034
    %v2120 = vunpack.c.h.b16 %v2034
    %v2121 = vunpack.c.l.b16 %v2035
    %v2122 = vunpack.c.l.b16 %v2036
    %v2123 = vunpack.c.h.b16 %v2036
    %v2124 = vunpack.c.l.b16 %v2037
    %v2125 = vunpack.c.l.b16 %v2038
    %v2126 = vunpack.c.h.b16 %v2038
    %v2127 = vunpack.c.l.b16 %v2039
    %v2128 = vpack.c.b16 %v2083, %v2080
    %v2129 = vpack.c.b16 %v2084, %v2081
    %v2130 = vpack.c.b16 %v2085, %v2082
    %v2131 = vpack.c.b16 %v2089, %v2086
    %v2132 = vpack.c.b16 %v2090, %v2087
    %v2133 = vpack.c.b16 %v2091, %v2088
    %v2134 = vpack.c.b16 %v2095, %v2092
    %v2135 = vpack.c.b16 %v2096, %v2093
    %v2136 = vpack.c.b16 %v2097, %v2094
    %v2137 = vpack.c.b16 %v2101, %v2098
    %v2138 = vpack.c.b16 %v2102, %v2099
    %v2139 = vpack.c.b16 %v2103, %v2100
    %v2140 = vpack.c.b16 %v2107, %v2104
    %v2141 = vpack.c.b16 %v2108, %v2105
    %v2142 = vpack.c.b16 %v2109, %v2106
    %v2143 = vpack.c.b16 %v2113, %v2110
    %v2144 = vpack.c.b16 %v2114, %v2111
    %v2145 = vpack.c.b16 %v2115, %v2112
    %v2146 = vpack.c.b16 %v2119, %v2116
    %v2147 = vpack.c.b16 %v2120, %v2117
    %v2148 = vpack.c.b16 %v2121, %v2118
    %v2149 = vpack.c.b16 %v2125, %v2122
    %v2150 = vpack.c.b16 %v2126, %v2123
    %v2151 = vpack.c.b16 %v2127, %v2124
    %2176 = vmatpush.bf16.msra.mxu0 %v2149
    %2177 = vmatpush.bf16.msra.mxu0 %v2146
    %2178 = vmatpush.bf16.msra.mxu0 %v2143
    %2179 = vmatpush.bf16.msra.mxu0 %v2140
    %2180 = vmatpush.bf16.msra.mxu0 %v2137
    %2181 = vmatpush.bf16.msra.mxu0 %v2134
    %2182 = vmatpush.bf16.msra.mxu0 %v2131
    %2183 = vmatpush.bf16.msra.mxu0 %v2128
    %2184 = vmatmul.bf16.gmra.mxu0 %v2007
    %v2185 = vpop.f32.mrf.mxu0
    %v2186 = vadd.f32 %v2042, %v2185
    %v2187 = vpop.f32.mrf.mxu0
    %v2188 = vadd.f32 %v2042, %v2187
    %2189 = vdwg.mxu0
    %2190 = vmatpush.bf16.msra.mxu0 %v2150
    %2191 = vmatpush.bf16.msra.mxu0 %v2147
    %2192 = vmatpush.bf16.msra.mxu0 %v2144
    %2193 = vmatpush.bf16.msra.mxu0 %v2141
    %2194 = vmatpush.bf16.msra.mxu0 %v2138
    %2195 = vmatpush.bf16.msra.mxu0 %v2135
    %2196 = vmatpush.bf16.msra.mxu0 %v2132
    %2197 = vmatpush.bf16.msra.mxu0 %v2129
    %2198 = vmatmul.bf16.gmra.mxu0 %v2007
    %v2199 = vpop.f32.mrf.mxu0
    %v2200 = vadd.f32 %v2043, %v2199
    %v2201 = vpop.f32.mrf.mxu0
    %v2202 = vadd.f32 %v2043, %v2201
    %2203 = vdwg.mxu0
    %2204 = vmatpush.bf16.msra.mxu0 %v2151
    %2205 = vmatpush.bf16.msra.mxu0 %v2148
    %2206 = vmatpush.bf16.msra.mxu0 %v2145
    %2207 = vmatpush.bf16.msra.mxu0 %v2142
    %2208 = vmatpush.bf16.msra.mxu0 %v2139
    %2209 = vmatpush.bf16.msra.mxu0 %v2136
    %2210 = vmatpush.bf16.msra.mxu0 %v2133
    %2211 = vmatpush.bf16.msra.mxu0 %v2130
    %2212 = vmatmul.bf16.gmra.mxu0 %v2007
    %v2213 = vpop.f32.mrf.mxu0
    %v2214 = vadd.f32 %v2044, %v2213
    %v2215 = vpop.f32.mrf.mxu0
    %v2216 = vadd.f32 %v2044, %v2215
    %2217 = vdwg.mxu0
    %v2218 = vtanh.pop %v2186
    %v2219 = vtanh.pop %v2200
    %v2220 = vtanh.pop %v2214
    %v2221 = vtanh.pop %v2188
    %v2222 = vtanh.pop %v2202
    %v2223 = vtanh.pop %v2216
    %v2224 = vpack.c.bf16 %v2221, %v2218
    %v2225 = vpack.c.bf16 %v2222, %v2219
    %v2226 = vpack.c.bf16 %v2223, %v2220
    %v2227 = vld [vmem:[#allocation8] sm:$0xff]
    %v2228 = vld [vmem:[#allocation8 + $0x8] sm:$0xff]
    %v2229 = vld [vmem:[#allocation8 + $0x10] sm:$0xff]
    %v2230 = vld [vmem:[#allocation8 + $0x18] sm:$0xff]
    %v2231 = vld [vmem:[#allocation8 + $0x20] sm:$0xff]
    %v2232 = vld [vmem:[#allocation8 + $0x28] sm:$0xff]
    %v2233 = vld [vmem:[#allocation8 + $0x30] sm:$0xff]
    %v2234 = vld [vmem:[#allocation8 + $0x38] sm:$0xff]
    %v2235 = vld [vmem:[#allocation8 + $0x40] sm:$0xff]
    %v2236 = vld [vmem:[#allocation8 + $0x48] sm:$0xff]
    %v2237 = vld [vmem:[#allocation8 + $0x50] sm:$0xff]
    %v2238 = vld [vmem:[#allocation8 + $0x58] sm:$0xff]
    %v2239 = vld [vmem:[#allocation8 + $0x60] sm:$0xff]
    %v2240 = vld [vmem:[#allocation8 + $0x68] sm:$0xff]
    %v2241 = vld [vmem:[#allocation8 + $0x70] sm:$0xff]
    %v2242 = vld [vmem:[#allocation8 + $0x78] sm:$0xff]
    %v2243 = vld [vmem:[#allocation8 + $0x80] sm:$0xff]
    %v2244 = vld [vmem:[#allocation8 + $0x88] sm:$0xff]
    %v2245 = vld [vmem:[#allocation8 + $0x90] sm:$0xff]
    %v2246 = vld [vmem:[#allocation8 + $0x98] sm:$0xff]
    %v2247 = vld [vmem:[#allocation8 + $0xa0] sm:$0xff]
    %v2248 = vld [vmem:[#allocation8 + $0xa8] sm:$0xff]
    %v2249 = vld [vmem:[#allocation8 + $0xb0] sm:$0xff]
    %v2250 = vld [vmem:[#allocation8 + $0xb8] sm:$0xff]
    %v2251 = vld [vmem:[#allocation8 + $0xc0] sm:$0xff]
    %v2252 = vld [vmem:[#allocation8 + $0xc8] sm:$0xff]
    %v2253 = vld [vmem:[#allocation8 + $0xd0] sm:$0xff]
    %v2254 = vld [vmem:[#allocation8 + $0xd8] sm:$0xff]
    %v2255 = vld [vmem:[#allocation8 + $0xe0] sm:$0xff]
    %v2256 = vld [vmem:[#allocation8 + $0xe8] sm:$0xff]
    %v2257 = vld [vmem:[#allocation8 + $0xf0] sm:$0xff]
    %v2258 = vld [vmem:[#allocation8 + $0xf8] sm:$0xff]
    %v2259 = vld [vmem:[#allocation8 + $0x100] sm:$0xff]
    %v2260 = vld [vmem:[#allocation8 + $0x108] sm:$0xff]
    %v2261 = vld [vmem:[#allocation8 + $0x110] sm:$0xff]
    %v2262 = vld [vmem:[#allocation8 + $0x118] sm:$0xff]
    %v2263 = vld [vmem:[#allocation8 + $0x120] sm:$0xff]
    %v2264 = vld [vmem:[#allocation8 + $0x128] sm:$0xff]
    %v2265 = vld [vmem:[#allocation8 + $0x130] sm:$0xff]
    %v2266 = vld [vmem:[#allocation8 + $0x138] sm:$0xff]
    %v2267 = vld [vmem:[#allocation8 + $0x140] sm:$0xff]
    %v2268 = vld [vmem:[#allocation8 + $0x148] sm:$0xff]
    %v2269 = vld [vmem:[#allocation8 + $0x150] sm:$0xff]
    %v2270 = vld [vmem:[#allocation8 + $0x158] sm:$0xff]
    %v2271 = vld [vmem:[#allocation8 + $0x160] sm:$0xff]
    %v2272 = vld [vmem:[#allocation8 + $0x168] sm:$0xff]
    %v2273 = vld [vmem:[#allocation8 + $0x170] sm:$0xff]
    %v2274 = vld [vmem:[#allocation8 + $0x178] sm:$0xff]
    %v2275 = vld [vmem:[#allocation8 + $0x180] sm:$0xff]
    %v2276 = vld [vmem:[#allocation8 + $0x188] sm:$0xff]
    %v2277 = vld [vmem:[#allocation8 + $0x190] sm:$0xff]
    %v2278 = vld [vmem:[#allocation8 + $0x198] sm:$0xff]
    %v2279 = vld [vmem:[#allocation8 + $0x1a0] sm:$0xff]
    %v2280 = vld [vmem:[#allocation8 + $0x1a8] sm:$0xff]
    %v2281 = vld [vmem:[#allocation8 + $0x1b0] sm:$0xff]
    %v2282 = vld [vmem:[#allocation8 + $0x1b8] sm:$0xff]
    %v2283 = vld [vmem:[#allocation8 + $0x1c0] sm:$0xff]
    %v2284 = vld [vmem:[#allocation8 + $0x1c8] sm:$0xff]
    %v2285 = vld [vmem:[#allocation8 + $0x1d0] sm:$0xff]
    %v2286 = vld [vmem:[#allocation8 + $0x1d8] sm:$0xff]
    %v2287 = vld [vmem:[#allocation8 + $0x1e0] sm:$0xff]
    %v2288 = vld [vmem:[#allocation8 + $0x1e8] sm:$0xff]
    %v2289 = vld [vmem:[#allocation8 + $0x1f0] sm:$0xff]
    %v2290 = vld [vmem:[#allocation8 + $0x1f8] sm:$0xff]
    %v2291 = vld [vmem:[#allocation8 + $0x200] sm:$0xff]
    %v2292 = vld [vmem:[#allocation8 + $0x208] sm:$0xff]
    %v2293 = vld [vmem:[#allocation8 + $0x210] sm:$0xff]
    %v2294 = vld [vmem:[#allocation8 + $0x218] sm:$0xff]
    %v2295 = vld [vmem:[#allocation8 + $0x220] sm:$0xff]
    %v2296 = vld [vmem:[#allocation8 + $0x228] sm:$0xff]
    %v2297 = vld [vmem:[#allocation8 + $0x230] sm:$0xff]
    %v2298 = vld [vmem:[#allocation8 + $0x238] sm:$0xff]
    %v2299 = vld [vmem:[#allocation8 + $0x240] sm:$0xff]
    %v2300 = vld [vmem:[#allocation8 + $0x248] sm:$0xff]
    %v2301 = vld [vmem:[#allocation8 + $0x250] sm:$0xff]
    %v2302 = vld [vmem:[#allocation8 + $0x258] sm:$0xff]
    %v2303 = vld [vmem:[#allocation8 + $0x260] sm:$0xff]
    %v2304 = vld [vmem:[#allocation8 + $0x268] sm:$0xff]
    %v2305 = vld [vmem:[#allocation8 + $0x270] sm:$0xff]
    %v2306 = vld [vmem:[#allocation8 + $0x278] sm:$0xff]
    %v2307 = vld [vmem:[#allocation8 + $0x280] sm:$0xff]
    %v2308 = vld [vmem:[#allocation8 + $0x288] sm:$0xff]
    %v2309 = vld [vmem:[#allocation8 + $0x290] sm:$0xff]
    %v2310 = vld [vmem:[#allocation8 + $0x298] sm:$0xff]
    %v2311 = vld [vmem:[#allocation8 + $0x2a0] sm:$0xff]
    %v2312 = vld [vmem:[#allocation8 + $0x2a8] sm:$0xff]
    %v2313 = vld [vmem:[#allocation8 + $0x2b0] sm:$0xff]
    %v2314 = vld [vmem:[#allocation8 + $0x2b8] sm:$0xff]
    %v2315 = vld [vmem:[#allocation8 + $0x2c0] sm:$0xff]
    %v2316 = vld [vmem:[#allocation8 + $0x2c8] sm:$0xff]
    %v2317 = vld [vmem:[#allocation8 + $0x2d0] sm:$0xff]
    %v2318 = vld [vmem:[#allocation8 + $0x2d8] sm:$0xff]
    %v2319 = vld [vmem:[#allocation8 + $0x2e0] sm:$0xff]
    %v2320 = vld [vmem:[#allocation8 + $0x2e8] sm:$0xff]
    %v2321 = vld [vmem:[#allocation8 + $0x2f0] sm:$0xff]
    %v2322 = vld [vmem:[#allocation8 + $0x2f8] sm:$0xff]
    %v2323 = vld [vmem:[#allocation8 + $0x300] sm:$0xff]
    %v2324 = vld [vmem:[#allocation8 + $0x308] sm:$0xff]
    %v2325 = vld [vmem:[#allocation8 + $0x310] sm:$0xff]
    %v2326 = vld [vmem:[#allocation8 + $0x318] sm:$0xff]
    %v2327 = vld [vmem:[#allocation8 + $0x320] sm:$0xff]
    %v2328 = vld [vmem:[#allocation8 + $0x328] sm:$0xff]
    %v2329 = vld [vmem:[#allocation8 + $0x330] sm:$0xff]
    %v2330 = vld [vmem:[#allocation8 + $0x338] sm:$0xff]
    %v2331 = vld [vmem:[#allocation8 + $0x340] sm:$0xff]
    %v2332 = vld [vmem:[#allocation8 + $0x348] sm:$0xff]
    %v2333 = vld [vmem:[#allocation8 + $0x350] sm:$0xff]
    %v2334 = vld [vmem:[#allocation8 + $0x358] sm:$0xff]
    %v2335 = vld [vmem:[#allocation8 + $0x360] sm:$0xff]
    %v2336 = vld [vmem:[#allocation8 + $0x368] sm:$0xff]
    %v2337 = vld [vmem:[#allocation8 + $0x370] sm:$0xff]
    %v2338 = vld [vmem:[#allocation8 + $0x378] sm:$0xff]
    %v2339 = vld [vmem:[#allocation8 + $0x380] sm:$0xff]
    %v2340 = vld [vmem:[#allocation8 + $0x388] sm:$0xff]
    %v2341 = vld [vmem:[#allocation8 + $0x390] sm:$0xff]
    %v2342 = vld [vmem:[#allocation8 + $0x398] sm:$0xff]
    %v2343 = vld [vmem:[#allocation8 + $0x3a0] sm:$0xff]
    %v2344 = vld [vmem:[#allocation8 + $0x3a8] sm:$0xff]
    %v2345 = vld [vmem:[#allocation8 + $0x3b0] sm:$0xff]
    %v2346 = vld [vmem:[#allocation8 + $0x3b8] sm:$0xff]
    %v2347 = vld [vmem:[#allocation8 + $0x3c0] sm:$0xff]
    %v2348 = vld [vmem:[#allocation8 + $0x3c8] sm:$0xff]
    %v2349 = vld [vmem:[#allocation8 + $0x3d0] sm:$0xff]
    %v2350 = vld [vmem:[#allocation8 + $0x3d8] sm:$0xff]
    %v2351 = vld [vmem:[#allocation8 + $0x3e0] sm:$0xff]
    %v2352 = vld [vmem:[#allocation8 + $0x3e8] sm:$0xff]
    %v2353 = vld [vmem:[#allocation8 + $0x3f0] sm:$0xff]
    %v2354 = vld [vmem:[#allocation8 + $0x3f8] sm:$0xff]
    %v2355 = vld [vmem:[#allocation8 + $0x400] sm:$0xff]
    %v2356 = vld [vmem:[#allocation8 + $0x408] sm:$0xff]
    %v2357 = vld [vmem:[#allocation8 + $0x410] sm:$0xff]
    %v2358 = vld [vmem:[#allocation8 + $0x418] sm:$0xff]
    %v2359 = vld [vmem:[#allocation8 + $0x420] sm:$0xff]
    %v2360 = vld [vmem:[#allocation8 + $0x428] sm:$0xff]
    %v2361 = vld [vmem:[#allocation8 + $0x430] sm:$0xff]
    %v2362 = vld [vmem:[#allocation8 + $0x438] sm:$0xff]
    %v2363 = vld [vmem:[#allocation8 + $0x440] sm:$0xff]
    %v2364 = vld [vmem:[#allocation8 + $0x448] sm:$0xff]
    %v2365 = vld [vmem:[#allocation8 + $0x450] sm:$0xff]
    %v2366 = vld [vmem:[#allocation8 + $0x458] sm:$0xff]
    %v2367 = vld [vmem:[#allocation8 + $0x460] sm:$0xff]
    %v2368 = vld [vmem:[#allocation8 + $0x468] sm:$0xff]
    %v2369 = vld [vmem:[#allocation8 + $0x470] sm:$0xff]
    %v2370 = vld [vmem:[#allocation8 + $0x478] sm:$0xff]
    %v2371 = vld [vmem:[#allocation8 + $0x480] sm:$0xff]
    %v2372 = vld [vmem:[#allocation8 + $0x488] sm:$0xff]
    %v2373 = vld [vmem:[#allocation8 + $0x490] sm:$0xff]
    %v2374 = vld [vmem:[#allocation8 + $0x498] sm:$0xff]
    %v2375 = vld [vmem:[#allocation8 + $0x4a0] sm:$0xff]
    %v2376 = vld [vmem:[#allocation8 + $0x4a8] sm:$0xff]
    %v2377 = vld [vmem:[#allocation8 + $0x4b0] sm:$0xff]
    %v2378 = vld [vmem:[#allocation8 + $0x4b8] sm:$0xff]
    %v2379 = vld [vmem:[#allocation8 + $0x4c0] sm:$0xff]
    %v2380 = vld [vmem:[#allocation8 + $0x4c8] sm:$0xff]
    %v2381 = vld [vmem:[#allocation8 + $0x4d0] sm:$0xff]
    %v2382 = vld [vmem:[#allocation8 + $0x4d8] sm:$0xff]
    %v2383 = vld [vmem:[#allocation8 + $0x4e0] sm:$0xff]
    %v2384 = vld [vmem:[#allocation8 + $0x4e8] sm:$0xff]
    %v2385 = vld [vmem:[#allocation8 + $0x4f0] sm:$0xff]
    %v2386 = vld [vmem:[#allocation8 + $0x4f8] sm:$0xff]
    %v2387 = vld [vmem:[#allocation8 + $0x500] sm:$0xff]
    %v2388 = vld [vmem:[#allocation8 + $0x508] sm:$0xff]
    %v2389 = vld [vmem:[#allocation8 + $0x510] sm:$0xff]
    %v2390 = vld [vmem:[#allocation8 + $0x518] sm:$0xff]
    %v2391 = vld [vmem:[#allocation8 + $0x520] sm:$0xff]
    %v2392 = vld [vmem:[#allocation8 + $0x528] sm:$0xff]
    %v2393 = vld [vmem:[#allocation8 + $0x530] sm:$0xff]
    %v2394 = vld [vmem:[#allocation8 + $0x538] sm:$0xff]
    %v2395 = vld [vmem:[#allocation8 + $0x540] sm:$0xff]
    %v2396 = vld [vmem:[#allocation8 + $0x548] sm:$0xff]
    %v2397 = vld [vmem:[#allocation8 + $0x550] sm:$0xff]
    %v2398 = vld [vmem:[#allocation8 + $0x558] sm:$0xff]
    %v2399 = vld [vmem:[#allocation8 + $0x560] sm:$0xff]
    %v2400 = vld [vmem:[#allocation8 + $0x568] sm:$0xff]
    %v2401 = vld [vmem:[#allocation8 + $0x570] sm:$0xff]
    %v2402 = vld [vmem:[#allocation8 + $0x578] sm:$0xff]
    %v2403 = vld [vmem:[#allocation8 + $0x580] sm:$0xff]
    %v2404 = vld [vmem:[#allocation8 + $0x588] sm:$0xff]
    %v2405 = vld [vmem:[#allocation8 + $0x590] sm:$0xff]
    %v2406 = vld [vmem:[#allocation8 + $0x598] sm:$0xff]
    %v2407 = vld [vmem:[#allocation8 + $0x5a0] sm:$0xff]
    %v2408 = vld [vmem:[#allocation8 + $0x5a8] sm:$0xff]
    %v2409 = vld [vmem:[#allocation8 + $0x5b0] sm:$0xff]
    %v2410 = vld [vmem:[#allocation8 + $0x5b8] sm:$0xff]
    %v2411 = vld [vmem:[#allocation8 + $0x5c0] sm:$0xff]
    %v2412 = vld [vmem:[#allocation8 + $0x5c8] sm:$0xff]
    %v2413 = vld [vmem:[#allocation8 + $0x5d0] sm:$0xff]
    %v2414 = vld [vmem:[#allocation8 + $0x5d8] sm:$0xff]
    %v2415 = vld [vmem:[#allocation8 + $0x5e0] sm:$0xff]
    %v2416 = vld [vmem:[#allocation8 + $0x5e8] sm:$0xff]
    %v2417 = vld [vmem:[#allocation8 + $0x5f0] sm:$0xff]
    %v2418 = vld [vmem:[#allocation8 + $0x5f8] sm:$0xff]
    %v2419 = vld [vmem:[#allocation10] sm:$0xff]
    %v2421 = vperm.slane %v2419, 0
    %v2422 = vperm.slane %v2419, 1
    %v2423 = vperm.slane %v2419, 2
    %v2424 = vperm.slane %v2419, 3
    %v2425 = vperm.slane %v2419, 4
    %v2426 = vperm.slane %v2419, 5
    %v2427 = vperm.slane %v2419, 6
    %v2428 = vperm.slane %v2419, 7
    %v2629 = vunpack.c.l.b16 %v2227
    %v2630 = vunpack.c.h.b16 %v2227
    %v2631 = vunpack.c.l.b16 %v2228
    %v2632 = vunpack.c.h.b16 %v2228
    %v2633 = vunpack.c.l.b16 %v2229
    %v2634 = vunpack.c.h.b16 %v2229
    %v2635 = vunpack.c.l.b16 %v2230
    %v2636 = vunpack.c.h.b16 %v2230
    %v2637 = vunpack.c.l.b16 %v2231
    %v2638 = vunpack.c.h.b16 %v2231
    %v2639 = vunpack.c.l.b16 %v2232
    %v2640 = vunpack.c.h.b16 %v2232
    %v2641 = vunpack.c.l.b16 %v2233
    %v2642 = vunpack.c.h.b16 %v2233
    %v2643 = vunpack.c.l.b16 %v2234
    %v2644 = vunpack.c.h.b16 %v2234
    %v2645 = vunpack.c.l.b16 %v2235
    %v2646 = vunpack.c.h.b16 %v2235
    %v2647 = vunpack.c.l.b16 %v2236
    %v2648 = vunpack.c.h.b16 %v2236
    %v2649 = vunpack.c.l.b16 %v2237
    %v2650 = vunpack.c.h.b16 %v2237
    %v2651 = vunpack.c.l.b16 %v2238
    %v2652 = vunpack.c.h.b16 %v2238
    %v2653 = vunpack.c.l.b16 %v2239
    %v2654 = vunpack.c.h.b16 %v2239
    %v2655 = vunpack.c.l.b16 %v2240
    %v2656 = vunpack.c.h.b16 %v2240
    %v2657 = vunpack.c.l.b16 %v2241
    %v2658 = vunpack.c.h.b16 %v2241
    %v2659 = vunpack.c.l.b16 %v2242
    %v2660 = vunpack.c.h.b16 %v2242
    %v2661 = vunpack.c.l.b16 %v2243
    %v2662 = vunpack.c.h.b16 %v2243
    %v2663 = vunpack.c.l.b16 %v2244
    %v2664 = vunpack.c.h.b16 %v2244
    %v2665 = vunpack.c.l.b16 %v2245
    %v2666 = vunpack.c.h.b16 %v2245
    %v2667 = vunpack.c.l.b16 %v2246
    %v2668 = vunpack.c.h.b16 %v2246
    %v2669 = vunpack.c.l.b16 %v2247
    %v2670 = vunpack.c.h.b16 %v2247
    %v2671 = vunpack.c.l.b16 %v2248
    %v2672 = vunpack.c.h.b16 %v2248
    %v2673 = vunpack.c.l.b16 %v2249
    %v2674 = vunpack.c.h.b16 %v2249
    %v2675 = vunpack.c.l.b16 %v2250
    %v2676 = vunpack.c.h.b16 %v2250
    %v2677 = vunpack.c.l.b16 %v2251
    %v2678 = vunpack.c.h.b16 %v2251
    %v2679 = vunpack.c.l.b16 %v2252
    %v2680 = vunpack.c.h.b16 %v2252
    %v2681 = vunpack.c.l.b16 %v2253
    %v2682 = vunpack.c.h.b16 %v2253
    %v2683 = vunpack.c.l.b16 %v2254
    %v2684 = vunpack.c.h.b16 %v2254
    %v2685 = vunpack.c.l.b16 %v2255
    %v2686 = vunpack.c.h.b16 %v2255
    %v2687 = vunpack.c.l.b16 %v2256
    %v2688 = vunpack.c.h.b16 %v2256
    %v2689 = vunpack.c.l.b16 %v2257
    %v2690 = vunpack.c.h.b16 %v2257
    %v2691 = vunpack.c.l.b16 %v2258
    %v2692 = vunpack.c.h.b16 %v2258
    %v2693 = vunpack.c.l.b16 %v2259
    %v2694 = vunpack.c.h.b16 %v2259
    %v2695 = vunpack.c.l.b16 %v2260
    %v2696 = vunpack.c.h.b16 %v2260
    %v2697 = vunpack.c.l.b16 %v2261
    %v2698 = vunpack.c.h.b16 %v2261
    %v2699 = vunpack.c.l.b16 %v2262
    %v2700 = vunpack.c.h.b16 %v2262
    %v2701 = vunpack.c.l.b16 %v2263
    %v2702 = vunpack.c.h.b16 %v2263
    %v2703 = vunpack.c.l.b16 %v2264
    %v2704 = vunpack.c.h.b16 %v2264
    %v2705 = vunpack.c.l.b16 %v2265
    %v2706 = vunpack.c.h.b16 %v2265
    %v2707 = vunpack.c.l.b16 %v2266
    %v2708 = vunpack.c.h.b16 %v2266
    %v2709 = vunpack.c.l.b16 %v2267
    %v2710 = vunpack.c.h.b16 %v2267
    %v2711 = vunpack.c.l.b16 %v2268
    %v2712 = vunpack.c.h.b16 %v2268
    %v2713 = vunpack.c.l.b16 %v2269
    %v2714 = vunpack.c.h.b16 %v2269
    %v2715 = vunpack.c.l.b16 %v2270
    %v2716 = vunpack.c.h.b16 %v2270
    %v2717 = vunpack.c.l.b16 %v2271
    %v2718 = vunpack.c.h.b16 %v2271
    %v2719 = vunpack.c.l.b16 %v2272
    %v2720 = vunpack.c.h.b16 %v2272
    %v2721 = vunpack.c.l.b16 %v2273
    %v2722 = vunpack.c.h.b16 %v2273
    %v2723 = vunpack.c.l.b16 %v2274
    %v2724 = vunpack.c.h.b16 %v2274
    %v2725 = vunpack.c.l.b16 %v2275
    %v2726 = vunpack.c.h.b16 %v2275
    %v2727 = vunpack.c.l.b16 %v2276
    %v2728 = vunpack.c.h.b16 %v2276
    %v2729 = vunpack.c.l.b16 %v2277
    %v2730 = vunpack.c.h.b16 %v2277
    %v2731 = vunpack.c.l.b16 %v2278
    %v2732 = vunpack.c.h.b16 %v2278
    %v2733 = vunpack.c.l.b16 %v2279
    %v2734 = vunpack.c.h.b16 %v2279
    %v2735 = vunpack.c.l.b16 %v2280
    %v2736 = vunpack.c.h.b16 %v2280
    %v2737 = vunpack.c.l.b16 %v2281
    %v2738 = vunpack.c.h.b16 %v2281
    %v2739 = vunpack.c.l.b16 %v2282
    %v2740 = vunpack.c.h.b16 %v2282
    %v2741 = vunpack.c.l.b16 %v2283
    %v2742 = vunpack.c.h.b16 %v2283
    %v2743 = vunpack.c.l.b16 %v2284
    %v2744 = vunpack.c.h.b16 %v2284
    %v2745 = vunpack.c.l.b16 %v2285
    %v2746 = vunpack.c.h.b16 %v2285
    %v2747 = vunpack.c.l.b16 %v2286
    %v2748 = vunpack.c.h.b16 %v2286
    %v2749 = vunpack.c.l.b16 %v2287
    %v2750 = vunpack.c.h.b16 %v2287
    %v2751 = vunpack.c.l.b16 %v2288
    %v2752 = vunpack.c.h.b16 %v2288
    %v2753 = vunpack.c.l.b16 %v2289
    %v2754 = vunpack.c.h.b16 %v2289
    %v2755 = vunpack.c.l.b16 %v2290
    %v2756 = vunpack.c.h.b16 %v2290
    %v2757 = vunpack.c.l.b16 %v2291
    %v2758 = vunpack.c.h.b16 %v2291
    %v2759 = vunpack.c.l.b16 %v2292
    %v2760 = vunpack.c.h.b16 %v2292
    %v2761 = vunpack.c.l.b16 %v2293
    %v2762 = vunpack.c.h.b16 %v2293
    %v2763 = vunpack.c.l.b16 %v2294
    %v2764 = vunpack.c.h.b16 %v2294
    %v2765 = vunpack.c.l.b16 %v2295
    %v2766 = vunpack.c.h.b16 %v2295
    %v2767 = vunpack.c.l.b16 %v2296
    %v2768 = vunpack.c.h.b16 %v2296
    %v2769 = vunpack.c.l.b16 %v2297
    %v2770 = vunpack.c.h.b16 %v2297
    %v2771 = vunpack.c.l.b16 %v2298
    %v2772 = vunpack.c.h.b16 %v2298
    %v2773 = vunpack.c.l.b16 %v2299
    %v2774 = vunpack.c.h.b16 %v2299
    %v2775 = vunpack.c.l.b16 %v2300
    %v2776 = vunpack.c.h.b16 %v2300
    %v2777 = vunpack.c.l.b16 %v2301
    %v2778 = vunpack.c.h.b16 %v2301
    %v2779 = vunpack.c.l.b16 %v2302
    %v2780 = vunpack.c.h.b16 %v2302
    %v2781 = vunpack.c.l.b16 %v2303
    %v2782 = vunpack.c.h.b16 %v2303
    %v2783 = vunpack.c.l.b16 %v2304
    %v2784 = vunpack.c.h.b16 %v2304
    %v2785 = vunpack.c.l.b16 %v2305
    %v2786 = vunpack.c.h.b16 %v2305
    %v2787 = vunpack.c.l.b16 %v2306
    %v2788 = vunpack.c.h.b16 %v2306
    %v2789 = vunpack.c.l.b16 %v2307
    %v2790 = vunpack.c.h.b16 %v2307
    %v2791 = vunpack.c.l.b16 %v2308
    %v2792 = vunpack.c.h.b16 %v2308
    %v2793 = vunpack.c.l.b16 %v2309
    %v2794 = vunpack.c.h.b16 %v2309
    %v2795 = vunpack.c.l.b16 %v2310
    %v2796 = vunpack.c.h.b16 %v2310
    %v2797 = vunpack.c.l.b16 %v2311
    %v2798 = vunpack.c.h.b16 %v2311
    %v2799 = vunpack.c.l.b16 %v2312
    %v2800 = vunpack.c.h.b16 %v2312
    %v2801 = vunpack.c.l.b16 %v2313
    %v2802 = vunpack.c.h.b16 %v2313
    %v2803 = vunpack.c.l.b16 %v2314
    %v2804 = vunpack.c.h.b16 %v2314
    %v2805 = vunpack.c.l.b16 %v2315
    %v2806 = vunpack.c.h.b16 %v2315
    %v2807 = vunpack.c.l.b16 %v2316
    %v2808 = vunpack.c.h.b16 %v2316
    %v2809 = vunpack.c.l.b16 %v2317
    %v2810 = vunpack.c.h.b16 %v2317
    %v2811 = vunpack.c.l.b16 %v2318
    %v2812 = vunpack.c.h.b16 %v2318
    %v2813 = vunpack.c.l.b16 %v2319
    %v2814 = vunpack.c.h.b16 %v2319
    %v2815 = vunpack.c.l.b16 %v2320
    %v2816 = vunpack.c.h.b16 %v2320
    %v2817 = vunpack.c.l.b16 %v2321
    %v2818 = vunpack.c.h.b16 %v2321
    %v2819 = vunpack.c.l.b16 %v2322
    %v2820 = vunpack.c.h.b16 %v2322
    %v2821 = vunpack.c.l.b16 %v2323
    %v2822 = vunpack.c.h.b16 %v2323
    %v2823 = vunpack.c.l.b16 %v2324
    %v2824 = vunpack.c.h.b16 %v2324
    %v2825 = vunpack.c.l.b16 %v2325
    %v2826 = vunpack.c.h.b16 %v2325
    %v2827 = vunpack.c.l.b16 %v2326
    %v2828 = vunpack.c.h.b16 %v2326
    %v2829 = vunpack.c.l.b16 %v2327
    %v2830 = vunpack.c.h.b16 %v2327
    %v2831 = vunpack.c.l.b16 %v2328
    %v2832 = vunpack.c.h.b16 %v2328
    %v2833 = vunpack.c.l.b16 %v2329
    %v2834 = vunpack.c.h.b16 %v2329
    %v2835 = vunpack.c.l.b16 %v2330
    %v2836 = vunpack.c.h.b16 %v2330
    %v2837 = vunpack.c.l.b16 %v2331
    %v2838 = vunpack.c.h.b16 %v2331
    %v2839 = vunpack.c.l.b16 %v2332
    %v2840 = vunpack.c.h.b16 %v2332
    %v2841 = vunpack.c.l.b16 %v2333
    %v2842 = vunpack.c.h.b16 %v2333
    %v2843 = vunpack.c.l.b16 %v2334
    %v2844 = vunpack.c.h.b16 %v2334
    %v2845 = vunpack.c.l.b16 %v2335
    %v2846 = vunpack.c.h.b16 %v2335
    %v2847 = vunpack.c.l.b16 %v2336
    %v2848 = vunpack.c.h.b16 %v2336
    %v2849 = vunpack.c.l.b16 %v2337
    %v2850 = vunpack.c.h.b16 %v2337
    %v2851 = vunpack.c.l.b16 %v2338
    %v2852 = vunpack.c.h.b16 %v2338
    %v2853 = vunpack.c.l.b16 %v2339
    %v2854 = vunpack.c.h.b16 %v2339
    %v2855 = vunpack.c.l.b16 %v2340
    %v2856 = vunpack.c.h.b16 %v2340
    %v2857 = vunpack.c.l.b16 %v2341
    %v2858 = vunpack.c.h.b16 %v2341
    %v2859 = vunpack.c.l.b16 %v2342
    %v2860 = vunpack.c.h.b16 %v2342
    %v2861 = vunpack.c.l.b16 %v2343
    %v2862 = vunpack.c.h.b16 %v2343
    %v2863 = vunpack.c.l.b16 %v2344
    %v2864 = vunpack.c.h.b16 %v2344
    %v2865 = vunpack.c.l.b16 %v2345
    %v2866 = vunpack.c.h.b16 %v2345
    %v2867 = vunpack.c.l.b16 %v2346
    %v2868 = vunpack.c.h.b16 %v2346
    %v2869 = vunpack.c.l.b16 %v2347
    %v2870 = vunpack.c.h.b16 %v2347
    %v2871 = vunpack.c.l.b16 %v2348
    %v2872 = vunpack.c.h.b16 %v2348
    %v2873 = vunpack.c.l.b16 %v2349
    %v2874 = vunpack.c.h.b16 %v2349
    %v2875 = vunpack.c.l.b16 %v2350
    %v2876 = vunpack.c.h.b16 %v2350
    %v2877 = vunpack.c.l.b16 %v2351
    %v2878 = vunpack.c.h.b16 %v2351
    %v2879 = vunpack.c.l.b16 %v2352
    %v2880 = vunpack.c.h.b16 %v2352
    %v2881 = vunpack.c.l.b16 %v2353
    %v2882 = vunpack.c.h.b16 %v2353
    %v2883 = vunpack.c.l.b16 %v2354
    %v2884 = vunpack.c.h.b16 %v2354
    %v2885 = vunpack.c.l.b16 %v2355
    %v2886 = vunpack.c.h.b16 %v2355
    %v2887 = vunpack.c.l.b16 %v2356
    %v2888 = vunpack.c.h.b16 %v2356
    %v2889 = vunpack.c.l.b16 %v2357
    %v2890 = vunpack.c.h.b16 %v2357
    %v2891 = vunpack.c.l.b16 %v2358
    %v2892 = vunpack.c.h.b16 %v2358
    %v2893 = vunpack.c.l.b16 %v2359
    %v2894 = vunpack.c.h.b16 %v2359
    %v2895 = vunpack.c.l.b16 %v2360
    %v2896 = vunpack.c.h.b16 %v2360
    %v2897 = vunpack.c.l.b16 %v2361
    %v2898 = vunpack.c.h.b16 %v2361
    %v2899 = vunpack.c.l.b16 %v2362
    %v2900 = vunpack.c.h.b16 %v2362
    %v2901 = vunpack.c.l.b16 %v2363
    %v2902 = vunpack.c.h.b16 %v2363
    %v2903 = vunpack.c.l.b16 %v2364
    %v2904 = vunpack.c.h.b16 %v2364
    %v2905 = vunpack.c.l.b16 %v2365
    %v2906 = vunpack.c.h.b16 %v2365
    %v2907 = vunpack.c.l.b16 %v2366
    %v2908 = vunpack.c.h.b16 %v2366
    %v2909 = vunpack.c.l.b16 %v2367
    %v2910 = vunpack.c.h.b16 %v2367
    %v2911 = vunpack.c.l.b16 %v2368
    %v2912 = vunpack.c.h.b16 %v2368
    %v2913 = vunpack.c.l.b16 %v2369
    %v2914 = vunpack.c.h.b16 %v2369
    %v2915 = vunpack.c.l.b16 %v2370
    %v2916 = vunpack.c.h.b16 %v2370
    %v2917 = vunpack.c.l.b16 %v2371
    %v2918 = vunpack.c.h.b16 %v2371
    %v2919 = vunpack.c.l.b16 %v2372
    %v2920 = vunpack.c.h.b16 %v2372
    %v2921 = vunpack.c.l.b16 %v2373
    %v2922 = vunpack.c.h.b16 %v2373
    %v2923 = vunpack.c.l.b16 %v2374
    %v2924 = vunpack.c.h.b16 %v2374
    %v2925 = vunpack.c.l.b16 %v2375
    %v2926 = vunpack.c.h.b16 %v2375
    %v2927 = vunpack.c.l.b16 %v2376
    %v2928 = vunpack.c.h.b16 %v2376
    %v2929 = vunpack.c.l.b16 %v2377
    %v2930 = vunpack.c.h.b16 %v2377
    %v2931 = vunpack.c.l.b16 %v2378
    %v2932 = vunpack.c.h.b16 %v2378
    %v2933 = vunpack.c.l.b16 %v2379
    %v2934 = vunpack.c.h.b16 %v2379
    %v2935 = vunpack.c.l.b16 %v2380
    %v2936 = vunpack.c.h.b16 %v2380
    %v2937 = vunpack.c.l.b16 %v2381
    %v2938 = vunpack.c.h.b16 %v2381
    %v2939 = vunpack.c.l.b16 %v2382
    %v2940 = vunpack.c.h.b16 %v2382
    %v2941 = vunpack.c.l.b16 %v2383
    %v2942 = vunpack.c.h.b16 %v2383
    %v2943 = vunpack.c.l.b16 %v2384
    %v2944 = vunpack.c.h.b16 %v2384
    %v2945 = vunpack.c.l.b16 %v2385
    %v2946 = vunpack.c.h.b16 %v2385
    %v2947 = vunpack.c.l.b16 %v2386
    %v2948 = vunpack.c.h.b16 %v2386
    %v2949 = vunpack.c.l.b16 %v2387
    %v2950 = vunpack.c.h.b16 %v2387
    %v2951 = vunpack.c.l.b16 %v2388
    %v2952 = vunpack.c.h.b16 %v2388
    %v2953 = vunpack.c.l.b16 %v2389
    %v2954 = vunpack.c.h.b16 %v2389
    %v2955 = vunpack.c.l.b16 %v2390
    %v2956 = vunpack.c.h.b16 %v2390
    %v2957 = vunpack.c.l.b16 %v2391
    %v2958 = vunpack.c.h.b16 %v2391
    %v2959 = vunpack.c.l.b16 %v2392
    %v2960 = vunpack.c.h.b16 %v2392
    %v2961 = vunpack.c.l.b16 %v2393
    %v2962 = vunpack.c.h.b16 %v2393
    %v2963 = vunpack.c.l.b16 %v2394
    %v2964 = vunpack.c.h.b16 %v2394
    %v2965 = vunpack.c.l.b16 %v2395
    %v2966 = vunpack.c.h.b16 %v2395
    %v2967 = vunpack.c.l.b16 %v2396
    %v2968 = vunpack.c.h.b16 %v2396
    %v2969 = vunpack.c.l.b16 %v2397
    %v2970 = vunpack.c.h.b16 %v2397
    %v2971 = vunpack.c.l.b16 %v2398
    %v2972 = vunpack.c.h.b16 %v2398
    %v2973 = vunpack.c.l.b16 %v2399
    %v2974 = vunpack.c.h.b16 %v2399
    %v2975 = vunpack.c.l.b16 %v2400
    %v2976 = vunpack.c.h.b16 %v2400
    %v2977 = vunpack.c.l.b16 %v2401
    %v2978 = vunpack.c.h.b16 %v2401
    %v2979 = vunpack.c.l.b16 %v2402
    %v2980 = vunpack.c.h.b16 %v2402
    %v2981 = vunpack.c.l.b16 %v2403
    %v2982 = vunpack.c.h.b16 %v2403
    %v2983 = vunpack.c.l.b16 %v2404
    %v2984 = vunpack.c.h.b16 %v2404
    %v2985 = vunpack.c.l.b16 %v2405
    %v2986 = vunpack.c.h.b16 %v2405
    %v2987 = vunpack.c.l.b16 %v2406
    %v2988 = vunpack.c.h.b16 %v2406
    %v2989 = vunpack.c.l.b16 %v2407
    %v2990 = vunpack.c.h.b16 %v2407
    %v2991 = vunpack.c.l.b16 %v2408
    %v2992 = vunpack.c.h.b16 %v2408
    %v2993 = vunpack.c.l.b16 %v2409
    %v2994 = vunpack.c.h.b16 %v2409
    %v2995 = vunpack.c.l.b16 %v2410
    %v2996 = vunpack.c.h.b16 %v2410
    %v2997 = vunpack.c.l.b16 %v2411
    %v2998 = vunpack.c.h.b16 %v2411
    %v2999 = vunpack.c.l.b16 %v2412
    %v3000 = vunpack.c.h.b16 %v2412
    %v3001 = vunpack.c.l.b16 %v2413
    %v3002 = vunpack.c.h.b16 %v2413
    %v3003 = vunpack.c.l.b16 %v2414
    %v3004 = vunpack.c.h.b16 %v2414
    %v3005 = vunpack.c.l.b16 %v2415
    %v3006 = vunpack.c.h.b16 %v2415
    %v3007 = vunpack.c.l.b16 %v2416
    %v3008 = vunpack.c.h.b16 %v2416
    %v3009 = vunpack.c.l.b16 %v2417
    %v3010 = vunpack.c.h.b16 %v2417
    %v3011 = vunpack.c.l.b16 %v2418
    %v3012 = vunpack.c.h.b16 %v2418
    %v3013 = vpack.c.b16 %v2637, %v2629
    %v3014 = vpack.c.b16 %v2638, %v2630
    %v3015 = vpack.c.b16 %v2639, %v2631
    %v3016 = vpack.c.b16 %v2640, %v2632
    %v3017 = vpack.c.b16 %v2641, %v2633
    %v3018 = vpack.c.b16 %v2642, %v2634
    %v3019 = vpack.c.b16 %v2643, %v2635
    %v3020 = vpack.c.b16 %v2644, %v2636
    %v3021 = vpack.c.b16 %v2653, %v2645
    %v3022 = vpack.c.b16 %v2654, %v2646
    %v3023 = vpack.c.b16 %v2655, %v2647
    %v3024 = vpack.c.b16 %v2656, %v2648
    %v3025 = vpack.c.b16 %v2657, %v2649
    %v3026 = vpack.c.b16 %v2658, %v2650
    %v3027 = vpack.c.b16 %v2659, %v2651
    %v3028 = vpack.c.b16 %v2660, %v2652
    %v3029 = vpack.c.b16 %v2669, %v2661
    %v3030 = vpack.c.b16 %v2670, %v2662
    %v3031 = vpack.c.b16 %v2671, %v2663
    %v3032 = vpack.c.b16 %v2672, %v2664
    %v3033 = vpack.c.b16 %v2673, %v2665
    %v3034 = vpack.c.b16 %v2674, %v2666
    %v3035 = vpack.c.b16 %v2675, %v2667
    %v3036 = vpack.c.b16 %v2676, %v2668
    %v3037 = vpack.c.b16 %v2685, %v2677
    %v3038 = vpack.c.b16 %v2686, %v2678
    %v3039 = vpack.c.b16 %v2687, %v2679
    %v3040 = vpack.c.b16 %v2688, %v2680
    %v3041 = vpack.c.b16 %v2689, %v2681
    %v3042 = vpack.c.b16 %v2690, %v2682
    %v3043 = vpack.c.b16 %v2691, %v2683
    %v3044 = vpack.c.b16 %v2692, %v2684
    %v3045 = vpack.c.b16 %v2701, %v2693
    %v3046 = vpack.c.b16 %v2702, %v2694
    %v3047 = vpack.c.b16 %v2703, %v2695
    %v3048 = vpack.c.b16 %v2704, %v2696
    %v3049 = vpack.c.b16 %v2705, %v2697
    %v3050 = vpack.c.b16 %v2706, %v2698
    %v3051 = vpack.c.b16 %v2707, %v2699
    %v3052 = vpack.c.b16 %v2708, %v2700
    %v3053 = vpack.c.b16 %v2717, %v2709
    %v3054 = vpack.c.b16 %v2718, %v2710
    %v3055 = vpack.c.b16 %v2719, %v2711
    %v3056 = vpack.c.b16 %v2720, %v2712
    %v3057 = vpack.c.b16 %v2721, %v2713
    %v3058 = vpack.c.b16 %v2722, %v2714
    %v3059 = vpack.c.b16 %v2723, %v2715
    %v3060 = vpack.c.b16 %v2724, %v2716
    %v3061 = vpack.c.b16 %v2733, %v2725
    %v3062 = vpack.c.b16 %v2734, %v2726
    %v3063 = vpack.c.b16 %v2735, %v2727
    %v3064 = vpack.c.b16 %v2736, %v2728
    %v3065 = vpack.c.b16 %v2737, %v2729
    %v3066 = vpack.c.b16 %v2738, %v2730
    %v3067 = vpack.c.b16 %v2739, %v2731
    %v3068 = vpack.c.b16 %v2740, %v2732
    %v3069 = vpack.c.b16 %v2749, %v2741
    %v3070 = vpack.c.b16 %v2750, %v2742
    %v3071 = vpack.c.b16 %v2751, %v2743
    %v3072 = vpack.c.b16 %v2752, %v2744
    %v3073 = vpack.c.b16 %v2753, %v2745
    %v3074 = vpack.c.b16 %v2754, %v2746
    %v3075 = vpack.c.b16 %v2755, %v2747
    %v3076 = vpack.c.b16 %v2756, %v2748
    %v3077 = vpack.c.b16 %v2765, %v2757
    %v3078 = vpack.c.b16 %v2766, %v2758
    %v3079 = vpack.c.b16 %v2767, %v2759
    %v3080 = vpack.c.b16 %v2768, %v2760
    %v3081 = vpack.c.b16 %v2769, %v2761
    %v3082 = vpack.c.b16 %v2770, %v2762
    %v3083 = vpack.c.b16 %v2771, %v2763
    %v3084 = vpack.c.b16 %v2772, %v2764
    %v3085 = vpack.c.b16 %v2781, %v2773
    %v3086 = vpack.c.b16 %v2782, %v2774
    %v3087 = vpack.c.b16 %v2783, %v2775
    %v3088 = vpack.c.b16 %v2784, %v2776
    %v3089 = vpack.c.b16 %v2785, %v2777
    %v3090 = vpack.c.b16 %v2786, %v2778
    %v3091 = vpack.c.b16 %v2787, %v2779
    %v3092 = vpack.c.b16 %v2788, %v2780
    %v3093 = vpack.c.b16 %v2797, %v2789
    %v3094 = vpack.c.b16 %v2798, %v2790
    %v3095 = vpack.c.b16 %v2799, %v2791
    %v3096 = vpack.c.b16 %v2800, %v2792
    %v3097 = vpack.c.b16 %v2801, %v2793
    %v3098 = vpack.c.b16 %v2802, %v2794
    %v3099 = vpack.c.b16 %v2803, %v2795
    %v3100 = vpack.c.b16 %v2804, %v2796
    %v3101 = vpack.c.b16 %v2813, %v2805
    %v3102 = vpack.c.b16 %v2814, %v2806
    %v3103 = vpack.c.b16 %v2815, %v2807
    %v3104 = vpack.c.b16 %v2816, %v2808
    %v3105 = vpack.c.b16 %v2817, %v2809
    %v3106 = vpack.c.b16 %v2818, %v2810
    %v3107 = vpack.c.b16 %v2819, %v2811
    %v3108 = vpack.c.b16 %v2820, %v2812
    %v3109 = vpack.c.b16 %v2829, %v2821
    %v3110 = vpack.c.b16 %v2830, %v2822
    %v3111 = vpack.c.b16 %v2831, %v2823
    %v3112 = vpack.c.b16 %v2832, %v2824
    %v3113 = vpack.c.b16 %v2833, %v2825
    %v3114 = vpack.c.b16 %v2834, %v2826
    %v3115 = vpack.c.b16 %v2835, %v2827
    %v3116 = vpack.c.b16 %v2836, %v2828
    %v3117 = vpack.c.b16 %v2845, %v2837
    %v3118 = vpack.c.b16 %v2846, %v2838
    %v3119 = vpack.c.b16 %v2847, %v2839
    %v3120 = vpack.c.b16 %v2848, %v2840
    %v3121 = vpack.c.b16 %v2849, %v2841
    %v3122 = vpack.c.b16 %v2850, %v2842
    %v3123 = vpack.c.b16 %v2851, %v2843
    %v3124 = vpack.c.b16 %v2852, %v2844
    %v3125 = vpack.c.b16 %v2861, %v2853
    %v3126 = vpack.c.b16 %v2862, %v2854
    %v3127 = vpack.c.b16 %v2863, %v2855
    %v3128 = vpack.c.b16 %v2864, %v2856
    %v3129 = vpack.c.b16 %v2865, %v2857
    %v3130 = vpack.c.b16 %v2866, %v2858
    %v3131 = vpack.c.b16 %v2867, %v2859
    %v3132 = vpack.c.b16 %v2868, %v2860
    %v3133 = vpack.c.b16 %v2877, %v2869
    %v3134 = vpack.c.b16 %v2878, %v2870
    %v3135 = vpack.c.b16 %v2879, %v2871
    %v3136 = vpack.c.b16 %v2880, %v2872
    %v3137 = vpack.c.b16 %v2881, %v2873
    %v3138 = vpack.c.b16 %v2882, %v2874
    %v3139 = vpack.c.b16 %v2883, %v2875
    %v3140 = vpack.c.b16 %v2884, %v2876
    %v3141 = vpack.c.b16 %v2893, %v2885
    %v3142 = vpack.c.b16 %v2894, %v2886
    %v3143 = vpack.c.b16 %v2895, %v2887
    %v3144 = vpack.c.b16 %v2896, %v2888
    %v3145 = vpack.c.b16 %v2897, %v2889
    %v3146 = vpack.c.b16 %v2898, %v2890
    %v3147 = vpack.c.b16 %v2899, %v2891
    %v3148 = vpack.c.b16 %v2900, %v2892
    %v3149 = vpack.c.b16 %v2909, %v2901
    %v3150 = vpack.c.b16 %v2910, %v2902
    %v3151 = vpack.c.b16 %v2911, %v2903
    %v3152 = vpack.c.b16 %v2912, %v2904
    %v3153 = vpack.c.b16 %v2913, %v2905
    %v3154 = vpack.c.b16 %v2914, %v2906
    %v3155 = vpack.c.b16 %v2915, %v2907
    %v3156 = vpack.c.b16 %v2916, %v2908
    %v3157 = vpack.c.b16 %v2925, %v2917
    %v3158 = vpack.c.b16 %v2926, %v2918
    %v3159 = vpack.c.b16 %v2927, %v2919
    %v3160 = vpack.c.b16 %v2928, %v2920
    %v3161 = vpack.c.b16 %v2929, %v2921
    %v3162 = vpack.c.b16 %v2930, %v2922
    %v3163 = vpack.c.b16 %v2931, %v2923
    %v3164 = vpack.c.b16 %v2932, %v2924
    %v3165 = vpack.c.b16 %v2941, %v2933
    %v3166 = vpack.c.b16 %v2942, %v2934
    %v3167 = vpack.c.b16 %v2943, %v2935
    %v3168 = vpack.c.b16 %v2944, %v2936
    %v3169 = vpack.c.b16 %v2945, %v2937
    %v3170 = vpack.c.b16 %v2946, %v2938
    %v3171 = vpack.c.b16 %v2947, %v2939
    %v3172 = vpack.c.b16 %v2948, %v2940
    %v3173 = vpack.c.b16 %v2957, %v2949
    %v3174 = vpack.c.b16 %v2958, %v2950
    %v3175 = vpack.c.b16 %v2959, %v2951
    %v3176 = vpack.c.b16 %v2960, %v2952
    %v3177 = vpack.c.b16 %v2961, %v2953
    %v3178 = vpack.c.b16 %v2962, %v2954
    %v3179 = vpack.c.b16 %v2963, %v2955
    %v3180 = vpack.c.b16 %v2964, %v2956
    %v3181 = vpack.c.b16 %v2973, %v2965
    %v3182 = vpack.c.b16 %v2974, %v2966
    %v3183 = vpack.c.b16 %v2975, %v2967
    %v3184 = vpack.c.b16 %v2976, %v2968
    %v3185 = vpack.c.b16 %v2977, %v2969
    %v3186 = vpack.c.b16 %v2978, %v2970
    %v3187 = vpack.c.b16 %v2979, %v2971
    %v3188 = vpack.c.b16 %v2980, %v2972
    %v3189 = vpack.c.b16 %v2989, %v2981
    %v3190 = vpack.c.b16 %v2990, %v2982
    %v3191 = vpack.c.b16 %v2991, %v2983
    %v3192 = vpack.c.b16 %v2992, %v2984
    %v3193 = vpack.c.b16 %v2993, %v2985
    %v3194 = vpack.c.b16 %v2994, %v2986
    %v3195 = vpack.c.b16 %v2995, %v2987
    %v3196 = vpack.c.b16 %v2996, %v2988
    %v3197 = vpack.c.b16 %v3005, %v2997
    %v3198 = vpack.c.b16 %v3006, %v2998
    %v3199 = vpack.c.b16 %v3007, %v2999
    %v3200 = vpack.c.b16 %v3008, %v3000
    %v3201 = vpack.c.b16 %v3009, %v3001
    %v3202 = vpack.c.b16 %v3010, %v3002
    %v3203 = vpack.c.b16 %v3011, %v3003
    %v3204 = vpack.c.b16 %v3012, %v3004
    %3397 = vmatpush.bf16.msra.mxu0 %v3069
    %3398 = vmatpush.bf16.msra.mxu0 %v3061
    %3399 = vmatpush.bf16.msra.mxu0 %v3053
    %3400 = vmatpush.bf16.msra.mxu0 %v3045
    %3401 = vmatpush.bf16.msra.mxu0 %v3037
    %3402 = vmatpush.bf16.msra.mxu0 %v3029
    %3403 = vmatpush.bf16.msra.mxu0 %v3021
    %3404 = vmatpush.bf16.msra.mxu0 %v3013
    %3405 = vmatmul.bf16.gmra.mxu0 %v2224
    %v3406 = vpop.f32.mrf.mxu0
    %v3407 = vadd.f32 %v2421, %v3406
    %v3408 = vpop.f32.mrf.mxu0
    %v3409 = vadd.f32 %v2421, %v3408
    %3410 = vdwg.mxu0
    %3411 = vmatpush.bf16.msra.mxu0 %v3133
    %3412 = vmatpush.bf16.msra.mxu0 %v3125
    %3413 = vmatpush.bf16.msra.mxu0 %v3117
    %3414 = vmatpush.bf16.msra.mxu0 %v3109
    %3415 = vmatpush.bf16.msra.mxu0 %v3101
    %3416 = vmatpush.bf16.msra.mxu0 %v3093
    %3417 = vmatpush.bf16.msra.mxu0 %v3085
    %3418 = vmatpush.bf16.msra.mxu0 %v3077
    %3419 = vmatmul.bf16.gmra.mxu0 %v2225
    %v3420 = vpop.f32.mrf.mxu0
    %v3421 = vadd.f32 %v3407, %v3420
    %v3422 = vpop.f32.mrf.mxu0
    %v3423 = vadd.f32 %v3409, %v3422
    %3424 = vdwg.mxu0
    %3425 = vmatpush.bf16.msra.mxu0 %v3197
    %3426 = vmatpush.bf16.msra.mxu0 %v3189
    %3427 = vmatpush.bf16.msra.mxu0 %v3181
    %3428 = vmatpush.bf16.msra.mxu0 %v3173
    %3429 = vmatpush.bf16.msra.mxu0 %v3165
    %3430 = vmatpush.bf16.msra.mxu0 %v3157
    %3431 = vmatpush.bf16.msra.mxu0 %v3149
    %3432 = vmatpush.bf16.msra.mxu0 %v3141
    %3433 = vmatmul.bf16.gmra.mxu0 %v2226
    %v3434 = vpop.f32.mrf.mxu0
    %v3435 = vadd.f32 %v3421, %v3434
    %v3436 = vpop.f32.mrf.mxu0
    %v3437 = vadd.f32 %v3423, %v3436
    %3438 = vdwg.mxu0
    %3439 = vmatpush.bf16.msra.mxu0 %v3070
    %3440 = vmatpush.bf16.msra.mxu0 %v3062
    %3441 = vmatpush.bf16.msra.mxu0 %v3054
    %3442 = vmatpush.bf16.msra.mxu0 %v3046
    %3443 = vmatpush.bf16.msra.mxu0 %v3038
    %3444 = vmatpush.bf16.msra.mxu0 %v3030
    %3445 = vmatpush.bf16.msra.mxu0 %v3022
    %3446 = vmatpush.bf16.msra.mxu0 %v3014
    %3447 = vmatmul.bf16.gmra.mxu0 %v2224
    %v3448 = vpop.f32.mrf.mxu0
    %v3449 = vadd.f32 %v2422, %v3448
    %v3450 = vpop.f32.mrf.mxu0
    %v3451 = vadd.f32 %v2422, %v3450
    %3452 = vdwg.mxu0
    %3453 = vmatpush.bf16.msra.mxu0 %v3134
    %3454 = vmatpush.bf16.msra.mxu0 %v3126
    %3455 = vmatpush.bf16.msra.mxu0 %v3118
    %3456 = vmatpush.bf16.msra.mxu0 %v3110
    %3457 = vmatpush.bf16.msra.mxu0 %v3102
    %3458 = vmatpush.bf16.msra.mxu0 %v3094
    %3459 = vmatpush.bf16.msra.mxu0 %v3086
    %3460 = vmatpush.bf16.msra.mxu0 %v3078
    %3461 = vmatmul.bf16.gmra.mxu0 %v2225
    %v3462 = vpop.f32.mrf.mxu0
    %v3463 = vadd.f32 %v3449, %v3462
    %v3464 = vpop.f32.mrf.mxu0
    %v3465 = vadd.f32 %v3451, %v3464
    %3466 = vdwg.mxu0
    %3467 = vmatpush.bf16.msra.mxu0 %v3198
    %3468 = vmatpush.bf16.msra.mxu0 %v3190
    %3469 = vmatpush.bf16.msra.mxu0 %v3182
    %3470 = vmatpush.bf16.msra.mxu0 %v3174
    %3471 = vmatpush.bf16.msra.mxu0 %v3166
    %3472 = vmatpush.bf16.msra.mxu0 %v3158
    %3473 = vmatpush.bf16.msra.mxu0 %v3150
    %3474 = vmatpush.bf16.msra.mxu0 %v3142
    %3475 = vmatmul.bf16.gmra.mxu0 %v2226
    %v3476 = vpop.f32.mrf.mxu0
    %v3477 = vadd.f32 %v3463, %v3476
    %v3478 = vpop.f32.mrf.mxu0
    %v3479 = vadd.f32 %v3465, %v3478
    %3480 = vdwg.mxu0
    %3481 = vmatpush.bf16.msra.mxu0 %v3071
    %3482 = vmatpush.bf16.msra.mxu0 %v3063
    %3483 = vmatpush.bf16.msra.mxu0 %v3055
    %3484 = vmatpush.bf16.msra.mxu0 %v3047
    %3485 = vmatpush.bf16.msra.mxu0 %v3039
    %3486 = vmatpush.bf16.msra.mxu0 %v3031
    %3487 = vmatpush.bf16.msra.mxu0 %v3023
    %3488 = vmatpush.bf16.msra.mxu0 %v3015
    %3489 = vmatmul.bf16.gmra.mxu0 %v2224
    %v3490 = vpop.f32.mrf.mxu0
    %v3491 = vadd.f32 %v2423, %v3490
    %v3492 = vpop.f32.mrf.mxu0
    %v3493 = vadd.f32 %v2423, %v3492
    %3494 = vdwg.mxu0
    %3495 = vmatpush.bf16.msra.mxu0 %v3135
    %3496 = vmatpush.bf16.msra.mxu0 %v3127
    %3497 = vmatpush.bf16.msra.mxu0 %v3119
    %3498 = vmatpush.bf16.msra.mxu0 %v3111
    %3499 = vmatpush.bf16.msra.mxu0 %v3103
    %3500 = vmatpush.bf16.msra.mxu0 %v3095
    %3501 = vmatpush.bf16.msra.mxu0 %v3087
    %3502 = vmatpush.bf16.msra.mxu0 %v3079
    %3503 = vmatmul.bf16.gmra.mxu0 %v2225
    %v3504 = vpop.f32.mrf.mxu0
    %v3505 = vadd.f32 %v3491, %v3504
    %v3506 = vpop.f32.mrf.mxu0
    %v3507 = vadd.f32 %v3493, %v3506
    %3508 = vdwg.mxu0
    %3509 = vmatpush.bf16.msra.mxu0 %v3199
    %3510 = vmatpush.bf16.msra.mxu0 %v3191
    %3511 = vmatpush.bf16.msra.mxu0 %v3183
    %3512 = vmatpush.bf16.msra.mxu0 %v3175
    %3513 = vmatpush.bf16.msra.mxu0 %v3167
    %3514 = vmatpush.bf16.msra.mxu0 %v3159
    %3515 = vmatpush.bf16.msra.mxu0 %v3151
    %3516 = vmatpush.bf16.msra.mxu0 %v3143
    %3517 = vmatmul.bf16.gmra.mxu0 %v2226
    %v3518 = vpop.f32.mrf.mxu0
    %v3519 = vadd.f32 %v3505, %v3518
    %v3520 = vpop.f32.mrf.mxu0
    %v3521 = vadd.f32 %v3507, %v3520
    %3522 = vdwg.mxu0
    %3523 = vmatpush.bf16.msra.mxu0 %v3072
    %3524 = vmatpush.bf16.msra.mxu0 %v3064
    %3525 = vmatpush.bf16.msra.mxu0 %v3056
    %3526 = vmatpush.bf16.msra.mxu0 %v3048
    %3527 = vmatpush.bf16.msra.mxu0 %v3040
    %3528 = vmatpush.bf16.msra.mxu0 %v3032
    %3529 = vmatpush.bf16.msra.mxu0 %v3024
    %3530 = vmatpush.bf16.msra.mxu0 %v3016
    %3531 = vmatmul.bf16.gmra.mxu0 %v2224
    %v3532 = vpop.f32.mrf.mxu0
    %v3533 = vadd.f32 %v2424, %v3532
    %v3534 = vpop.f32.mrf.mxu0
    %v3535 = vadd.f32 %v2424, %v3534
    %3536 = vdwg.mxu0
    %3537 = vmatpush.bf16.msra.mxu0 %v3136
    %3538 = vmatpush.bf16.msra.mxu0 %v3128
    %3539 = vmatpush.bf16.msra.mxu0 %v3120
    %3540 = vmatpush.bf16.msra.mxu0 %v3112
    %3541 = vmatpush.bf16.msra.mxu0 %v3104
    %3542 = vmatpush.bf16.msra.mxu0 %v3096
    %3543 = vmatpush.bf16.msra.mxu0 %v3088
    %3544 = vmatpush.bf16.msra.mxu0 %v3080
    %3545 = vmatmul.bf16.gmra.mxu0 %v2225
    %v3546 = vpop.f32.mrf.mxu0
    %v3547 = vadd.f32 %v3533, %v3546
    %v3548 = vpop.f32.mrf.mxu0
    %v3549 = vadd.f32 %v3535, %v3548
    %3550 = vdwg.mxu0
    %3551 = vmatpush.bf16.msra.mxu0 %v3200
    %3552 = vmatpush.bf16.msra.mxu0 %v3192
    %3553 = vmatpush.bf16.msra.mxu0 %v3184
    %3554 = vmatpush.bf16.msra.mxu0 %v3176
    %3555 = vmatpush.bf16.msra.mxu0 %v3168
    %3556 = vmatpush.bf16.msra.mxu0 %v3160
    %3557 = vmatpush.bf16.msra.mxu0 %v3152
    %3558 = vmatpush.bf16.msra.mxu0 %v3144
    %3559 = vmatmul.bf16.gmra.mxu0 %v2226
    %v3560 = vpop.f32.mrf.mxu0
    %v3561 = vadd.f32 %v3547, %v3560
    %v3562 = vpop.f32.mrf.mxu0
    %v3563 = vadd.f32 %v3549, %v3562
    %3564 = vdwg.mxu0
    %3565 = vmatpush.bf16.msra.mxu0 %v3073
    %3566 = vmatpush.bf16.msra.mxu0 %v3065
    %3567 = vmatpush.bf16.msra.mxu0 %v3057
    %3568 = vmatpush.bf16.msra.mxu0 %v3049
    %3569 = vmatpush.bf16.msra.mxu0 %v3041
    %3570 = vmatpush.bf16.msra.mxu0 %v3033
    %3571 = vmatpush.bf16.msra.mxu0 %v3025
    %3572 = vmatpush.bf16.msra.mxu0 %v3017
    %3573 = vmatmul.bf16.gmra.mxu0 %v2224
    %v3574 = vpop.f32.mrf.mxu0
    %v3575 = vadd.f32 %v2425, %v3574
    %v3576 = vpop.f32.mrf.mxu0
    %v3577 = vadd.f32 %v2425, %v3576
    %3578 = vdwg.mxu0
    %3579 = vmatpush.bf16.msra.mxu0 %v3137
    %3580 = vmatpush.bf16.msra.mxu0 %v3129
    %3581 = vmatpush.bf16.msra.mxu0 %v3121
    %3582 = vmatpush.bf16.msra.mxu0 %v3113
    %3583 = vmatpush.bf16.msra.mxu0 %v3105
    %3584 = vmatpush.bf16.msra.mxu0 %v3097
    %3585 = vmatpush.bf16.msra.mxu0 %v3089
    %3586 = vmatpush.bf16.msra.mxu0 %v3081
    %3587 = vmatmul.bf16.gmra.mxu0 %v2225
    %v3588 = vpop.f32.mrf.mxu0
    %v3589 = vadd.f32 %v3575, %v3588
    %v3590 = vpop.f32.mrf.mxu0
    %v3591 = vadd.f32 %v3577, %v3590
    %3592 = vdwg.mxu0
    %3593 = vmatpush.bf16.msra.mxu0 %v3201
    %3594 = vmatpush.bf16.msra.mxu0 %v3193
    %3595 = vmatpush.bf16.msra.mxu0 %v3185
    %3596 = vmatpush.bf16.msra.mxu0 %v3177
    %3597 = vmatpush.bf16.msra.mxu0 %v3169
    %3598 = vmatpush.bf16.msra.mxu0 %v3161
    %3599 = vmatpush.bf16.msra.mxu0 %v3153
    %3600 = vmatpush.bf16.msra.mxu0 %v3145
    %3601 = vmatmul.bf16.gmra.mxu0 %v2226
    %v3602 = vpop.f32.mrf.mxu0
    %v3603 = vadd.f32 %v3589, %v3602
    %v3604 = vpop.f32.mrf.mxu0
    %v3605 = vadd.f32 %v3591, %v3604
    %3606 = vdwg.mxu0
    %3607 = vmatpush.bf16.msra.mxu0 %v3074
    %3608 = vmatpush.bf16.msra.mxu0 %v3066
    %3609 = vmatpush.bf16.msra.mxu0 %v3058
    %3610 = vmatpush.bf16.msra.mxu0 %v3050
    %3611 = vmatpush.bf16.msra.mxu0 %v3042
    %3612 = vmatpush.bf16.msra.mxu0 %v3034
    %3613 = vmatpush.bf16.msra.mxu0 %v3026
    %3614 = vmatpush.bf16.msra.mxu0 %v3018
    %3615 = vmatmul.bf16.gmra.mxu0 %v2224
    %v3616 = vpop.f32.mrf.mxu0
    %v3617 = vadd.f32 %v2426, %v3616
    %v3618 = vpop.f32.mrf.mxu0
    %v3619 = vadd.f32 %v2426, %v3618
    %3620 = vdwg.mxu0
    %3621 = vmatpush.bf16.msra.mxu0 %v3138
    %3622 = vmatpush.bf16.msra.mxu0 %v3130
    %3623 = vmatpush.bf16.msra.mxu0 %v3122
    %3624 = vmatpush.bf16.msra.mxu0 %v3114
    %3625 = vmatpush.bf16.msra.mxu0 %v3106
    %3626 = vmatpush.bf16.msra.mxu0 %v3098
    %3627 = vmatpush.bf16.msra.mxu0 %v3090
    %3628 = vmatpush.bf16.msra.mxu0 %v3082
    %3629 = vmatmul.bf16.gmra.mxu0 %v2225
    %v3630 = vpop.f32.mrf.mxu0
    %v3631 = vadd.f32 %v3617, %v3630
    %v3632 = vpop.f32.mrf.mxu0
    %v3633 = vadd.f32 %v3619, %v3632
    %3634 = vdwg.mxu0
    %3635 = vmatpush.bf16.msra.mxu0 %v3202
    %3636 = vmatpush.bf16.msra.mxu0 %v3194
    %3637 = vmatpush.bf16.msra.mxu0 %v3186
    %3638 = vmatpush.bf16.msra.mxu0 %v3178
    %3639 = vmatpush.bf16.msra.mxu0 %v3170
    %3640 = vmatpush.bf16.msra.mxu0 %v3162
    %3641 = vmatpush.bf16.msra.mxu0 %v3154
    %3642 = vmatpush.bf16.msra.mxu0 %v3146
    %3643 = vmatmul.bf16.gmra.mxu0 %v2226
    %v3644 = vpop.f32.mrf.mxu0
    %v3645 = vadd.f32 %v3631, %v3644
    %v3646 = vpop.f32.mrf.mxu0
    %v3647 = vadd.f32 %v3633, %v3646
    %3648 = vdwg.mxu0
    %3649 = vmatpush.bf16.msra.mxu0 %v3075
    %3650 = vmatpush.bf16.msra.mxu0 %v3067
    %3651 = vmatpush.bf16.msra.mxu0 %v3059
    %3652 = vmatpush.bf16.msra.mxu0 %v3051
    %3653 = vmatpush.bf16.msra.mxu0 %v3043
    %3654 = vmatpush.bf16.msra.mxu0 %v3035
    %3655 = vmatpush.bf16.msra.mxu0 %v3027
    %3656 = vmatpush.bf16.msra.mxu0 %v3019
    %3657 = vmatmul.bf16.gmra.mxu0 %v2224
    %v3658 = vpop.f32.mrf.mxu0
    %v3659 = vadd.f32 %v2427, %v3658
    %v3660 = vpop.f32.mrf.mxu0
    %v3661 = vadd.f32 %v2427, %v3660
    %3662 = vdwg.mxu0
    %3663 = vmatpush.bf16.msra.mxu0 %v3139
    %3664 = vmatpush.bf16.msra.mxu0 %v3131
    %3665 = vmatpush.bf16.msra.mxu0 %v3123
    %3666 = vmatpush.bf16.msra.mxu0 %v3115
    %3667 = vmatpush.bf16.msra.mxu0 %v3107
    %3668 = vmatpush.bf16.msra.mxu0 %v3099
    %3669 = vmatpush.bf16.msra.mxu0 %v3091
    %3670 = vmatpush.bf16.msra.mxu0 %v3083
    %3671 = vmatmul.bf16.gmra.mxu0 %v2225
    %v3672 = vpop.f32.mrf.mxu0
    %v3673 = vadd.f32 %v3659, %v3672
    %v3674 = vpop.f32.mrf.mxu0
    %v3675 = vadd.f32 %v3661, %v3674
    %3676 = vdwg.mxu0
    %3677 = vmatpush.bf16.msra.mxu0 %v3203
    %3678 = vmatpush.bf16.msra.mxu0 %v3195
    %3679 = vmatpush.bf16.msra.mxu0 %v3187
    %3680 = vmatpush.bf16.msra.mxu0 %v3179
    %3681 = vmatpush.bf16.msra.mxu0 %v3171
    %3682 = vmatpush.bf16.msra.mxu0 %v3163
    %3683 = vmatpush.bf16.msra.mxu0 %v3155
    %3684 = vmatpush.bf16.msra.mxu0 %v3147
    %3685 = vmatmul.bf16.gmra.mxu0 %v2226
    %v3686 = vpop.f32.mrf.mxu0
    %v3687 = vadd.f32 %v3673, %v3686
    %v3688 = vpop.f32.mrf.mxu0
    %v3689 = vadd.f32 %v3675, %v3688
    %3690 = vdwg.mxu0
    %3691 = vmatpush.bf16.msra.mxu0 %v3076
    %3692 = vmatpush.bf16.msra.mxu0 %v3068
    %3693 = vmatpush.bf16.msra.mxu0 %v3060
    %3694 = vmatpush.bf16.msra.mxu0 %v3052
    %3695 = vmatpush.bf16.msra.mxu0 %v3044
    %3696 = vmatpush.bf16.msra.mxu0 %v3036
    %3697 = vmatpush.bf16.msra.mxu0 %v3028
    %3698 = vmatpush.bf16.msra.mxu0 %v3020
    %3699 = vmatmul.bf16.gmra.mxu0 %v2224
    %v3700 = vpop.f32.mrf.mxu0
    %v3701 = vadd.f32 %v2428, %v3700
    %v3702 = vpop.f32.mrf.mxu0
    %v3703 = vadd.f32 %v2428, %v3702
    %3704 = vdwg.mxu0
    %3705 = vmatpush.bf16.msra.mxu0 %v3140
    %3706 = vmatpush.bf16.msra.mxu0 %v3132
    %3707 = vmatpush.bf16.msra.mxu0 %v3124
    %3708 = vmatpush.bf16.msra.mxu0 %v3116
    %3709 = vmatpush.bf16.msra.mxu0 %v3108
    %3710 = vmatpush.bf16.msra.mxu0 %v3100
    %3711 = vmatpush.bf16.msra.mxu0 %v3092
    %3712 = vmatpush.bf16.msra.mxu0 %v3084
    %3713 = vmatmul.bf16.gmra.mxu0 %v2225
    %v3714 = vpop.f32.mrf.mxu0
    %v3715 = vadd.f32 %v3701, %v3714
    %v3716 = vpop.f32.mrf.mxu0
    %v3717 = vadd.f32 %v3703, %v3716
    %3718 = vdwg.mxu0
    %3719 = vmatpush.bf16.msra.mxu0 %v3204
    %3720 = vmatpush.bf16.msra.mxu0 %v3196
    %3721 = vmatpush.bf16.msra.mxu0 %v3188
    %3722 = vmatpush.bf16.msra.mxu0 %v3180
    %3723 = vmatpush.bf16.msra.mxu0 %v3172
    %3724 = vmatpush.bf16.msra.mxu0 %v3164
    %3725 = vmatpush.bf16.msra.mxu0 %v3156
    %3726 = vmatpush.bf16.msra.mxu0 %v3148
    %3727 = vmatmul.bf16.gmra.mxu0 %v2226
    %v3728 = vpop.f32.mrf.mxu0
    %v3729 = vadd.f32 %v3715, %v3728
    %v3730 = vpop.f32.mrf.mxu0
    %v3731 = vadd.f32 %v3717, %v3730
    %3732 = vdwg.mxu0
    %v3733 = vxor.u32 %v3435, 2147483648
    %v3734 = vxor.u32 %v3477, 2147483648
    %v3735 = vxor.u32 %v3519, 2147483648
    %v3736 = vxor.u32 %v3561, 2147483648
    %v3737 = vxor.u32 %v3603, 2147483648
    %v3738 = vxor.u32 %v3645, 2147483648
    %v3739 = vxor.u32 %v3687, 2147483648
    %v3740 = vxor.u32 %v3729, 2147483648
    %v3741 = vxor.u32 %v3437, 2147483648
    %v3742 = vxor.u32 %v3479, 2147483648
    %v3743 = vxor.u32 %v3521, 2147483648
    %v3744 = vxor.u32 %v3563, 2147483648
    %v3745 = vxor.u32 %v3605, 2147483648
    %v3746 = vxor.u32 %v3647, 2147483648
    %v3747 = vxor.u32 %v3689, 2147483648
    %v3748 = vxor.u32 %v3731, 2147483648
    %v3749 = vmul.f32 %v3733, 1.442695
    %v3750 = vpow.pop %v3749
    %v3751 = vmul.f32 %v3734, 1.442695
    %v3752 = vpow.pop %v3751
    %v3753 = vmul.f32 %v3735, 1.442695
    %v3754 = vpow.pop %v3753
    %v3755 = vmul.f32 %v3736, 1.442695
    %v3756 = vpow.pop %v3755
    %v3757 = vmul.f32 %v3737, 1.442695
    %v3758 = vpow.pop %v3757
    %v3759 = vmul.f32 %v3738, 1.442695
    %v3760 = vpow.pop %v3759
    %v3761 = vmul.f32 %v3739, 1.442695
    %v3762 = vpow.pop %v3761
    %v3763 = vmul.f32 %v3740, 1.442695
    %v3764 = vpow.pop %v3763
    %v3765 = vmul.f32 %v3741, 1.442695
    %v3766 = vpow.pop %v3765
    %v3767 = vmul.f32 %v3742, 1.442695
    %v3768 = vpow.pop %v3767
    %v3769 = vmul.f32 %v3743, 1.442695
    %v3770 = vpow.pop %v3769
    %v3771 = vmul.f32 %v3744, 1.442695
    %v3772 = vpow.pop %v3771
    %v3773 = vmul.f32 %v3745, 1.442695
    %v3774 = vpow.pop %v3773
    %v3775 = vmul.f32 %v3746, 1.442695
    %v3776 = vpow.pop %v3775
    %v3777 = vmul.f32 %v3747, 1.442695
    %v3778 = vpow.pop %v3777
    %v3779 = vmul.f32 %v3748, 1.442695
    %v3780 = vpow.pop %v3779
    %v3781 = vadd.f32 %v3750, 1.0
    %v3782 = vadd.f32 %v3752, 1.0
    %v3783 = vadd.f32 %v3754, 1.0
    %v3784 = vadd.f32 %v3756, 1.0
    %v3785 = vadd.f32 %v3758, 1.0
    %v3786 = vadd.f32 %v3760, 1.0
    %v3787 = vadd.f32 %v3762, 1.0
    %v3788 = vadd.f32 %v3764, 1.0
    %v3789 = vadd.f32 %v3766, 1.0
    %v3790 = vadd.f32 %v3768, 1.0
    %v3791 = vadd.f32 %v3770, 1.0
    %v3792 = vadd.f32 %v3772, 1.0
    %v3793 = vadd.f32 %v3774, 1.0
    %v3794 = vadd.f32 %v3776, 1.0
    %v3795 = vadd.f32 %v3778, 1.0
    %v3796 = vadd.f32 %v3780, 1.0
    %v3797 = vrcp.pop %v3781
    %v3798 = vmul.f32 %v3781, %v3797
    %v3799 = vsub.f32 1.0, %v3798
    %v3800 = vmul.f32 %v3797, %v3799
    %v3801 = vadd.f32 %v3797, %v3800
    %vm3802 = vweird.f32 %v3781
    %vm3803 = vweird.f32 %v3797
    %vm3804 = vmor %vm3802, %vm3803
    %v3805 = vsel %vm3804, %v3797, %v3801
    %v3806 = vand.u32 2147483647, %v3781
    %vm3807 = vcmp.eq.f32.partialorder %v3806, 8.507059e+37
    %v3808 = vand.u32 %v3781, 2147483648
    %v3809 = vor.u32 1.1754944e-38, %v3808
    %v3810 = vsel %vm3807, %v3809, %v3805
    %v3811 = vmul.f32 1.0, %v3810
    %v3812 = vrcp.pop %v3782
    %v3813 = vmul.f32 %v3782, %v3812
    %v3814 = vsub.f32 1.0, %v3813
    %v3815 = vmul.f32 %v3812, %v3814
    %v3816 = vadd.f32 %v3812, %v3815
    %vm3817 = vweird.f32 %v3782
    %vm3818 = vweird.f32 %v3812
    %vm3819 = vmor %vm3817, %vm3818
    %v3820 = vsel %vm3819, %v3812, %v3816
    %v3821 = vand.u32 2147483647, %v3782
    %vm3822 = vcmp.eq.f32.partialorder %v3821, 8.507059e+37
    %v3823 = vand.u32 %v3782, 2147483648
    %v3824 = vor.u32 1.1754944e-38, %v3823
    %v3825 = vsel %vm3822, %v3824, %v3820
    %v3826 = vmul.f32 1.0, %v3825
    %v3827 = vrcp.pop %v3783
    %v3828 = vmul.f32 %v3783, %v3827
    %v3829 = vsub.f32 1.0, %v3828
    %v3830 = vmul.f32 %v3827, %v3829
    %v3831 = vadd.f32 %v3827, %v3830
    %vm3832 = vweird.f32 %v3783
    %vm3833 = vweird.f32 %v3827
    %vm3834 = vmor %vm3832, %vm3833
    %v3835 = vsel %vm3834, %v3827, %v3831
    %v3836 = vand.u32 2147483647, %v3783
    %vm3837 = vcmp.eq.f32.partialorder %v3836, 8.507059e+37
    %v3838 = vand.u32 %v3783, 2147483648
    %v3839 = vor.u32 1.1754944e-38, %v3838
    %v3840 = vsel %vm3837, %v3839, %v3835
    %v3841 = vmul.f32 1.0, %v3840
    %v3842 = vrcp.pop %v3784
    %v3843 = vmul.f32 %v3784, %v3842
    %v3844 = vsub.f32 1.0, %v3843
    %v3845 = vmul.f32 %v3842, %v3844
    %v3846 = vadd.f32 %v3842, %v3845
    %vm3847 = vweird.f32 %v3784
    %vm3848 = vweird.f32 %v3842
    %vm3849 = vmor %vm3847, %vm3848
    %v3850 = vsel %vm3849, %v3842, %v3846
    %v3851 = vand.u32 2147483647, %v3784
    %vm3852 = vcmp.eq.f32.partialorder %v3851, 8.507059e+37
    %v3853 = vand.u32 %v3784, 2147483648
    %v3854 = vor.u32 1.1754944e-38, %v3853
    %v3855 = vsel %vm3852, %v3854, %v3850
    %v3856 = vmul.f32 1.0, %v3855
    %v3857 = vrcp.pop %v3785
    %v3858 = vmul.f32 %v3785, %v3857
    %v3859 = vsub.f32 1.0, %v3858
    %v3860 = vmul.f32 %v3857, %v3859
    %v3861 = vadd.f32 %v3857, %v3860
    %vm3862 = vweird.f32 %v3785
    %vm3863 = vweird.f32 %v3857
    %vm3864 = vmor %vm3862, %vm3863
    %v3865 = vsel %vm3864, %v3857, %v3861
    %v3866 = vand.u32 2147483647, %v3785
    %vm3867 = vcmp.eq.f32.partialorder %v3866, 8.507059e+37
    %v3868 = vand.u32 %v3785, 2147483648
    %v3869 = vor.u32 1.1754944e-38, %v3868
    %v3870 = vsel %vm3867, %v3869, %v3865
    %v3871 = vmul.f32 1.0, %v3870
    %v3872 = vrcp.pop %v3786
    %v3873 = vmul.f32 %v3786, %v3872
    %v3874 = vsub.f32 1.0, %v3873
    %v3875 = vmul.f32 %v3872, %v3874
    %v3876 = vadd.f32 %v3872, %v3875
    %vm3877 = vweird.f32 %v3786
    %vm3878 = vweird.f32 %v3872
    %vm3879 = vmor %vm3877, %vm3878
    %v3880 = vsel %vm3879, %v3872, %v3876
    %v3881 = vand.u32 2147483647, %v3786
    %vm3882 = vcmp.eq.f32.partialorder %v3881, 8.507059e+37
    %v3883 = vand.u32 %v3786, 2147483648
    %v3884 = vor.u32 1.1754944e-38, %v3883
    %v3885 = vsel %vm3882, %v3884, %v3880
    %v3886 = vmul.f32 1.0, %v3885
    %v3887 = vrcp.pop %v3787
    %v3888 = vmul.f32 %v3787, %v3887
    %v3889 = vsub.f32 1.0, %v3888
    %v3890 = vmul.f32 %v3887, %v3889
    %v3891 = vadd.f32 %v3887, %v3890
    %vm3892 = vweird.f32 %v3787
    %vm3893 = vweird.f32 %v3887
    %vm3894 = vmor %vm3892, %vm3893
    %v3895 = vsel %vm3894, %v3887, %v3891
    %v3896 = vand.u32 2147483647, %v3787
    %vm3897 = vcmp.eq.f32.partialorder %v3896, 8.507059e+37
    %v3898 = vand.u32 %v3787, 2147483648
    %v3899 = vor.u32 1.1754944e-38, %v3898
    %v3900 = vsel %vm3897, %v3899, %v3895
    %v3901 = vmul.f32 1.0, %v3900
    %v3902 = vrcp.pop %v3788
    %v3903 = vmul.f32 %v3788, %v3902
    %v3904 = vsub.f32 1.0, %v3903
    %v3905 = vmul.f32 %v3902, %v3904
    %v3906 = vadd.f32 %v3902, %v3905
    %vm3907 = vweird.f32 %v3788
    %vm3908 = vweird.f32 %v3902
    %vm3909 = vmor %vm3907, %vm3908
    %v3910 = vsel %vm3909, %v3902, %v3906
    %v3911 = vand.u32 2147483647, %v3788
    %vm3912 = vcmp.eq.f32.partialorder %v3911, 8.507059e+37
    %v3913 = vand.u32 %v3788, 2147483648
    %v3914 = vor.u32 1.1754944e-38, %v3913
    %v3915 = vsel %vm3912, %v3914, %v3910
    %v3916 = vmul.f32 1.0, %v3915
    %v3917 = vrcp.pop %v3789
    %v3918 = vmul.f32 %v3789, %v3917
    %v3919 = vsub.f32 1.0, %v3918
    %v3920 = vmul.f32 %v3917, %v3919
    %v3921 = vadd.f32 %v3917, %v3920
    %vm3922 = vweird.f32 %v3789
    %vm3923 = vweird.f32 %v3917
    %vm3924 = vmor %vm3922, %vm3923
    %v3925 = vsel %vm3924, %v3917, %v3921
    %v3926 = vand.u32 2147483647, %v3789
    %vm3927 = vcmp.eq.f32.partialorder %v3926, 8.507059e+37
    %v3928 = vand.u32 %v3789, 2147483648
    %v3929 = vor.u32 1.1754944e-38, %v3928
    %v3930 = vsel %vm3927, %v3929, %v3925
    %v3931 = vmul.f32 1.0, %v3930
    %v3932 = vrcp.pop %v3790
    %v3933 = vmul.f32 %v3790, %v3932
    %v3934 = vsub.f32 1.0, %v3933
    %v3935 = vmul.f32 %v3932, %v3934
    %v3936 = vadd.f32 %v3932, %v3935
    %vm3937 = vweird.f32 %v3790
    %vm3938 = vweird.f32 %v3932
    %vm3939 = vmor %vm3937, %vm3938
    %v3940 = vsel %vm3939, %v3932, %v3936
    %v3941 = vand.u32 2147483647, %v3790
    %vm3942 = vcmp.eq.f32.partialorder %v3941, 8.507059e+37
    %v3943 = vand.u32 %v3790, 2147483648
    %v3944 = vor.u32 1.1754944e-38, %v3943
    %v3945 = vsel %vm3942, %v3944, %v3940
    %v3946 = vmul.f32 1.0, %v3945
    %v3947 = vrcp.pop %v3791
    %v3948 = vmul.f32 %v3791, %v3947
    %v3949 = vsub.f32 1.0, %v3948
    %v3950 = vmul.f32 %v3947, %v3949
    %v3951 = vadd.f32 %v3947, %v3950
    %vm3952 = vweird.f32 %v3791
    %vm3953 = vweird.f32 %v3947
    %vm3954 = vmor %vm3952, %vm3953
    %v3955 = vsel %vm3954, %v3947, %v3951
    %v3956 = vand.u32 2147483647, %v3791
    %vm3957 = vcmp.eq.f32.partialorder %v3956, 8.507059e+37
    %v3958 = vand.u32 %v3791, 2147483648
    %v3959 = vor.u32 1.1754944e-38, %v3958
    %v3960 = vsel %vm3957, %v3959, %v3955
    %v3961 = vmul.f32 1.0, %v3960
    %v3962 = vrcp.pop %v3792
    %v3963 = vmul.f32 %v3792, %v3962
    %v3964 = vsub.f32 1.0, %v3963
    %v3965 = vmul.f32 %v3962, %v3964
    %v3966 = vadd.f32 %v3962, %v3965
    %vm3967 = vweird.f32 %v3792
    %vm3968 = vweird.f32 %v3962
    %vm3969 = vmor %vm3967, %vm3968
    %v3970 = vsel %vm3969, %v3962, %v3966
    %v3971 = vand.u32 2147483647, %v3792
    %vm3972 = vcmp.eq.f32.partialorder %v3971, 8.507059e+37
    %v3973 = vand.u32 %v3792, 2147483648
    %v3974 = vor.u32 1.1754944e-38, %v3973
    %v3975 = vsel %vm3972, %v3974, %v3970
    %v3976 = vmul.f32 1.0, %v3975
    %v3977 = vrcp.pop %v3793
    %v3978 = vmul.f32 %v3793, %v3977
    %v3979 = vsub.f32 1.0, %v3978
    %v3980 = vmul.f32 %v3977, %v3979
    %v3981 = vadd.f32 %v3977, %v3980
    %vm3982 = vweird.f32 %v3793
    %vm3983 = vweird.f32 %v3977
    %vm3984 = vmor %vm3982, %vm3983
    %v3985 = vsel %vm3984, %v3977, %v3981
    %v3986 = vand.u32 2147483647, %v3793
    %vm3987 = vcmp.eq.f32.partialorder %v3986, 8.507059e+37
    %v3988 = vand.u32 %v3793, 2147483648
    %v3989 = vor.u32 1.1754944e-38, %v3988
    %v3990 = vsel %vm3987, %v3989, %v3985
    %v3991 = vmul.f32 1.0, %v3990
    %v3992 = vrcp.pop %v3794
    %v3993 = vmul.f32 %v3794, %v3992
    %v3994 = vsub.f32 1.0, %v3993
    %v3995 = vmul.f32 %v3992, %v3994
    %v3996 = vadd.f32 %v3992, %v3995
    %vm3997 = vweird.f32 %v3794
    %vm3998 = vweird.f32 %v3992
    %vm3999 = vmor %vm3997, %vm3998
    %v4000 = vsel %vm3999, %v3992, %v3996
    %v4001 = vand.u32 2147483647, %v3794
    %vm4002 = vcmp.eq.f32.partialorder %v4001, 8.507059e+37
    %v4003 = vand.u32 %v3794, 2147483648
    %v4004 = vor.u32 1.1754944e-38, %v4003
    %v4005 = vsel %vm4002, %v4004, %v4000
    %v4006 = vmul.f32 1.0, %v4005
    %v4007 = vrcp.pop %v3795
    %v4008 = vmul.f32 %v3795, %v4007
    %v4009 = vsub.f32 1.0, %v4008
    %v4010 = vmul.f32 %v4007, %v4009
    %v4011 = vadd.f32 %v4007, %v4010
    %vm4012 = vweird.f32 %v3795
    %vm4013 = vweird.f32 %v4007
    %vm4014 = vmor %vm4012, %vm4013
    %v4015 = vsel %vm4014, %v4007, %v4011
    %v4016 = vand.u32 2147483647, %v3795
    %vm4017 = vcmp.eq.f32.partialorder %v4016, 8.507059e+37
    %v4018 = vand.u32 %v3795, 2147483648
    %v4019 = vor.u32 1.1754944e-38, %v4018
    %v4020 = vsel %vm4017, %v4019, %v4015
    %v4021 = vmul.f32 1.0, %v4020
    %v4022 = vrcp.pop %v3796
    %v4023 = vmul.f32 %v3796, %v4022
    %v4024 = vsub.f32 1.0, %v4023
    %v4025 = vmul.f32 %v4022, %v4024
    %v4026 = vadd.f32 %v4022, %v4025
    %vm4027 = vweird.f32 %v3796
    %vm4028 = vweird.f32 %v4022
    %vm4029 = vmor %vm4027, %vm4028
    %v4030 = vsel %vm4029, %v4022, %v4026
    %v4031 = vand.u32 2147483647, %v3796
    %vm4032 = vcmp.eq.f32.partialorder %v4031, 8.507059e+37
    %v4033 = vand.u32 %v3796, 2147483648
    %v4034 = vor.u32 1.1754944e-38, %v4033
    %v4035 = vsel %vm4032, %v4034, %v4030
    %v4036 = vmul.f32 1.0, %v4035
    %v4037 = vpack.c.bf16 %v3826, %v3811
    %v4038 = vpack.c.bf16 %v3856, %v3841
    %v4039 = vpack.c.bf16 %v3886, %v3871
    %v4040 = vpack.c.bf16 %v3916, %v3901
    %v4041 = vpack.c.bf16 %v3946, %v3931
    %v4042 = vpack.c.bf16 %v3976, %v3961
    %v4043 = vpack.c.bf16 %v4006, %v3991
    %v4044 = vpack.c.bf16 %v4036, %v4021
    %4045 = vst [vmem:[#allocation12] sm:$0xff] %v4037
    %4046 = vst [vmem:[#allocation12 + $0x8] sm:$0xff] %v4038
    %4047 = vst [vmem:[#allocation12 + $0x10] sm:$0xff] %v4039
    %4048 = vst [vmem:[#allocation12 + $0x18] sm:$0xff] %v4040
    %4049 = vst [vmem:[#allocation12 + $0x20] sm:$0xff] %v4041
    %4050 = vst [vmem:[#allocation12 + $0x28] sm:$0xff] %v4042
    %4051 = vst [vmem:[#allocation12 + $0x30] sm:$0xff] %v4043
    %4052 = vst [vmem:[#allocation12 + $0x38] sm:$0xff] %v4044
    // Predicated region
    $region58: #{autoencoder_forward.1} parent=1 // pred_check
      _
    $region59: #{autoencoder_forward.1} parent=1 // pred_check_branch
      %4054 = sbr.rel (0) target = $region61
    $region60: #{autoencoder_forward.1} parent=1 // pred_region
      %4056 = vsyncadd [#allocation4], 0
      %s4057 = sshll.u32 [#allocation11], 4
      %s4058 = int_to_ptr.vmem [resolvable:$true] %s4057
      %s4059 = sshll.u32 %s9, 4
      %s4060 = int_to_ptr.hbm [resolvable:$true] %s4059
      %4065 = dma.vmem_to_hbm [thread:$0]  %s4058, 256, %s4060, [#allocation4], 128, 128, 8
    $region61: #{autoencoder_forward.1} parent=1 // pred_fallthru
      _
    // Predicated region
    $region62: #{autoencoder_forward.1} parent=1 // pred_check
      _
    $region63: #{autoencoder_forward.1} parent=1 // pred_check_branch
      %4067 = sbr.rel (0) target = $region65
    $region64: #{autoencoder_forward.1} parent=1 // pred_region
      %4069 = vsyncadd [#allocation13], 0
      %s4070 = sshll.u32 [#allocation12], 4
      %s4071 = int_to_ptr.vmem [resolvable:$true] %s4070
      %s4072 = sshll.u32 %s10, 4
      %s4073 = int_to_ptr.hbm [resolvable:$true] %s4072
      %4078 = dma.vmem_to_hbm [thread:$0]  %s4071, 1024, %s4073, [#allocation13], 512, 512, 32
    $region65: #{autoencoder_forward.1} parent=1 // pred_fallthru
      _
    // Predicated region
    $region66: #{autoencoder_forward.1} parent=1 // pred_check
      _
    $region67: #{autoencoder_forward.1} parent=1 // pred_check_branch
      %4080 = sbr.rel (0) target = $region69
    $region68: #{autoencoder_forward.1} parent=1 // pred_region
      %4082 = dma.done [#allocation4], 256
    $region69: #{autoencoder_forward.1} parent=1 // pred_fallthru
      _
    // Predicated region
    $region70: #{autoencoder_forward.1} parent=1 // pred_check
      _
    $region71: #{autoencoder_forward.1} parent=1 // pred_check_branch
      %4084 = sbr.rel (0) target = $region73
    $region72: #{autoencoder_forward.1} parent=1 // pred_region
      %4086 = dma.done [#allocation13], 1024
    $region73: #{autoencoder_forward.1} parent=1 // pred_fallthru
      _
    %4087 = vsyncpa [#allocation3], 1
    %4088 = vsyncpa [#allocation6], 1
    %4089 = vsyncpa [#allocation9], 1
    %4090 = vsyncpa [#allocation4], 1
    %4091 = vsyncpa [#allocation13], 1

</llo_original>
